<compile_context>
chip_gen: v6e
topology: v6e:2x2x1
jax: 0.10.0
libtpu: 0.0.40
codegen_flags: <defaults>
</compile_context>

<pallas_src>
import functools

import jax
import jax.numpy as jnp
from jax.experimental import pallas as pl
from jax.experimental.pallas import tpu as pltpu

# -------------------- synthetic BMEConfig (small) --------------------
BATCH = 2
SEQ_LEN = 8
HIDDEN = 32          # config.hidden_size
EEG_VOCAB = 256      # config.eeg_vocab_size
ECG_VOCAB = 320      # config.ecg_vocab_size
PAD_ID = 0           # config.pad_token_id


# ==================== Pallas kernel ====================

def _embedding_kernel(eeg_ids_ref, ecg_ids_ref,        # scalar prefetch (SMEM)
                      eeg_tab_ref, ecg_tab_ref,        # HBM tables (pl.ANY)
                      eeg_out_ref, ecg_out_ref,        # VMEM output blocks
                      eeg_scr, ecg_scr, sem,           # scratch
                      *, tok_block):
    base = pl.program_id(0) * tok_block

    # Issue all row-gather DMAs (HBM table row -> VMEM staging row).  All DMAs
    # are in flight concurrently; one shared semaphore per table.
    for t in range(tok_block):                 # static unroll, tok_block small
        pltpu.make_async_copy(eeg_tab_ref.at[eeg_ids_ref[base + t]],
                              eeg_scr.at[t], sem.at[0]).start()
        pltpu.make_async_copy(ecg_tab_ref.at[ecg_ids_ref[base + t]],
                              ecg_scr.at[t], sem.at[1]).start()

    # Wait for completion (each wait decrements by one row's byte count; after
    # tok_block waits every gather has landed).
    for t in range(tok_block):
        pltpu.make_async_copy(eeg_tab_ref.at[0], eeg_scr.at[t], sem.at[0]).wait()
        pltpu.make_async_copy(ecg_tab_ref.at[0], ecg_scr.at[t], sem.at[1]).wait()

    # Single dense store per output block (no per-token masked stores).
    eeg_out_ref[...] = eeg_scr[...]
    ecg_out_ref[...] = ecg_scr[...]


# ==================== wrapper ====================

def bme_embedding_forward(eeg_input_ids, ecg_input_ids, eeg_table, ecg_table,
                          max_tok_block=256):
    assert eeg_input_ids.shape == ecg_input_ids.shape
    B, L = eeg_input_ids.shape
    N = B * L
    H = eeg_table.shape[1]
    assert ecg_table.shape[1] == H

    tok_block = N if N <= max_tok_block else max_tok_block
    assert N % tok_block == 0, "token count must be divisible by token block"

    eeg_flat = eeg_input_ids.reshape(N).astype(jnp.int32)
    ecg_flat = ecg_input_ids.reshape(N).astype(jnp.int32)

    kernel = functools.partial(_embedding_kernel, tok_block=tok_block)
    eeg_out, ecg_out = pl.pallas_call(
        kernel,
        out_shape=(jax.ShapeDtypeStruct((N, H), eeg_table.dtype),
                   jax.ShapeDtypeStruct((N, H), ecg_table.dtype)),
        grid_spec=pltpu.PrefetchScalarGridSpec(
            num_scalar_prefetch=2,                         # the two id arrays
            grid=(N // tok_block,),
            in_specs=[pl.BlockSpec(memory_space=pl.ANY),   # eeg table stays in HBM
                      pl.BlockSpec(memory_space=pl.ANY)],  # ecg table stays in HBM
            out_specs=[pl.BlockSpec((tok_block, H), lambda i, *_: (i, 0)),
                       pl.BlockSpec((tok_block, H), lambda i, *_: (i, 0))],
            scratch_shapes=[pltpu.VMEM((tok_block, H), eeg_table.dtype),
                            pltpu.VMEM((tok_block, H), ecg_table.dtype),
                            pltpu.SemaphoreType.DMA((2,))],
        ),
        compiler_params=pltpu.CompilerParams(
            dimension_semantics=("arbitrary",)),
    )(eeg_flat, ecg_flat, eeg_table, ecg_table)

    return eeg_out.reshape(B, L, H), ecg_out.reshape(B, L, H)


# ==================== test ====================

if __name__ == "__main__":
    key = jax.random.PRNGKey(0)
    k_eeg_w, k_ecg_w, k_eeg_i, k_ecg_i = jax.random.split(key, 4)

    eeg_table = jax.random.normal(k_eeg_w, (EEG_VOCAB, HIDDEN), jnp.float32)
    ecg_table = jax.random.normal(k_ecg_w, (ECG_VOCAB, HIDDEN), jnp.float32)
    # nn.Embedding(padding_idx=PAD_ID): the pad row is zero-initialized.
    eeg_table = eeg_table.at[PAD_ID].set(0.0)
    ecg_table = ecg_table.at[PAD_ID].set(0.0)

    eeg_ids = jax.random.randint(k_eeg_i, (BATCH, SEQ_LEN), 0, EEG_VOCAB, jnp.int32)
    ecg_ids = jax.random.randint(k_ecg_i, (BATCH, SEQ_LEN), 0, ECG_VOCAB, jnp.int32)
    # Exercise the padding_idx rows too.
    eeg_ids = eeg_ids.at[0, 0].set(PAD_ID)
    ecg_ids = ecg_ids.at[1, -1].set(PAD_ID)

    fwd = jax.jit(bme_embedding_forward)
    eeg_embeds, ecg_embeds = fwd(eeg_ids, ecg_ids, eeg_table, ecg_table)
    eeg_embeds, ecg_embeds = jax.block_until_ready((eeg_embeds, ecg_embeds))

    assert eeg_embeds.shape == (BATCH, SEQ_LEN, HIDDEN)
    assert ecg_embeds.shape == (BATCH, SEQ_LEN, HIDDEN)

    # Pure-JAX reference: an embedding forward is just a row gather.
    ref_eeg = jnp.take(eeg_table, eeg_ids, axis=0)
    ref_ecg = jnp.take(ecg_table, ecg_ids, axis=0)
    assert jnp.array_equal(eeg_embeds, ref_eeg), "eeg embedding mismatch"
    assert jnp.array_equal(ecg_embeds, ref_ecg), "ecg embedding mismatch"
    assert bool(jnp.all(eeg_embeds[0, 0] == 0.0)), "padding_idx row not zero (eeg)"
    assert bool(jnp.all(ecg_embeds[1, -1] == 0.0)), "padding_idx row not zero (ecg)"

    print("KERNEL_OK")
</pallas_src>

<mosaic_0001>
module attributes {stable_mosaic.version = 11 : i64} {
  func.func @_embedding_kernel(%arg0: i32, %arg1: memref<16xi32, #tpu.memory_space<smem>>, %arg2: memref<16xi32, #tpu.memory_space<smem>>, %arg3: memref<256x32xf32, #tpu.memory_space<any>>, %arg4: memref<320x32xf32, #tpu.memory_space<any>>, %arg5: memref<16x32xf32, #tpu.memory_space<vmem>>, %arg6: memref<16x32xf32, #tpu.memory_space<vmem>>, %arg7: memref<16x32xf32, #tpu.memory_space<vmem>>, %arg8: memref<16x32xf32, #tpu.memory_space<vmem>>, %arg9: memref<2x!tpu.dma_semaphore, #tpu.memory_space<semaphore_mem>>) attributes {dimension_semantics = [#tpu.dimension_semantics<arbitrary>], iteration_bounds = array<i64: 1>, scalar_prefetch = 2 : i64, scratch_operands = 3 : i64, tpu.core_type = #tpu.core_type<tc>, window_params = [{}, {}, {transform_indices = @transform_2, window_bounds = array<i64: 16, 32>}, {transform_indices = @transform_3, window_bounds = array<i64: 16, 32>}]} {
    %c16_i32 = arith.constant 16 : i32
    %0 = arith.muli %arg0, %c16_i32 : i32
    %c0_i32 = arith.constant 0 : i32
    %1 = arith.addi %0, %c0_i32 : i32
    %2 = arith.index_cast %1 : i32 to index
    %3 = memref.load %arg1[%2] : memref<16xi32, #tpu.memory_space<smem>>
    %c0_i32_0 = arith.constant 0 : i32
    %c0_i32_1 = arith.constant 0 : i32
    %c0_i32_2 = arith.constant 0 : i32
    %4 = tpu.memref_slice %arg3[%3, %c0_i32_2] : memref<256x32xf32, #tpu.memory_space<any>> -> memref<1x32xf32, #tpu.memory_space<any>>
    %5 = tpu.memref_squeeze %4 : memref<1x32xf32, #tpu.memory_space<any>> -> memref<32xf32, #tpu.memory_space<any>>
    %c0_i32_3 = arith.constant 0 : i32
    %6 = tpu.memref_slice %arg7[%c0_i32_0, %c0_i32_3] : memref<16x32xf32, #tpu.memory_space<vmem>> -> memref<1x32xf32, #tpu.memory_space<vmem>>
    %7 = tpu.memref_squeeze %6 : memref<1x32xf32, #tpu.memory_space<vmem>> -> memref<32xf32, #tpu.memory_space<vmem>>
    %8 = tpu.memref_slice %arg9[%c0_i32_1] : memref<2x!tpu.dma_semaphore, #tpu.memory_space<semaphore_mem>> -> memref<1x!tpu.dma_semaphore, #tpu.memory_space<semaphore_mem>>
    %9 = tpu.memref_squeeze %8 : memref<1x!tpu.dma_semaphore, #tpu.memory_space<semaphore_mem>> -> memref<!tpu.dma_semaphore, #tpu.memory_space<semaphore_mem>>
    tpu.enqueue_dma source(%5 : memref<32xf32, #tpu.memory_space<any>>) target(%7 : memref<32xf32, #tpu.memory_space<vmem>>) target_semaphore(%9 : memref<!tpu.dma_semaphore, #tpu.memory_space<semaphore_mem>>)
    %c0_i32_4 = arith.constant 0 : i32
    %10 = arith.addi %0, %c0_i32_4 : i32
    %11 = arith.index_cast %10 : i32 to index
    %12 = memref.load %arg2[%11] : memref<16xi32, #tpu.memory_space<smem>>
    %c0_i32_5 = arith.constant 0 : i32
    %c1_i32 = arith.constant 1 : i32
    %c0_i32_6 = arith.constant 0 : i32
    %13 = tpu.memref_slice %arg4[%12, %c0_i32_6] : memref<320x32xf32, #tpu.memory_space<any>> -> memref<1x32xf32, #tpu.memory_space<any>>
    %14 = tpu.memref_squeeze %13 : memref<1x32xf32, #tpu.memory_space<any>> -> memref<32xf32, #tpu.memory_space<any>>
    %c0_i32_7 = arith.constant 0 : i32
    %15 = tpu.memref_slice %arg8[%c0_i32_5, %c0_i32_7] : memref<16x32xf32, #tpu.memory_space<vmem>> -> memref<1x32xf32, #tpu.memory_space<vmem>>
    %16 = tpu.memref_squeeze %15 : memref<1x32xf32, #tpu.memory_space<vmem>> -> memref<32xf32, #tpu.memory_space<vmem>>
    %17 = tpu.memref_slice %arg9[%c1_i32] : memref<2x!tpu.dma_semaphore, #tpu.memory_space<semaphore_mem>> -> memref<1x!tpu.dma_semaphore, #tpu.memory_space<semaphore_mem>>
    %18 = tpu.memref_squeeze %17 : memref<1x!tpu.dma_semaphore, #tpu.memory_space<semaphore_mem>> -> memref<!tpu.dma_semaphore, #tpu.memory_space<semaphore_mem>>
    tpu.enqueue_dma source(%14 : memref<32xf32, #tpu.memory_space<any>>) target(%16 : memref<32xf32, #tpu.memory_space<vmem>>) target_semaphore(%18 : memref<!tpu.dma_semaphore, #tpu.memory_space<semaphore_mem>>)
    %c1_i32_8 = arith.constant 1 : i32
    %19 = arith.addi %0, %c1_i32_8 : i32
    %20 = arith.index_cast %19 : i32 to index
    %21 = memref.load %arg1[%20] : memref<16xi32, #tpu.memory_space<smem>>
    %c1_i32_9 = arith.constant 1 : i32
    %c0_i32_10 = arith.constant 0 : i32
    %c0_i32_11 = arith.constant 0 : i32
    %22 = tpu.memref_slice %arg3[%21, %c0_i32_11] : memref<256x32xf32, #tpu.memory_space<any>> -> memref<1x32xf32, #tpu.memory_space<any>>
    %23 = tpu.memref_squeeze %22 : memref<1x32xf32, #tpu.memory_space<any>> -> memref<32xf32, #tpu.memory_space<any>>
    %c0_i32_12 = arith.constant 0 : i32
    %24 = tpu.memref_slice %arg7[%c1_i32_9, %c0_i32_12] : memref<16x32xf32, #tpu.memory_space<vmem>> -> memref<1x32xf32, #tpu.memory_space<vmem>>
    %25 = tpu.memref_squeeze %24 : memref<1x32xf32, #tpu.memory_space<vmem>> -> memref<32xf32, #tpu.memory_space<vmem>>
    %26 = tpu.memref_slice %arg9[%c0_i32_10] : memref<2x!tpu.dma_semaphore, #tpu.memory_space<semaphore_mem>> -> memref<1x!tpu.dma_semaphore, #tpu.memory_space<semaphore_mem>>
    %27 = tpu.memref_squeeze %26 : memref<1x!tpu.dma_semaphore, #tpu.memory_space<semaphore_mem>> -> memref<!tpu.dma_semaphore, #tpu.memory_space<semaphore_mem>>
    tpu.enqueue_dma source(%23 : memref<32xf32, #tpu.memory_space<any>>) target(%25 : memref<32xf32, #tpu.memory_space<vmem>>) target_semaphore(%27 : memref<!tpu.dma_semaphore, #tpu.memory_space<semaphore_mem>>)
    %c1_i32_13 = arith.constant 1 : i32
    %28 = arith.addi %0, %c1_i32_13 : i32
    %29 = arith.index_cast %28 : i32 to index
    %30 = memref.load %arg2[%29] : memref<16xi32, #tpu.memory_space<smem>>
    %c1_i32_14 = arith.constant 1 : i32
    %c1_i32_15 = arith.constant 1 : i32
    %c0_i32_16 = arith.constant 0 : i32
    %31 = tpu.memref_slice %arg4[%30, %c0_i32_16] : memref<320x32xf32, #tpu.memory_space<any>> -> memref<1x32xf32, #tpu.memory_space<any>>
    %32 = tpu.memref_squeeze %31 : memref<1x32xf32, #tpu.memory_space<any>> -> memref<32xf32, #tpu.memory_space<any>>
    %c0_i32_17 = arith.constant 0 : i32
    %33 = tpu.memref_slice %arg8[%c1_i32_14, %c0_i32_17] : memref<16x32xf32, #tpu.memory_space<vmem>> -> memref<1x32xf32, #tpu.memory_space<vmem>>
    %34 = tpu.memref_squeeze %33 : memref<1x32xf32, #tpu.memory_space<vmem>> -> memref<32xf32, #tpu.memory_space<vmem>>
    %35 = tpu.memref_slice %arg9[%c1_i32_15] : memref<2x!tpu.dma_semaphore, #tpu.memory_space<semaphore_mem>> -> memref<1x!tpu.dma_semaphore, #tpu.memory_space<semaphore_mem>>
    %36 = tpu.memref_squeeze %35 : memref<1x!tpu.dma_semaphore, #tpu.memory_space<semaphore_mem>> -> memref<!tpu.dma_semaphore, #tpu.memory_space<semaphore_mem>>
    tpu.enqueue_dma source(%32 : memref<32xf32, #tpu.memory_space<any>>) target(%34 : memref<32xf32, #tpu.memory_space<vmem>>) target_semaphore(%36 : memref<!tpu.dma_semaphore, #tpu.memory_space<semaphore_mem>>)
    %c2_i32 = arith.constant 2 : i32
    %37 = arith.addi %0, %c2_i32 : i32
    %38 = arith.index_cast %37 : i32 to index
    %39 = memref.load %arg1[%38] : memref<16xi32, #tpu.memory_space<smem>>
    %c2_i32_18 = arith.constant 2 : i32
    %c0_i32_19 = arith.constant 0 : i32
    %c0_i32_20 = arith.constant 0 : i32
    %40 = tpu.memref_slice %arg3[%39, %c0_i32_20] : memref<256x32xf32, #tpu.memory_space<any>> -> memref<1x32xf32, #tpu.memory_space<any>>
    %41 = tpu.memref_squeeze %40 : memref<1x32xf32, #tpu.memory_space<any>> -> memref<32xf32, #tpu.memory_space<any>>
    %c0_i32_21 = arith.constant 0 : i32
    %42 = tpu.memref_slice %arg7[%c2_i32_18, %c0_i32_21] : memref<16x32xf32, #tpu.memory_space<vmem>> -> memref<1x32xf32, #tpu.memory_space<vmem>>
    %43 = tpu.memref_squeeze %42 : memref<1x32xf32, #tpu.memory_space<vmem>> -> memref<32xf32, #tpu.memory_space<vmem>>
    %44 = tpu.memref_slice %arg9[%c0_i32_19] : memref<2x!tpu.dma_semaphore, #tpu.memory_space<semaphore_mem>> -> memref<1x!tpu.dma_semaphore, #tpu.memory_space<semaphore_mem>>
    %45 = tpu.memref_squeeze %44 : memref<1x!tpu.dma_semaphore, #tpu.memory_space<semaphore_mem>> -> memref<!tpu.dma_semaphore, #tpu.memory_space<semaphore_mem>>
    tpu.enqueue_dma source(%41 : memref<32xf32, #tpu.memory_space<any>>) target(%43 : memref<32xf32, #tpu.memory_space<vmem>>) target_semaphore(%45 : memref<!tpu.dma_semaphore, #tpu.memory_space<semaphore_mem>>)
    %c2_i32_22 = arith.constant 2 : i32
    %46 = arith.addi %0, %c2_i32_22 : i32
    %47 = arith.index_cast %46 : i32 to index
    %48 = memref.load %arg2[%47] : memref<16xi32, #tpu.memory_space<smem>>
    %c2_i32_23 = arith.constant 2 : i32
    %c1_i32_24 = arith.constant 1 : i32
    %c0_i32_25 = arith.constant 0 : i32
    %49 = tpu.memref_slice %arg4[%48, %c0_i32_25] : memref<320x32xf32, #tpu.memory_space<any>> -> memref<1x32xf32, #tpu.memory_space<any>>
    %50 = tpu.memref_squeeze %49 : memref<1x32xf32, #tpu.memory_space<any>> -> memref<32xf32, #tpu.memory_space<any>>
    %c0_i32_26 = arith.constant 0 : i32
    %51 = tpu.memref_slice %arg8[%c2_i32_23, %c0_i32_26] : memref<16x32xf32, #tpu.memory_space<vmem>> -> memref<1x32xf32, #tpu.memory_space<vmem>>
    %52 = tpu.memref_squeeze %51 : memref<1x32xf32, #tpu.memory_space<vmem>> -> memref<32xf32, #tpu.memory_space<vmem>>
    %53 = tpu.memref_slice %arg9[%c1_i32_24] : memref<2x!tpu.dma_semaphore, #tpu.memory_space<semaphore_mem>> -> memref<1x!tpu.dma_semaphore, #tpu.memory_space<semaphore_mem>>
    %54 = tpu.memref_squeeze %53 : memref<1x!tpu.dma_semaphore, #tpu.memory_space<semaphore_mem>> -> memref<!tpu.dma_semaphore, #tpu.memory_space<semaphore_mem>>
    tpu.enqueue_dma source(%50 : memref<32xf32, #tpu.memory_space<any>>) target(%52 : memref<32xf32, #tpu.memory_space<vmem>>) target_semaphore(%54 : memref<!tpu.dma_semaphore, #tpu.memory_space<semaphore_mem>>)
    %c3_i32 = arith.constant 3 : i32
    %55 = arith.addi %0, %c3_i32 : i32
    %56 = arith.index_cast %55 : i32 to index
    %57 = memref.load %arg1[%56] : memref<16xi32, #tpu.memory_space<smem>>
    %c3_i32_27 = arith.constant 3 : i32
    %c0_i32_28 = arith.constant 0 : i32
    %c0_i32_29 = arith.constant 0 : i32
    %58 = tpu.memref_slice %arg3[%57, %c0_i32_29] : memref<256x32xf32, #tpu.memory_space<any>> -> memref<1x32xf32, #tpu.memory_space<any>>
    %59 = tpu.memref_squeeze %58 : memref<1x32xf32, #tpu.memory_space<any>> -> memref<32xf32, #tpu.memory_space<any>>
    %c0_i32_30 = arith.constant 0 : i32
    %60 = tpu.memref_slice %arg7[%c3_i32_27, %c0_i32_30] : memref<16x32xf32, #tpu.memory_space<vmem>> -> memref<1x32xf32, #tpu.memory_space<vmem>>
    %61 = tpu.memref_squeeze %60 : memref<1x32xf32, #tpu.memory_space<vmem>> -> memref<32xf32, #tpu.memory_space<vmem>>
    %62 = tpu.memref_slice %arg9[%c0_i32_28] : memref<2x!tpu.dma_semaphore, #tpu.memory_space<semaphore_mem>> -> memref<1x!tpu.dma_semaphore, #tpu.memory_space<semaphore_mem>>
    %63 = tpu.memref_squeeze %62 : memref<1x!tpu.dma_semaphore, #tpu.memory_space<semaphore_mem>> -> memref<!tpu.dma_semaphore, #tpu.memory_space<semaphore_mem>>
    tpu.enqueue_dma source(%59 : memref<32xf32, #tpu.memory_space<any>>) target(%61 : memref<32xf32, #tpu.memory_space<vmem>>) target_semaphore(%63 : memref<!tpu.dma_semaphore, #tpu.memory_space<semaphore_mem>>)
    %c3_i32_31 = arith.constant 3 : i32
    %64 = arith.addi %0, %c3_i32_31 : i32
    %65 = arith.index_cast %64 : i32 to index
    %66 = memref.load %arg2[%65] : memref<16xi32, #tpu.memory_space<smem>>
    %c3_i32_32 = arith.constant 3 : i32
    %c1_i32_33 = arith.constant 1 : i32
    %c0_i32_34 = arith.constant 0 : i32
    %67 = tpu.memref_slice %arg4[%66, %c0_i32_34] : memref<320x32xf32, #tpu.memory_space<any>> -> memref<1x32xf32, #tpu.memory_space<any>>
    %68 = tpu.memref_squeeze %67 : memref<1x32xf32, #tpu.memory_space<any>> -> memref<32xf32, #tpu.memory_space<any>>
    %c0_i32_35 = arith.constant 0 : i32
    %69 = tpu.memref_slice %arg8[%c3_i32_32, %c0_i32_35] : memref<16x32xf32, #tpu.memory_space<vmem>> -> memref<1x32xf32, #tpu.memory_space<vmem>>
    %70 = tpu.memref_squeeze %69 : memref<1x32xf32, #tpu.memory_space<vmem>> -> memref<32xf32, #tpu.memory_space<vmem>>
    %71 = tpu.memref_slice %arg9[%c1_i32_33] : memref<2x!tpu.dma_semaphore, #tpu.memory_space<semaphore_mem>> -> memref<1x!tpu.dma_semaphore, #tpu.memory_space<semaphore_mem>>
    %72 = tpu.memref_squeeze %71 : memref<1x!tpu.dma_semaphore, #tpu.memory_space<semaphore_mem>> -> memref<!tpu.dma_semaphore, #tpu.memory_space<semaphore_mem>>
    tpu.enqueue_dma source(%68 : memref<32xf32, #tpu.memory_space<any>>) target(%70 : memref<32xf32, #tpu.memory_space<vmem>>) target_semaphore(%72 : memref<!tpu.dma_semaphore, #tpu.memory_space<semaphore_mem>>)
    %c4_i32 = arith.constant 4 : i32
    %73 = arith.addi %0, %c4_i32 : i32
    %74 = arith.index_cast %73 : i32 to index
    %75 = memref.load %arg1[%74] : memref<16xi32, #tpu.memory_space<smem>>
    %c4_i32_36 = arith.constant 4 : i32
    %c0_i32_37 = arith.constant 0 : i32
    %c0_i32_38 = arith.constant 0 : i32
    %76 = tpu.memref_slice %arg3[%75, %c0_i32_38] : memref<256x32xf32, #tpu.memory_space<any>> -> memref<1x32xf32, #tpu.memory_space<any>>
    %77 = tpu.memref_squeeze %76 : memref<1x32xf32, #tpu.memory_space<any>> -> memref<32xf32, #tpu.memory_space<any>>
    %c0_i32_39 = arith.constant 0 : i32
    %78 = tpu.memref_slice %arg7[%c4_i32_36, %c0_i32_39] : memref<16x32xf32, #tpu.memory_space<vmem>> -> memref<1x32xf32, #tpu.memory_space<vmem>>
    %79 = tpu.memref_squeeze %78 : memref<1x32xf32, #tpu.memory_space<vmem>> -> memref<32xf32, #tpu.memory_space<vmem>>
    %80 = tpu.memref_slice %arg9[%c0_i32_37] : memref<2x!tpu.dma_semaphore, #tpu.memory_space<semaphore_mem>> -> memref<1x!tpu.dma_semaphore, #tpu.memory_space<semaphore_mem>>
    %81 = tpu.memref_squeeze %80 : memref<1x!tpu.dma_semaphore, #tpu.memory_space<semaphore_mem>> -> memref<!tpu.dma_semaphore, #tpu.memory_space<semaphore_mem>>
    tpu.enqueue_dma source(%77 : memref<32xf32, #tpu.memory_space<any>>) target(%79 : memref<32xf32, #tpu.memory_space<vmem>>) target_semaphore(%81 : memref<!tpu.dma_semaphore, #tpu.memory_space<semaphore_mem>>)
    %c4_i32_40 = arith.constant 4 : i32
    %82 = arith.addi %0, %c4_i32_40 : i32
    %83 = arith.index_cast %82 : i32 to index
    %84 = memref.load %arg2[%83] : memref<16xi32, #tpu.memory_space<smem>>
    %c4_i32_41 = arith.constant 4 : i32
    %c1_i32_42 = arith.constant 1 : i32
    %c0_i32_43 = arith.constant 0 : i32
    %85 = tpu.memref_slice %arg4[%84, %c0_i32_43] : memref<320x32xf32, #tpu.memory_space<any>> -> memref<1x32xf32, #tpu.memory_space<any>>
    %86 = tpu.memref_squeeze %85 : memref<1x32xf32, #tpu.memory_space<any>> -> memref<32xf32, #tpu.memory_space<any>>
    %c0_i32_44 = arith.constant 0 : i32
    %87 = tpu.memref_slice %arg8[%c4_i32_41, %c0_i32_44] : memref<16x32xf32, #tpu.memory_space<vmem>> -> memref<1x32xf32, #tpu.memory_space<vmem>>
    %88 = tpu.memref_squeeze %87 : memref<1x32xf32, #tpu.memory_space<vmem>> -> memref<32xf32, #tpu.memory_space<vmem>>
    %89 = tpu.memref_slice %arg9[%c1_i32_42] : memref<2x!tpu.dma_semaphore, #tpu.memory_space<semaphore_mem>> -> memref<1x!tpu.dma_semaphore, #tpu.memory_space<semaphore_mem>>
    %90 = tpu.memref_squeeze %89 : memref<1x!tpu.dma_semaphore, #tpu.memory_space<semaphore_mem>> -> memref<!tpu.dma_semaphore, #tpu.memory_space<semaphore_mem>>
    tpu.enqueue_dma source(%86 : memref<32xf32, #tpu.memory_space<any>>) target(%88 : memref<32xf32, #tpu.memory_space<vmem>>) target_semaphore(%90 : memref<!tpu.dma_semaphore, #tpu.memory_space<semaphore_mem>>)
    %c5_i32 = arith.constant 5 : i32
    %91 = arith.addi %0, %c5_i32 : i32
    %92 = arith.index_cast %91 : i32 to index
    %93 = memref.load %arg1[%92] : memref<16xi32, #tpu.memory_space<smem>>
    %c5_i32_45 = arith.constant 5 : i32
    %c0_i32_46 = arith.constant 0 : i32
    %c0_i32_47 = arith.constant 0 : i32
    %94 = tpu.memref_slice %arg3[%93, %c0_i32_47] : memref<256x32xf32, #tpu.memory_space<any>> -> memref<1x32xf32, #tpu.memory_space<any>>
    %95 = tpu.memref_squeeze %94 : memref<1x32xf32, #tpu.memory_space<any>> -> memref<32xf32, #tpu.memory_space<any>>
    %c0_i32_48 = arith.constant 0 : i32
    %96 = tpu.memref_slice %arg7[%c5_i32_45, %c0_i32_48] : memref<16x32xf32, #tpu.memory_space<vmem>> -> memref<1x32xf32, #tpu.memory_space<vmem>>
    %97 = tpu.memref_squeeze %96 : memref<1x32xf32, #tpu.memory_space<vmem>> -> memref<32xf32, #tpu.memory_space<vmem>>
    %98 = tpu.memref_slice %arg9[%c0_i32_46] : memref<2x!tpu.dma_semaphore, #tpu.memory_space<semaphore_mem>> -> memref<1x!tpu.dma_semaphore, #tpu.memory_space<semaphore_mem>>
    %99 = tpu.memref_squeeze %98 : memref<1x!tpu.dma_semaphore, #tpu.memory_space<semaphore_mem>> -> memref<!tpu.dma_semaphore, #tpu.memory_space<semaphore_mem>>
    tpu.enqueue_dma source(%95 : memref<32xf32, #tpu.memory_space<any>>) target(%97 : memref<32xf32, #tpu.memory_space<vmem>>) target_semaphore(%99 : memref<!tpu.dma_semaphore, #tpu.memory_space<semaphore_mem>>)
    %c5_i32_49 = arith.constant 5 : i32
    %100 = arith.addi %0, %c5_i32_49 : i32
    %101 = arith.index_cast %100 : i32 to index
    %102 = memref.load %arg2[%101] : memref<16xi32, #tpu.memory_space<smem>>
    %c5_i32_50 = arith.constant 5 : i32
    %c1_i32_51 = arith.constant 1 : i32
    %c0_i32_52 = arith.constant 0 : i32
    %103 = tpu.memref_slice %arg4[%102, %c0_i32_52] : memref<320x32xf32, #tpu.memory_space<any>> -> memref<1x32xf32, #tpu.memory_space<any>>
    %104 = tpu.memref_squeeze %103 : memref<1x32xf32, #tpu.memory_space<any>> -> memref<32xf32, #tpu.memory_space<any>>
    %c0_i32_53 = arith.constant 0 : i32
    %105 = tpu.memref_slice %arg8[%c5_i32_50, %c0_i32_53] : memref<16x32xf32, #tpu.memory_space<vmem>> -> memref<1x32xf32, #tpu.memory_space<vmem>>
    %106 = tpu.memref_squeeze %105 : memref<1x32xf32, #tpu.memory_space<vmem>> -> memref<32xf32, #tpu.memory_space<vmem>>
    %107 = tpu.memref_slice %arg9[%c1_i32_51] : memref<2x!tpu.dma_semaphore, #tpu.memory_space<semaphore_mem>> -> memref<1x!tpu.dma_semaphore, #tpu.memory_space<semaphore_mem>>
    %108 = tpu.memref_squeeze %107 : memref<1x!tpu.dma_semaphore, #tpu.memory_space<semaphore_mem>> -> memref<!tpu.dma_semaphore, #tpu.memory_space<semaphore_mem>>
    tpu.enqueue_dma source(%104 : memref<32xf32, #tpu.memory_space<any>>) target(%106 : memref<32xf32, #tpu.memory_space<vmem>>) target_semaphore(%108 : memref<!tpu.dma_semaphore, #tpu.memory_space<semaphore_mem>>)
    %c6_i32 = arith.constant 6 : i32
    %109 = arith.addi %0, %c6_i32 : i32
    %110 = arith.index_cast %109 : i32 to index
    %111 = memref.load %arg1[%110] : memref<16xi32, #tpu.memory_space<smem>>
    %c6_i32_54 = arith.constant 6 : i32
    %c0_i32_55 = arith.constant 0 : i32
    %c0_i32_56 = arith.constant 0 : i32
    %112 = tpu.memref_slice %arg3[%111, %c0_i32_56] : memref<256x32xf32, #tpu.memory_space<any>> -> memref<1x32xf32, #tpu.memory_space<any>>
    %113 = tpu.memref_squeeze %112 : memref<1x32xf32, #tpu.memory_space<any>> -> memref<32xf32, #tpu.memory_space<any>>
    %c0_i32_57 = arith.constant 0 : i32
    %114 = tpu.memref_slice %arg7[%c6_i32_54, %c0_i32_57] : memref<16x32xf32, #tpu.memory_space<vmem>> -> memref<1x32xf32, #tpu.memory_space<vmem>>
    %115 = tpu.memref_squeeze %114 : memref<1x32xf32, #tpu.memory_space<vmem>> -> memref<32xf32, #tpu.memory_space<vmem>>
    %116 = tpu.memref_slice %arg9[%c0_i32_55] : memref<2x!tpu.dma_semaphore, #tpu.memory_space<semaphore_mem>> -> memref<1x!tpu.dma_semaphore, #tpu.memory_space<semaphore_mem>>
    %117 = tpu.memref_squeeze %116 : memref<1x!tpu.dma_semaphore, #tpu.memory_space<semaphore_mem>> -> memref<!tpu.dma_semaphore, #tpu.memory_space<semaphore_mem>>
    tpu.enqueue_dma source(%113 : memref<32xf32, #tpu.memory_space<any>>) target(%115 : memref<32xf32, #tpu.memory_space<vmem>>) target_semaphore(%117 : memref<!tpu.dma_semaphore, #tpu.memory_space<semaphore_mem>>)
    %c6_i32_58 = arith.constant 6 : i32
    %118 = arith.addi %0, %c6_i32_58 : i32
    %119 = arith.index_cast %118 : i32 to index
    %120 = memref.load %arg2[%119] : memref<16xi32, #tpu.memory_space<smem>>
    %c6_i32_59 = arith.constant 6 : i32
    %c1_i32_60 = arith.constant 1 : i32
    %c0_i32_61 = arith.constant 0 : i32
    %121 = tpu.memref_slice %arg4[%120, %c0_i32_61] : memref<320x32xf32, #tpu.memory_space<any>> -> memref<1x32xf32, #tpu.memory_space<any>>
    %122 = tpu.memref_squeeze %121 : memref<1x32xf32, #tpu.memory_space<any>> -> memref<32xf32, #tpu.memory_space<any>>
    %c0_i32_62 = arith.constant 0 : i32
    %123 = tpu.memref_slice %arg8[%c6_i32_59, %c0_i32_62] : memref<16x32xf32, #tpu.memory_space<vmem>> -> memref<1x32xf32, #tpu.memory_space<vmem>>
    %124 = tpu.memref_squeeze %123 : memref<1x32xf32, #tpu.memory_space<vmem>> -> memref<32xf32, #tpu.memory_space<vmem>>
    %125 = tpu.memref_slice %arg9[%c1_i32_60] : memref<2x!tpu.dma_semaphore, #tpu.memory_space<semaphore_mem>> -> memref<1x!tpu.dma_semaphore, #tpu.memory_space<semaphore_mem>>
    %126 = tpu.memref_squeeze %125 : memref<1x!tpu.dma_semaphore, #tpu.memory_space<semaphore_mem>> -> memref<!tpu.dma_semaphore, #tpu.memory_space<semaphore_mem>>
    tpu.enqueue_dma source(%122 : memref<32xf32, #tpu.memory_space<any>>) target(%124 : memref<32xf32, #tpu.memory_space<vmem>>) target_semaphore(%126 : memref<!tpu.dma_semaphore, #tpu.memory_space<semaphore_mem>>)
    %c7_i32 = arith.constant 7 : i32
    %127 = arith.addi %0, %c7_i32 : i32
    %128 = arith.index_cast %127 : i32 to index
    %129 = memref.load %arg1[%128] : memref<16xi32, #tpu.memory_space<smem>>
    %c7_i32_63 = arith.constant 7 : i32
    %c0_i32_64 = arith.constant 0 : i32
    %c0_i32_65 = arith.constant 0 : i32
    %130 = tpu.memref_slice %arg3[%129, %c0_i32_65] : memref<256x32xf32, #tpu.memory_space<any>> -> memref<1x32xf32, #tpu.memory_space<any>>
    %131 = tpu.memref_squeeze %130 : memref<1x32xf32, #tpu.memory_space<any>> -> memref<32xf32, #tpu.memory_space<any>>
    %c0_i32_66 = arith.constant 0 : i32
    %132 = tpu.memref_slice %arg7[%c7_i32_63, %c0_i32_66] : memref<16x32xf32, #tpu.memory_space<vmem>> -> memref<1x32xf32, #tpu.memory_space<vmem>>
    %133 = tpu.memref_squeeze %132 : memref<1x32xf32, #tpu.memory_space<vmem>> -> memref<32xf32, #tpu.memory_space<vmem>>
    %134 = tpu.memref_slice %arg9[%c0_i32_64] : memref<2x!tpu.dma_semaphore, #tpu.memory_space<semaphore_mem>> -> memref<1x!tpu.dma_semaphore, #tpu.memory_space<semaphore_mem>>
    %135 = tpu.memref_squeeze %134 : memref<1x!tpu.dma_semaphore, #tpu.memory_space<semaphore_mem>> -> memref<!tpu.dma_semaphore, #tpu.memory_space<semaphore_mem>>
    tpu.enqueue_dma source(%131 : memref<32xf32, #tpu.memory_space<any>>) target(%133 : memref<32xf32, #tpu.memory_space<vmem>>) target_semaphore(%135 : memref<!tpu.dma_semaphore, #tpu.memory_space<semaphore_mem>>)
    %c7_i32_67 = arith.constant 7 : i32
    %136 = arith.addi %0, %c7_i32_67 : i32
    %137 = arith.index_cast %136 : i32 to index
    %138 = memref.load %arg2[%137] : memref<16xi32, #tpu.memory_space<smem>>
    %c7_i32_68 = arith.constant 7 : i32
    %c1_i32_69 = arith.constant 1 : i32
    %c0_i32_70 = arith.constant 0 : i32
    %139 = tpu.memref_slice %arg4[%138, %c0_i32_70] : memref<320x32xf32, #tpu.memory_space<any>> -> memref<1x32xf32, #tpu.memory_space<any>>
    %140 = tpu.memref_squeeze %139 : memref<1x32xf32, #tpu.memory_space<any>> -> memref<32xf32, #tpu.memory_space<any>>
    %c0_i32_71 = arith.constant 0 : i32
    %141 = tpu.memref_slice %arg8[%c7_i32_68, %c0_i32_71] : memref<16x32xf32, #tpu.memory_space<vmem>> -> memref<1x32xf32, #tpu.memory_space<vmem>>
    %142 = tpu.memref_squeeze %141 : memref<1x32xf32, #tpu.memory_space<vmem>> -> memref<32xf32, #tpu.memory_space<vmem>>
    %143 = tpu.memref_slice %arg9[%c1_i32_69] : memref<2x!tpu.dma_semaphore, #tpu.memory_space<semaphore_mem>> -> memref<1x!tpu.dma_semaphore, #tpu.memory_space<semaphore_mem>>
    %144 = tpu.memref_squeeze %143 : memref<1x!tpu.dma_semaphore, #tpu.memory_space<semaphore_mem>> -> memref<!tpu.dma_semaphore, #tpu.memory_space<semaphore_mem>>
    tpu.enqueue_dma source(%140 : memref<32xf32, #tpu.memory_space<any>>) target(%142 : memref<32xf32, #tpu.memory_space<vmem>>) target_semaphore(%144 : memref<!tpu.dma_semaphore, #tpu.memory_space<semaphore_mem>>)
    %c8_i32 = arith.constant 8 : i32
    %145 = arith.addi %0, %c8_i32 : i32
    %146 = arith.index_cast %145 : i32 to index
    %147 = memref.load %arg1[%146] : memref<16xi32, #tpu.memory_space<smem>>
    %c8_i32_72 = arith.constant 8 : i32
    %c0_i32_73 = arith.constant 0 : i32
    %c0_i32_74 = arith.constant 0 : i32
    %148 = tpu.memref_slice %arg3[%147, %c0_i32_74] : memref<256x32xf32, #tpu.memory_space<any>> -> memref<1x32xf32, #tpu.memory_space<any>>
    %149 = tpu.memref_squeeze %148 : memref<1x32xf32, #tpu.memory_space<any>> -> memref<32xf32, #tpu.memory_space<any>>
    %c0_i32_75 = arith.constant 0 : i32
    %150 = tpu.memref_slice %arg7[%c8_i32_72, %c0_i32_75] : memref<16x32xf32, #tpu.memory_space<vmem>> -> memref<1x32xf32, #tpu.memory_space<vmem>>
    %151 = tpu.memref_squeeze %150 : memref<1x32xf32, #tpu.memory_space<vmem>> -> memref<32xf32, #tpu.memory_space<vmem>>
    %152 = tpu.memref_slice %arg9[%c0_i32_73] : memref<2x!tpu.dma_semaphore, #tpu.memory_space<semaphore_mem>> -> memref<1x!tpu.dma_semaphore, #tpu.memory_space<semaphore_mem>>
    %153 = tpu.memref_squeeze %152 : memref<1x!tpu.dma_semaphore, #tpu.memory_space<semaphore_mem>> -> memref<!tpu.dma_semaphore, #tpu.memory_space<semaphore_mem>>
    tpu.enqueue_dma source(%149 : memref<32xf32, #tpu.memory_space<any>>) target(%151 : memref<32xf32, #tpu.memory_space<vmem>>) target_semaphore(%153 : memref<!tpu.dma_semaphore, #tpu.memory_space<semaphore_mem>>)
    %c8_i32_76 = arith.constant 8 : i32
    %154 = arith.addi %0, %c8_i32_76 : i32
    %155 = arith.index_cast %154 : i32 to index
    %156 = memref.load %arg2[%155] : memref<16xi32, #tpu.memory_space<smem>>
    %c8_i32_77 = arith.constant 8 : i32
    %c1_i32_78 = arith.constant 1 : i32
    %c0_i32_79 = arith.constant 0 : i32
    %157 = tpu.memref_slice %arg4[%156, %c0_i32_79] : memref<320x32xf32, #tpu.memory_space<any>> -> memref<1x32xf32, #tpu.memory_space<any>>
    %158 = tpu.memref_squeeze %157 : memref<1x32xf32, #tpu.memory_space<any>> -> memref<32xf32, #tpu.memory_space<any>>
    %c0_i32_80 = arith.constant 0 : i32
    %159 = tpu.memref_slice %arg8[%c8_i32_77, %c0_i32_80] : memref<16x32xf32, #tpu.memory_space<vmem>> -> memref<1x32xf32, #tpu.memory_space<vmem>>
    %160 = tpu.memref_squeeze %159 : memref<1x32xf32, #tpu.memory_space<vmem>> -> memref<32xf32, #tpu.memory_space<vmem>>
    %161 = tpu.memref_slice %arg9[%c1_i32_78] : memref<2x!tpu.dma_semaphore, #tpu.memory_space<semaphore_mem>> -> memref<1x!tpu.dma_semaphore, #tpu.memory_space<semaphore_mem>>
    %162 = tpu.memref_squeeze %161 : memref<1x!tpu.dma_semaphore, #tpu.memory_space<semaphore_mem>> -> memref<!tpu.dma_semaphore, #tpu.memory_space<semaphore_mem>>
    tpu.enqueue_dma source(%158 : memref<32xf32, #tpu.memory_space<any>>) target(%160 : memref<32xf32, #tpu.memory_space<vmem>>) target_semaphore(%162 : memref<!tpu.dma_semaphore, #tpu.memory_space<semaphore_mem>>)
    %c9_i32 = arith.constant 9 : i32
    %163 = arith.addi %0, %c9_i32 : i32
    %164 = arith.index_cast %163 : i32 to index
    %165 = memref.load %arg1[%164] : memref<16xi32, #tpu.memory_space<smem>>
    %c9_i32_81 = arith.constant 9 : i32
    %c0_i32_82 = arith.constant 0 : i32
    %c0_i32_83 = arith.constant 0 : i32
    %166 = tpu.memref_slice %arg3[%165, %c0_i32_83] : memref<256x32xf32, #tpu.memory_space<any>> -> memref<1x32xf32, #tpu.memory_space<any>>
    %167 = tpu.memref_squeeze %166 : memref<1x32xf32, #tpu.memory_space<any>> -> memref<32xf32, #tpu.memory_space<any>>
    %c0_i32_84 = arith.constant 0 : i32
    %168 = tpu.memref_slice %arg7[%c9_i32_81, %c0_i32_84] : memref<16x32xf32, #tpu.memory_space<vmem>> -> memref<1x32xf32, #tpu.memory_space<vmem>>
    %169 = tpu.memref_squeeze %168 : memref<1x32xf32, #tpu.memory_space<vmem>> -> memref<32xf32, #tpu.memory_space<vmem>>
    %170 = tpu.memref_slice %arg9[%c0_i32_82] : memref<2x!tpu.dma_semaphore, #tpu.memory_space<semaphore_mem>> -> memref<1x!tpu.dma_semaphore, #tpu.memory_space<semaphore_mem>>
    %171 = tpu.memref_squeeze %170 : memref<1x!tpu.dma_semaphore, #tpu.memory_space<semaphore_mem>> -> memref<!tpu.dma_semaphore, #tpu.memory_space<semaphore_mem>>
    tpu.enqueue_dma source(%167 : memref<32xf32, #tpu.memory_space<any>>) target(%169 : memref<32xf32, #tpu.memory_space<vmem>>) target_semaphore(%171 : memref<!tpu.dma_semaphore, #tpu.memory_space<semaphore_mem>>)
    %c9_i32_85 = arith.constant 9 : i32
    %172 = arith.addi %0, %c9_i32_85 : i32
    %173 = arith.index_cast %172 : i32 to index
    %174 = memref.load %arg2[%173] : memref<16xi32, #tpu.memory_space<smem>>
    %c9_i32_86 = arith.constant 9 : i32
    %c1_i32_87 = arith.constant 1 : i32
    %c0_i32_88 = arith.constant 0 : i32
    %175 = tpu.memref_slice %arg4[%174, %c0_i32_88] : memref<320x32xf32, #tpu.memory_space<any>> -> memref<1x32xf32, #tpu.memory_space<any>>
    %176 = tpu.memref_squeeze %175 : memref<1x32xf32, #tpu.memory_space<any>> -> memref<32xf32, #tpu.memory_space<any>>
    %c0_i32_89 = arith.constant 0 : i32
    %177 = tpu.memref_slice %arg8[%c9_i32_86, %c0_i32_89] : memref<16x32xf32, #tpu.memory_space<vmem>> -> memref<1x32xf32, #tpu.memory_space<vmem>>
    %178 = tpu.memref_squeeze %177 : memref<1x32xf32, #tpu.memory_space<vmem>> -> memref<32xf32, #tpu.memory_space<vmem>>
    %179 = tpu.memref_slice %arg9[%c1_i32_87] : memref<2x!tpu.dma_semaphore, #tpu.memory_space<semaphore_mem>> -> memref<1x!tpu.dma_semaphore, #tpu.memory_space<semaphore_mem>>
    %180 = tpu.memref_squeeze %179 : memref<1x!tpu.dma_semaphore, #tpu.memory_space<semaphore_mem>> -> memref<!tpu.dma_semaphore, #tpu.memory_space<semaphore_mem>>
    tpu.enqueue_dma source(%176 : memref<32xf32, #tpu.memory_space<any>>) target(%178 : memref<32xf32, #tpu.memory_space<vmem>>) target_semaphore(%180 : memref<!tpu.dma_semaphore, #tpu.memory_space<semaphore_mem>>)
    %c10_i32 = arith.constant 10 : i32
    %181 = arith.addi %0, %c10_i32 : i32
    %182 = arith.index_cast %181 : i32 to index
    %183 = memref.load %arg1[%182] : memref<16xi32, #tpu.memory_space<smem>>
    %c10_i32_90 = arith.constant 10 : i32
    %c0_i32_91 = arith.constant 0 : i32
    %c0_i32_92 = arith.constant 0 : i32
    %184 = tpu.memref_slice %arg3[%183, %c0_i32_92] : memref<256x32xf32, #tpu.memory_space<any>> -> memref<1x32xf32, #tpu.memory_space<any>>
    %185 = tpu.memref_squeeze %184 : memref<1x32xf32, #tpu.memory_space<any>> -> memref<32xf32, #tpu.memory_space<any>>
    %c0_i32_93 = arith.constant 0 : i32
    %186 = tpu.memref_slice %arg7[%c10_i32_90, %c0_i32_93] : memref<16x32xf32, #tpu.memory_space<vmem>> -> memref<1x32xf32, #tpu.memory_space<vmem>>
    %187 = tpu.memref_squeeze %186 : memref<1x32xf32, #tpu.memory_space<vmem>> -> memref<32xf32, #tpu.memory_space<vmem>>
    %188 = tpu.memref_slice %arg9[%c0_i32_91] : memref<2x!tpu.dma_semaphore, #tpu.memory_space<semaphore_mem>> -> memref<1x!tpu.dma_semaphore, #tpu.memory_space<semaphore_mem>>
    %189 = tpu.memref_squeeze %188 : memref<1x!tpu.dma_semaphore, #tpu.memory_space<semaphore_mem>> -> memref<!tpu.dma_semaphore, #tpu.memory_space<semaphore_mem>>
    tpu.enqueue_dma source(%185 : memref<32xf32, #tpu.memory_space<any>>) target(%187 : memref<32xf32, #tpu.memory_space<vmem>>) target_semaphore(%189 : memref<!tpu.dma_semaphore, #tpu.memory_space<semaphore_mem>>)
    %c10_i32_94 = arith.constant 10 : i32
    %190 = arith.addi %0, %c10_i32_94 : i32
    %191 = arith.index_cast %190 : i32 to index
    %192 = memref.load %arg2[%191] : memref<16xi32, #tpu.memory_space<smem>>
    %c10_i32_95 = arith.constant 10 : i32
    %c1_i32_96 = arith.constant 1 : i32
    %c0_i32_97 = arith.constant 0 : i32
    %193 = tpu.memref_slice %arg4[%192, %c0_i32_97] : memref<320x32xf32, #tpu.memory_space<any>> -> memref<1x32xf32, #tpu.memory_space<any>>
    %194 = tpu.memref_squeeze %193 : memref<1x32xf32, #tpu.memory_space<any>> -> memref<32xf32, #tpu.memory_space<any>>
    %c0_i32_98 = arith.constant 0 : i32
    %195 = tpu.memref_slice %arg8[%c10_i32_95, %c0_i32_98] : memref<16x32xf32, #tpu.memory_space<vmem>> -> memref<1x32xf32, #tpu.memory_space<vmem>>
    %196 = tpu.memref_squeeze %195 : memref<1x32xf32, #tpu.memory_space<vmem>> -> memref<32xf32, #tpu.memory_space<vmem>>
    %197 = tpu.memref_slice %arg9[%c1_i32_96] : memref<2x!tpu.dma_semaphore, #tpu.memory_space<semaphore_mem>> -> memref<1x!tpu.dma_semaphore, #tpu.memory_space<semaphore_mem>>
    %198 = tpu.memref_squeeze %197 : memref<1x!tpu.dma_semaphore, #tpu.memory_space<semaphore_mem>> -> memref<!tpu.dma_semaphore, #tpu.memory_space<semaphore_mem>>
    tpu.enqueue_dma source(%194 : memref<32xf32, #tpu.memory_space<any>>) target(%196 : memref<32xf32, #tpu.memory_space<vmem>>) target_semaphore(%198 : memref<!tpu.dma_semaphore, #tpu.memory_space<semaphore_mem>>)
    %c11_i32 = arith.constant 11 : i32
    %199 = arith.addi %0, %c11_i32 : i32
    %200 = arith.index_cast %199 : i32 to index
    %201 = memref.load %arg1[%200] : memref<16xi32, #tpu.memory_space<smem>>
    %c11_i32_99 = arith.constant 11 : i32
    %c0_i32_100 = arith.constant 0 : i32
    %c0_i32_101 = arith.constant 0 : i32
    %202 = tpu.memref_slice %arg3[%201, %c0_i32_101] : memref<256x32xf32, #tpu.memory_space<any>> -> memref<1x32xf32, #tpu.memory_space<any>>
    %203 = tpu.memref_squeeze %202 : memref<1x32xf32, #tpu.memory_space<any>> -> memref<32xf32, #tpu.memory_space<any>>
    %c0_i32_102 = arith.constant 0 : i32
    %204 = tpu.memref_slice %arg7[%c11_i32_99, %c0_i32_102] : memref<16x32xf32, #tpu.memory_space<vmem>> -> memref<1x32xf32, #tpu.memory_space<vmem>>
    %205 = tpu.memref_squeeze %204 : memref<1x32xf32, #tpu.memory_space<vmem>> -> memref<32xf32, #tpu.memory_space<vmem>>
    %206 = tpu.memref_slice %arg9[%c0_i32_100] : memref<2x!tpu.dma_semaphore, #tpu.memory_space<semaphore_mem>> -> memref<1x!tpu.dma_semaphore, #tpu.memory_space<semaphore_mem>>
    %207 = tpu.memref_squeeze %206 : memref<1x!tpu.dma_semaphore, #tpu.memory_space<semaphore_mem>> -> memref<!tpu.dma_semaphore, #tpu.memory_space<semaphore_mem>>
    tpu.enqueue_dma source(%203 : memref<32xf32, #tpu.memory_space<any>>) target(%205 : memref<32xf32, #tpu.memory_space<vmem>>) target_semaphore(%207 : memref<!tpu.dma_semaphore, #tpu.memory_space<semaphore_mem>>)
    %c11_i32_103 = arith.constant 11 : i32
    %208 = arith.addi %0, %c11_i32_103 : i32
    %209 = arith.index_cast %208 : i32 to index
    %210 = memref.load %arg2[%209] : memref<16xi32, #tpu.memory_space<smem>>
    %c11_i32_104 = arith.constant 11 : i32
    %c1_i32_105 = arith.constant 1 : i32
    %c0_i32_106 = arith.constant 0 : i32
    %211 = tpu.memref_slice %arg4[%210, %c0_i32_106] : memref<320x32xf32, #tpu.memory_space<any>> -> memref<1x32xf32, #tpu.memory_space<any>>
    %212 = tpu.memref_squeeze %211 : memref<1x32xf32, #tpu.memory_space<any>> -> memref<32xf32, #tpu.memory_space<any>>
    %c0_i32_107 = arith.constant 0 : i32
    %213 = tpu.memref_slice %arg8[%c11_i32_104, %c0_i32_107] : memref<16x32xf32, #tpu.memory_space<vmem>> -> memref<1x32xf32, #tpu.memory_space<vmem>>
    %214 = tpu.memref_squeeze %213 : memref<1x32xf32, #tpu.memory_space<vmem>> -> memref<32xf32, #tpu.memory_space<vmem>>
    %215 = tpu.memref_slice %arg9[%c1_i32_105] : memref<2x!tpu.dma_semaphore, #tpu.memory_space<semaphore_mem>> -> memref<1x!tpu.dma_semaphore, #tpu.memory_space<semaphore_mem>>
    %216 = tpu.memref_squeeze %215 : memref<1x!tpu.dma_semaphore, #tpu.memory_space<semaphore_mem>> -> memref<!tpu.dma_semaphore, #tpu.memory_space<semaphore_mem>>
    tpu.enqueue_dma source(%212 : memref<32xf32, #tpu.memory_space<any>>) target(%214 : memref<32xf32, #tpu.memory_space<vmem>>) target_semaphore(%216 : memref<!tpu.dma_semaphore, #tpu.memory_space<semaphore_mem>>)
    %c12_i32 = arith.constant 12 : i32
    %217 = arith.addi %0, %c12_i32 : i32
    %218 = arith.index_cast %217 : i32 to index
    %219 = memref.load %arg1[%218] : memref<16xi32, #tpu.memory_space<smem>>
    %c12_i32_108 = arith.constant 12 : i32
    %c0_i32_109 = arith.constant 0 : i32
    %c0_i32_110 = arith.constant 0 : i32
    %220 = tpu.memref_slice %arg3[%219, %c0_i32_110] : memref<256x32xf32, #tpu.memory_space<any>> -> memref<1x32xf32, #tpu.memory_space<any>>
    %221 = tpu.memref_squeeze %220 : memref<1x32xf32, #tpu.memory_space<any>> -> memref<32xf32, #tpu.memory_space<any>>
    %c0_i32_111 = arith.constant 0 : i32
    %222 = tpu.memref_slice %arg7[%c12_i32_108, %c0_i32_111] : memref<16x32xf32, #tpu.memory_space<vmem>> -> memref<1x32xf32, #tpu.memory_space<vmem>>
    %223 = tpu.memref_squeeze %222 : memref<1x32xf32, #tpu.memory_space<vmem>> -> memref<32xf32, #tpu.memory_space<vmem>>
    %224 = tpu.memref_slice %arg9[%c0_i32_109] : memref<2x!tpu.dma_semaphore, #tpu.memory_space<semaphore_mem>> -> memref<1x!tpu.dma_semaphore, #tpu.memory_space<semaphore_mem>>
    %225 = tpu.memref_squeeze %224 : memref<1x!tpu.dma_semaphore, #tpu.memory_space<semaphore_mem>> -> memref<!tpu.dma_semaphore, #tpu.memory_space<semaphore_mem>>
    tpu.enqueue_dma source(%221 : memref<32xf32, #tpu.memory_space<any>>) target(%223 : memref<32xf32, #tpu.memory_space<vmem>>) target_semaphore(%225 : memref<!tpu.dma_semaphore, #tpu.memory_space<semaphore_mem>>)
    %c12_i32_112 = arith.constant 12 : i32
    %226 = arith.addi %0, %c12_i32_112 : i32
    %227 = arith.index_cast %226 : i32 to index
    %228 = memref.load %arg2[%227] : memref<16xi32, #tpu.memory_space<smem>>
    %c12_i32_113 = arith.constant 12 : i32
    %c1_i32_114 = arith.constant 1 : i32
    %c0_i32_115 = arith.constant 0 : i32
    %229 = tpu.memref_slice %arg4[%228, %c0_i32_115] : memref<320x32xf32, #tpu.memory_space<any>> -> memref<1x32xf32, #tpu.memory_space<any>>
    %230 = tpu.memref_squeeze %229 : memref<1x32xf32, #tpu.memory_space<any>> -> memref<32xf32, #tpu.memory_space<any>>
    %c0_i32_116 = arith.constant 0 : i32
    %231 = tpu.memref_slice %arg8[%c12_i32_113, %c0_i32_116] : memref<16x32xf32, #tpu.memory_space<vmem>> -> memref<1x32xf32, #tpu.memory_space<vmem>>
    %232 = tpu.memref_squeeze %231 : memref<1x32xf32, #tpu.memory_space<vmem>> -> memref<32xf32, #tpu.memory_space<vmem>>
    %233 = tpu.memref_slice %arg9[%c1_i32_114] : memref<2x!tpu.dma_semaphore, #tpu.memory_space<semaphore_mem>> -> memref<1x!tpu.dma_semaphore, #tpu.memory_space<semaphore_mem>>
    %234 = tpu.memref_squeeze %233 : memref<1x!tpu.dma_semaphore, #tpu.memory_space<semaphore_mem>> -> memref<!tpu.dma_semaphore, #tpu.memory_space<semaphore_mem>>
    tpu.enqueue_dma source(%230 : memref<32xf32, #tpu.memory_space<any>>) target(%232 : memref<32xf32, #tpu.memory_space<vmem>>) target_semaphore(%234 : memref<!tpu.dma_semaphore, #tpu.memory_space<semaphore_mem>>)
    %c13_i32 = arith.constant 13 : i32
    %235 = arith.addi %0, %c13_i32 : i32
    %236 = arith.index_cast %235 : i32 to index
    %237 = memref.load %arg1[%236] : memref<16xi32, #tpu.memory_space<smem>>
    %c13_i32_117 = arith.constant 13 : i32
    %c0_i32_118 = arith.constant 0 : i32
    %c0_i32_119 = arith.constant 0 : i32
    %238 = tpu.memref_slice %arg3[%237, %c0_i32_119] : memref<256x32xf32, #tpu.memory_space<any>> -> memref<1x32xf32, #tpu.memory_space<any>>
    %239 = tpu.memref_squeeze %238 : memref<1x32xf32, #tpu.memory_space<any>> -> memref<32xf32, #tpu.memory_space<any>>
    %c0_i32_120 = arith.constant 0 : i32
    %240 = tpu.memref_slice %arg7[%c13_i32_117, %c0_i32_120] : memref<16x32xf32, #tpu.memory_space<vmem>> -> memref<1x32xf32, #tpu.memory_space<vmem>>
    %241 = tpu.memref_squeeze %240 : memref<1x32xf32, #tpu.memory_space<vmem>> -> memref<32xf32, #tpu.memory_space<vmem>>
    %242 = tpu.memref_slice %arg9[%c0_i32_118] : memref<2x!tpu.dma_semaphore, #tpu.memory_space<semaphore_mem>> -> memref<1x!tpu.dma_semaphore, #tpu.memory_space<semaphore_mem>>
    %243 = tpu.memref_squeeze %242 : memref<1x!tpu.dma_semaphore, #tpu.memory_space<semaphore_mem>> -> memref<!tpu.dma_semaphore, #tpu.memory_space<semaphore_mem>>
    tpu.enqueue_dma source(%239 : memref<32xf32, #tpu.memory_space<any>>) target(%241 : memref<32xf32, #tpu.memory_space<vmem>>) target_semaphore(%243 : memref<!tpu.dma_semaphore, #tpu.memory_space<semaphore_mem>>)
    %c13_i32_121 = arith.constant 13 : i32
    %244 = arith.addi %0, %c13_i32_121 : i32
    %245 = arith.index_cast %244 : i32 to index
    %246 = memref.load %arg2[%245] : memref<16xi32, #tpu.memory_space<smem>>
    %c13_i32_122 = arith.constant 13 : i32
    %c1_i32_123 = arith.constant 1 : i32
    %c0_i32_124 = arith.constant 0 : i32
    %247 = tpu.memref_slice %arg4[%246, %c0_i32_124] : memref<320x32xf32, #tpu.memory_space<any>> -> memref<1x32xf32, #tpu.memory_space<any>>
    %248 = tpu.memref_squeeze %247 : memref<1x32xf32, #tpu.memory_space<any>> -> memref<32xf32, #tpu.memory_space<any>>
    %c0_i32_125 = arith.constant 0 : i32
    %249 = tpu.memref_slice %arg8[%c13_i32_122, %c0_i32_125] : memref<16x32xf32, #tpu.memory_space<vmem>> -> memref<1x32xf32, #tpu.memory_space<vmem>>
    %250 = tpu.memref_squeeze %249 : memref<1x32xf32, #tpu.memory_space<vmem>> -> memref<32xf32, #tpu.memory_space<vmem>>
    %251 = tpu.memref_slice %arg9[%c1_i32_123] : memref<2x!tpu.dma_semaphore, #tpu.memory_space<semaphore_mem>> -> memref<1x!tpu.dma_semaphore, #tpu.memory_space<semaphore_mem>>
    %252 = tpu.memref_squeeze %251 : memref<1x!tpu.dma_semaphore, #tpu.memory_space<semaphore_mem>> -> memref<!tpu.dma_semaphore, #tpu.memory_space<semaphore_mem>>
    tpu.enqueue_dma source(%248 : memref<32xf32, #tpu.memory_space<any>>) target(%250 : memref<32xf32, #tpu.memory_space<vmem>>) target_semaphore(%252 : memref<!tpu.dma_semaphore, #tpu.memory_space<semaphore_mem>>)
    %c14_i32 = arith.constant 14 : i32
    %253 = arith.addi %0, %c14_i32 : i32
    %254 = arith.index_cast %253 : i32 to index
    %255 = memref.load %arg1[%254] : memref<16xi32, #tpu.memory_space<smem>>
    %c14_i32_126 = arith.constant 14 : i32
    %c0_i32_127 = arith.constant 0 : i32
    %c0_i32_128 = arith.constant 0 : i32
    %256 = tpu.memref_slice %arg3[%255, %c0_i32_128] : memref<256x32xf32, #tpu.memory_space<any>> -> memref<1x32xf32, #tpu.memory_space<any>>
    %257 = tpu.memref_squeeze %256 : memref<1x32xf32, #tpu.memory_space<any>> -> memref<32xf32, #tpu.memory_space<any>>
    %c0_i32_129 = arith.constant 0 : i32
    %258 = tpu.memref_slice %arg7[%c14_i32_126, %c0_i32_129] : memref<16x32xf32, #tpu.memory_space<vmem>> -> memref<1x32xf32, #tpu.memory_space<vmem>>
    %259 = tpu.memref_squeeze %258 : memref<1x32xf32, #tpu.memory_space<vmem>> -> memref<32xf32, #tpu.memory_space<vmem>>
    %260 = tpu.memref_slice %arg9[%c0_i32_127] : memref<2x!tpu.dma_semaphore, #tpu.memory_space<semaphore_mem>> -> memref<1x!tpu.dma_semaphore, #tpu.memory_space<semaphore_mem>>
    %261 = tpu.memref_squeeze %260 : memref<1x!tpu.dma_semaphore, #tpu.memory_space<semaphore_mem>> -> memref<!tpu.dma_semaphore, #tpu.memory_space<semaphore_mem>>
    tpu.enqueue_dma source(%257 : memref<32xf32, #tpu.memory_space<any>>) target(%259 : memref<32xf32, #tpu.memory_space<vmem>>) target_semaphore(%261 : memref<!tpu.dma_semaphore, #tpu.memory_space<semaphore_mem>>)
    %c14_i32_130 = arith.constant 14 : i32
    %262 = arith.addi %0, %c14_i32_130 : i32
    %263 = arith.index_cast %262 : i32 to index
    %264 = memref.load %arg2[%263] : memref<16xi32, #tpu.memory_space<smem>>
    %c14_i32_131 = arith.constant 14 : i32
    %c1_i32_132 = arith.constant 1 : i32
    %c0_i32_133 = arith.constant 0 : i32
    %265 = tpu.memref_slice %arg4[%264, %c0_i32_133] : memref<320x32xf32, #tpu.memory_space<any>> -> memref<1x32xf32, #tpu.memory_space<any>>
    %266 = tpu.memref_squeeze %265 : memref<1x32xf32, #tpu.memory_space<any>> -> memref<32xf32, #tpu.memory_space<any>>
    %c0_i32_134 = arith.constant 0 : i32
    %267 = tpu.memref_slice %arg8[%c14_i32_131, %c0_i32_134] : memref<16x32xf32, #tpu.memory_space<vmem>> -> memref<1x32xf32, #tpu.memory_space<vmem>>
    %268 = tpu.memref_squeeze %267 : memref<1x32xf32, #tpu.memory_space<vmem>> -> memref<32xf32, #tpu.memory_space<vmem>>
    %269 = tpu.memref_slice %arg9[%c1_i32_132] : memref<2x!tpu.dma_semaphore, #tpu.memory_space<semaphore_mem>> -> memref<1x!tpu.dma_semaphore, #tpu.memory_space<semaphore_mem>>
    %270 = tpu.memref_squeeze %269 : memref<1x!tpu.dma_semaphore, #tpu.memory_space<semaphore_mem>> -> memref<!tpu.dma_semaphore, #tpu.memory_space<semaphore_mem>>
    tpu.enqueue_dma source(%266 : memref<32xf32, #tpu.memory_space<any>>) target(%268 : memref<32xf32, #tpu.memory_space<vmem>>) target_semaphore(%270 : memref<!tpu.dma_semaphore, #tpu.memory_space<semaphore_mem>>)
    %c15_i32 = arith.constant 15 : i32
    %271 = arith.addi %0, %c15_i32 : i32
    %272 = arith.index_cast %271 : i32 to index
    %273 = memref.load %arg1[%272] : memref<16xi32, #tpu.memory_space<smem>>
    %c15_i32_135 = arith.constant 15 : i32
    %c0_i32_136 = arith.constant 0 : i32
    %c0_i32_137 = arith.constant 0 : i32
    %274 = tpu.memref_slice %arg3[%273, %c0_i32_137] : memref<256x32xf32, #tpu.memory_space<any>> -> memref<1x32xf32, #tpu.memory_space<any>>
    %275 = tpu.memref_squeeze %274 : memref<1x32xf32, #tpu.memory_space<any>> -> memref<32xf32, #tpu.memory_space<any>>
    %c0_i32_138 = arith.constant 0 : i32
    %276 = tpu.memref_slice %arg7[%c15_i32_135, %c0_i32_138] : memref<16x32xf32, #tpu.memory_space<vmem>> -> memref<1x32xf32, #tpu.memory_space<vmem>>
    %277 = tpu.memref_squeeze %276 : memref<1x32xf32, #tpu.memory_space<vmem>> -> memref<32xf32, #tpu.memory_space<vmem>>
    %278 = tpu.memref_slice %arg9[%c0_i32_136] : memref<2x!tpu.dma_semaphore, #tpu.memory_space<semaphore_mem>> -> memref<1x!tpu.dma_semaphore, #tpu.memory_space<semaphore_mem>>
    %279 = tpu.memref_squeeze %278 : memref<1x!tpu.dma_semaphore, #tpu.memory_space<semaphore_mem>> -> memref<!tpu.dma_semaphore, #tpu.memory_space<semaphore_mem>>
    tpu.enqueue_dma source(%275 : memref<32xf32, #tpu.memory_space<any>>) target(%277 : memref<32xf32, #tpu.memory_space<vmem>>) target_semaphore(%279 : memref<!tpu.dma_semaphore, #tpu.memory_space<semaphore_mem>>)
    %c15_i32_139 = arith.constant 15 : i32
    %280 = arith.addi %0, %c15_i32_139 : i32
    %281 = arith.index_cast %280 : i32 to index
    %282 = memref.load %arg2[%281] : memref<16xi32, #tpu.memory_space<smem>>
    %c15_i32_140 = arith.constant 15 : i32
    %c1_i32_141 = arith.constant 1 : i32
    %c0_i32_142 = arith.constant 0 : i32
    %283 = tpu.memref_slice %arg4[%282, %c0_i32_142] : memref<320x32xf32, #tpu.memory_space<any>> -> memref<1x32xf32, #tpu.memory_space<any>>
    %284 = tpu.memref_squeeze %283 : memref<1x32xf32, #tpu.memory_space<any>> -> memref<32xf32, #tpu.memory_space<any>>
    %c0_i32_143 = arith.constant 0 : i32
    %285 = tpu.memref_slice %arg8[%c15_i32_140, %c0_i32_143] : memref<16x32xf32, #tpu.memory_space<vmem>> -> memref<1x32xf32, #tpu.memory_space<vmem>>
    %286 = tpu.memref_squeeze %285 : memref<1x32xf32, #tpu.memory_space<vmem>> -> memref<32xf32, #tpu.memory_space<vmem>>
    %287 = tpu.memref_slice %arg9[%c1_i32_141] : memref<2x!tpu.dma_semaphore, #tpu.memory_space<semaphore_mem>> -> memref<1x!tpu.dma_semaphore, #tpu.memory_space<semaphore_mem>>
    %288 = tpu.memref_squeeze %287 : memref<1x!tpu.dma_semaphore, #tpu.memory_space<semaphore_mem>> -> memref<!tpu.dma_semaphore, #tpu.memory_space<semaphore_mem>>
    tpu.enqueue_dma source(%284 : memref<32xf32, #tpu.memory_space<any>>) target(%286 : memref<32xf32, #tpu.memory_space<vmem>>) target_semaphore(%288 : memref<!tpu.dma_semaphore, #tpu.memory_space<semaphore_mem>>)
    %c0_i32_144 = arith.constant 0 : i32
    %c0_i32_145 = arith.constant 0 : i32
    %c0_i32_146 = arith.constant 0 : i32
    %c0_i32_147 = arith.constant 0 : i32
    %289 = tpu.memref_slice %arg3[%c0_i32_144, %c0_i32_147] : memref<256x32xf32, #tpu.memory_space<any>> -> memref<1x32xf32, #tpu.memory_space<any>>
    %290 = tpu.memref_squeeze %289 : memref<1x32xf32, #tpu.memory_space<any>> -> memref<32xf32, #tpu.memory_space<any>>
    %c0_i32_148 = arith.constant 0 : i32
    %291 = tpu.memref_slice %arg7[%c0_i32_145, %c0_i32_148] : memref<16x32xf32, #tpu.memory_space<vmem>> -> memref<1x32xf32, #tpu.memory_space<vmem>>
    %292 = tpu.memref_squeeze %291 : memref<1x32xf32, #tpu.memory_space<vmem>> -> memref<32xf32, #tpu.memory_space<vmem>>
    %293 = tpu.memref_slice %arg9[%c0_i32_146] : memref<2x!tpu.dma_semaphore, #tpu.memory_space<semaphore_mem>> -> memref<1x!tpu.dma_semaphore, #tpu.memory_space<semaphore_mem>>
    %294 = tpu.memref_squeeze %293 : memref<1x!tpu.dma_semaphore, #tpu.memory_space<semaphore_mem>> -> memref<!tpu.dma_semaphore, #tpu.memory_space<semaphore_mem>>
    tpu.wait_dma2 semaphore(%294 : memref<!tpu.dma_semaphore, #tpu.memory_space<semaphore_mem>>) src(%290 : memref<32xf32, #tpu.memory_space<any>>) dst(%292 : memref<32xf32, #tpu.memory_space<vmem>>)
    %c0_i32_149 = arith.constant 0 : i32
    %c0_i32_150 = arith.constant 0 : i32
    %c1_i32_151 = arith.constant 1 : i32
    %c0_i32_152 = arith.constant 0 : i32
    %295 = tpu.memref_slice %arg4[%c0_i32_149, %c0_i32_152] : memref<320x32xf32, #tpu.memory_space<any>> -> memref<1x32xf32, #tpu.memory_space<any>>
    %296 = tpu.memref_squeeze %295 : memref<1x32xf32, #tpu.memory_space<any>> -> memref<32xf32, #tpu.memory_space<any>>
    %c0_i32_153 = arith.constant 0 : i32
    %297 = tpu.memref_slice %arg8[%c0_i32_150, %c0_i32_153] : memref<16x32xf32, #tpu.memory_space<vmem>> -> memref<1x32xf32, #tpu.memory_space<vmem>>
    %298 = tpu.memref_squeeze %297 : memref<1x32xf32, #tpu.memory_space<vmem>> -> memref<32xf32, #tpu.memory_space<vmem>>
    %299 = tpu.memref_slice %arg9[%c1_i32_151] : memref<2x!tpu.dma_semaphore, #tpu.memory_space<semaphore_mem>> -> memref<1x!tpu.dma_semaphore, #tpu.memory_space<semaphore_mem>>
    %300 = tpu.memref_squeeze %299 : memref<1x!tpu.dma_semaphore, #tpu.memory_space<semaphore_mem>> -> memref<!tpu.dma_semaphore, #tpu.memory_space<semaphore_mem>>
    tpu.wait_dma2 semaphore(%300 : memref<!tpu.dma_semaphore, #tpu.memory_space<semaphore_mem>>) src(%296 : memref<32xf32, #tpu.memory_space<any>>) dst(%298 : memref<32xf32, #tpu.memory_space<vmem>>)
    %c0_i32_154 = arith.constant 0 : i32
    %c1_i32_155 = arith.constant 1 : i32
    %c0_i32_156 = arith.constant 0 : i32
    %c0_i32_157 = arith.constant 0 : i32
    %301 = tpu.memref_slice %arg3[%c0_i32_154, %c0_i32_157] : memref<256x32xf32, #tpu.memory_space<any>> -> memref<1x32xf32, #tpu.memory_space<any>>
    %302 = tpu.memref_squeeze %301 : memref<1x32xf32, #tpu.memory_space<any>> -> memref<32xf32, #tpu.memory_space<any>>
    %c0_i32_158 = arith.constant 0 : i32
    %303 = tpu.memref_slice %arg7[%c1_i32_155, %c0_i32_158] : memref<16x32xf32, #tpu.memory_space<vmem>> -> memref<1x32xf32, #tpu.memory_space<vmem>>
    %304 = tpu.memref_squeeze %303 : memref<1x32xf32, #tpu.memory_space<vmem>> -> memref<32xf32, #tpu.memory_space<vmem>>
    %305 = tpu.memref_slice %arg9[%c0_i32_156] : memref<2x!tpu.dma_semaphore, #tpu.memory_space<semaphore_mem>> -> memref<1x!tpu.dma_semaphore, #tpu.memory_space<semaphore_mem>>
    %306 = tpu.memref_squeeze %305 : memref<1x!tpu.dma_semaphore, #tpu.memory_space<semaphore_mem>> -> memref<!tpu.dma_semaphore, #tpu.memory_space<semaphore_mem>>
    tpu.wait_dma2 semaphore(%306 : memref<!tpu.dma_semaphore, #tpu.memory_space<semaphore_mem>>) src(%302 : memref<32xf32, #tpu.memory_space<any>>) dst(%304 : memref<32xf32, #tpu.memory_space<vmem>>)
    %c0_i32_159 = arith.constant 0 : i32
    %c1_i32_160 = arith.constant 1 : i32
    %c1_i32_161 = arith.constant 1 : i32
    %c0_i32_162 = arith.constant 0 : i32
    %307 = tpu.memref_slice %arg4[%c0_i32_159, %c0_i32_162] : memref<320x32xf32, #tpu.memory_space<any>> -> memref<1x32xf32, #tpu.memory_space<any>>
    %308 = tpu.memref_squeeze %307 : memref<1x32xf32, #tpu.memory_space<any>> -> memref<32xf32, #tpu.memory_space<any>>
    %c0_i32_163 = arith.constant 0 : i32
    %309 = tpu.memref_slice %arg8[%c1_i32_160, %c0_i32_163] : memref<16x32xf32, #tpu.memory_space<vmem>> -> memref<1x32xf32, #tpu.memory_space<vmem>>
    %310 = tpu.memref_squeeze %309 : memref<1x32xf32, #tpu.memory_space<vmem>> -> memref<32xf32, #tpu.memory_space<vmem>>
    %311 = tpu.memref_slice %arg9[%c1_i32_161] : memref<2x!tpu.dma_semaphore, #tpu.memory_space<semaphore_mem>> -> memref<1x!tpu.dma_semaphore, #tpu.memory_space<semaphore_mem>>
    %312 = tpu.memref_squeeze %311 : memref<1x!tpu.dma_semaphore, #tpu.memory_space<semaphore_mem>> -> memref<!tpu.dma_semaphore, #tpu.memory_space<semaphore_mem>>
    tpu.wait_dma2 semaphore(%312 : memref<!tpu.dma_semaphore, #tpu.memory_space<semaphore_mem>>) src(%308 : memref<32xf32, #tpu.memory_space<any>>) dst(%310 : memref<32xf32, #tpu.memory_space<vmem>>)
    %c0_i32_164 = arith.constant 0 : i32
    %c2_i32_165 = arith.constant 2 : i32
    %c0_i32_166 = arith.constant 0 : i32
    %c0_i32_167 = arith.constant 0 : i32
    %313 = tpu.memref_slice %arg3[%c0_i32_164, %c0_i32_167] : memref<256x32xf32, #tpu.memory_space<any>> -> memref<1x32xf32, #tpu.memory_space<any>>
    %314 = tpu.memref_squeeze %313 : memref<1x32xf32, #tpu.memory_space<any>> -> memref<32xf32, #tpu.memory_space<any>>
    %c0_i32_168 = arith.constant 0 : i32
    %315 = tpu.memref_slice %arg7[%c2_i32_165, %c0_i32_168] : memref<16x32xf32, #tpu.memory_space<vmem>> -> memref<1x32xf32, #tpu.memory_space<vmem>>
    %316 = tpu.memref_squeeze %315 : memref<1x32xf32, #tpu.memory_space<vmem>> -> memref<32xf32, #tpu.memory_space<vmem>>
    %317 = tpu.memref_slice %arg9[%c0_i32_166] : memref<2x!tpu.dma_semaphore, #tpu.memory_space<semaphore_mem>> -> memref<1x!tpu.dma_semaphore, #tpu.memory_space<semaphore_mem>>
    %318 = tpu.memref_squeeze %317 : memref<1x!tpu.dma_semaphore, #tpu.memory_space<semaphore_mem>> -> memref<!tpu.dma_semaphore, #tpu.memory_space<semaphore_mem>>
    tpu.wait_dma2 semaphore(%318 : memref<!tpu.dma_semaphore, #tpu.memory_space<semaphore_mem>>) src(%314 : memref<32xf32, #tpu.memory_space<any>>) dst(%316 : memref<32xf32, #tpu.memory_space<vmem>>)
    %c0_i32_169 = arith.constant 0 : i32
    %c2_i32_170 = arith.constant 2 : i32
    %c1_i32_171 = arith.constant 1 : i32
    %c0_i32_172 = arith.constant 0 : i32
    %319 = tpu.memref_slice %arg4[%c0_i32_169, %c0_i32_172] : memref<320x32xf32, #tpu.memory_space<any>> -> memref<1x32xf32, #tpu.memory_space<any>>
    %320 = tpu.memref_squeeze %319 : memref<1x32xf32, #tpu.memory_space<any>> -> memref<32xf32, #tpu.memory_space<any>>
    %c0_i32_173 = arith.constant 0 : i32
    %321 = tpu.memref_slice %arg8[%c2_i32_170, %c0_i32_173] : memref<16x32xf32, #tpu.memory_space<vmem>> -> memref<1x32xf32, #tpu.memory_space<vmem>>
    %322 = tpu.memref_squeeze %321 : memref<1x32xf32, #tpu.memory_space<vmem>> -> memref<32xf32, #tpu.memory_space<vmem>>
    %323 = tpu.memref_slice %arg9[%c1_i32_171] : memref<2x!tpu.dma_semaphore, #tpu.memory_space<semaphore_mem>> -> memref<1x!tpu.dma_semaphore, #tpu.memory_space<semaphore_mem>>
    %324 = tpu.memref_squeeze %323 : memref<1x!tpu.dma_semaphore, #tpu.memory_space<semaphore_mem>> -> memref<!tpu.dma_semaphore, #tpu.memory_space<semaphore_mem>>
    tpu.wait_dma2 semaphore(%324 : memref<!tpu.dma_semaphore, #tpu.memory_space<semaphore_mem>>) src(%320 : memref<32xf32, #tpu.memory_space<any>>) dst(%322 : memref<32xf32, #tpu.memory_space<vmem>>)
    %c0_i32_174 = arith.constant 0 : i32
    %c3_i32_175 = arith.constant 3 : i32
    %c0_i32_176 = arith.constant 0 : i32
    %c0_i32_177 = arith.constant 0 : i32
    %325 = tpu.memref_slice %arg3[%c0_i32_174, %c0_i32_177] : memref<256x32xf32, #tpu.memory_space<any>> -> memref<1x32xf32, #tpu.memory_space<any>>
    %326 = tpu.memref_squeeze %325 : memref<1x32xf32, #tpu.memory_space<any>> -> memref<32xf32, #tpu.memory_space<any>>
    %c0_i32_178 = arith.constant 0 : i32
    %327 = tpu.memref_slice %arg7[%c3_i32_175, %c0_i32_178] : memref<16x32xf32, #tpu.memory_space<vmem>> -> memref<1x32xf32, #tpu.memory_space<vmem>>
    %328 = tpu.memref_squeeze %327 : memref<1x32xf32, #tpu.memory_space<vmem>> -> memref<32xf32, #tpu.memory_space<vmem>>
    %329 = tpu.memref_slice %arg9[%c0_i32_176] : memref<2x!tpu.dma_semaphore, #tpu.memory_space<semaphore_mem>> -> memref<1x!tpu.dma_semaphore, #tpu.memory_space<semaphore_mem>>
    %330 = tpu.memref_squeeze %329 : memref<1x!tpu.dma_semaphore, #tpu.memory_space<semaphore_mem>> -> memref<!tpu.dma_semaphore, #tpu.memory_space<semaphore_mem>>
    tpu.wait_dma2 semaphore(%330 : memref<!tpu.dma_semaphore, #tpu.memory_space<semaphore_mem>>) src(%326 : memref<32xf32, #tpu.memory_space<any>>) dst(%328 : memref<32xf32, #tpu.memory_space<vmem>>)
    %c0_i32_179 = arith.constant 0 : i32
    %c3_i32_180 = arith.constant 3 : i32
    %c1_i32_181 = arith.constant 1 : i32
    %c0_i32_182 = arith.constant 0 : i32
    %331 = tpu.memref_slice %arg4[%c0_i32_179, %c0_i32_182] : memref<320x32xf32, #tpu.memory_space<any>> -> memref<1x32xf32, #tpu.memory_space<any>>
    %332 = tpu.memref_squeeze %331 : memref<1x32xf32, #tpu.memory_space<any>> -> memref<32xf32, #tpu.memory_space<any>>
    %c0_i32_183 = arith.constant 0 : i32
    %333 = tpu.memref_slice %arg8[%c3_i32_180, %c0_i32_183] : memref<16x32xf32, #tpu.memory_space<vmem>> -> memref<1x32xf32, #tpu.memory_space<vmem>>
    %334 = tpu.memref_squeeze %333 : memref<1x32xf32, #tpu.memory_space<vmem>> -> memref<32xf32, #tpu.memory_space<vmem>>
    %335 = tpu.memref_slice %arg9[%c1_i32_181] : memref<2x!tpu.dma_semaphore, #tpu.memory_space<semaphore_mem>> -> memref<1x!tpu.dma_semaphore, #tpu.memory_space<semaphore_mem>>
    %336 = tpu.memref_squeeze %335 : memref<1x!tpu.dma_semaphore, #tpu.memory_space<semaphore_mem>> -> memref<!tpu.dma_semaphore, #tpu.memory_space<semaphore_mem>>
    tpu.wait_dma2 semaphore(%336 : memref<!tpu.dma_semaphore, #tpu.memory_space<semaphore_mem>>) src(%332 : memref<32xf32, #tpu.memory_space<any>>) dst(%334 : memref<32xf32, #tpu.memory_space<vmem>>)
    %c0_i32_184 = arith.constant 0 : i32
    %c4_i32_185 = arith.constant 4 : i32
    %c0_i32_186 = arith.constant 0 : i32
    %c0_i32_187 = arith.constant 0 : i32
    %337 = tpu.memref_slice %arg3[%c0_i32_184, %c0_i32_187] : memref<256x32xf32, #tpu.memory_space<any>> -> memref<1x32xf32, #tpu.memory_space<any>>
    %338 = tpu.memref_squeeze %337 : memref<1x32xf32, #tpu.memory_space<any>> -> memref<32xf32, #tpu.memory_space<any>>
    %c0_i32_188 = arith.constant 0 : i32
    %339 = tpu.memref_slice %arg7[%c4_i32_185, %c0_i32_188] : memref<16x32xf32, #tpu.memory_space<vmem>> -> memref<1x32xf32, #tpu.memory_space<vmem>>
    %340 = tpu.memref_squeeze %339 : memref<1x32xf32, #tpu.memory_space<vmem>> -> memref<32xf32, #tpu.memory_space<vmem>>
    %341 = tpu.memref_slice %arg9[%c0_i32_186] : memref<2x!tpu.dma_semaphore, #tpu.memory_space<semaphore_mem>> -> memref<1x!tpu.dma_semaphore, #tpu.memory_space<semaphore_mem>>
    %342 = tpu.memref_squeeze %341 : memref<1x!tpu.dma_semaphore, #tpu.memory_space<semaphore_mem>> -> memref<!tpu.dma_semaphore, #tpu.memory_space<semaphore_mem>>
    tpu.wait_dma2 semaphore(%342 : memref<!tpu.dma_semaphore, #tpu.memory_space<semaphore_mem>>) src(%338 : memref<32xf32, #tpu.memory_space<any>>) dst(%340 : memref<32xf32, #tpu.memory_space<vmem>>)
    %c0_i32_189 = arith.constant 0 : i32
    %c4_i32_190 = arith.constant 4 : i32
    %c1_i32_191 = arith.constant 1 : i32
    %c0_i32_192 = arith.constant 0 : i32
    %343 = tpu.memref_slice %arg4[%c0_i32_189, %c0_i32_192] : memref<320x32xf32, #tpu.memory_space<any>> -> memref<1x32xf32, #tpu.memory_space<any>>
    %344 = tpu.memref_squeeze %343 : memref<1x32xf32, #tpu.memory_space<any>> -> memref<32xf32, #tpu.memory_space<any>>
    %c0_i32_193 = arith.constant 0 : i32
    %345 = tpu.memref_slice %arg8[%c4_i32_190, %c0_i32_193] : memref<16x32xf32, #tpu.memory_space<vmem>> -> memref<1x32xf32, #tpu.memory_space<vmem>>
    %346 = tpu.memref_squeeze %345 : memref<1x32xf32, #tpu.memory_space<vmem>> -> memref<32xf32, #tpu.memory_space<vmem>>
    %347 = tpu.memref_slice %arg9[%c1_i32_191] : memref<2x!tpu.dma_semaphore, #tpu.memory_space<semaphore_mem>> -> memref<1x!tpu.dma_semaphore, #tpu.memory_space<semaphore_mem>>
    %348 = tpu.memref_squeeze %347 : memref<1x!tpu.dma_semaphore, #tpu.memory_space<semaphore_mem>> -> memref<!tpu.dma_semaphore, #tpu.memory_space<semaphore_mem>>
    tpu.wait_dma2 semaphore(%348 : memref<!tpu.dma_semaphore, #tpu.memory_space<semaphore_mem>>) src(%344 : memref<32xf32, #tpu.memory_space<any>>) dst(%346 : memref<32xf32, #tpu.memory_space<vmem>>)
    %c0_i32_194 = arith.constant 0 : i32
    %c5_i32_195 = arith.constant 5 : i32
    %c0_i32_196 = arith.constant 0 : i32
    %c0_i32_197 = arith.constant 0 : i32
    %349 = tpu.memref_slice %arg3[%c0_i32_194, %c0_i32_197] : memref<256x32xf32, #tpu.memory_space<any>> -> memref<1x32xf32, #tpu.memory_space<any>>
    %350 = tpu.memref_squeeze %349 : memref<1x32xf32, #tpu.memory_space<any>> -> memref<32xf32, #tpu.memory_space<any>>
    %c0_i32_198 = arith.constant 0 : i32
    %351 = tpu.memref_slice %arg7[%c5_i32_195, %c0_i32_198] : memref<16x32xf32, #tpu.memory_space<vmem>> -> memref<1x32xf32, #tpu.memory_space<vmem>>
    %352 = tpu.memref_squeeze %351 : memref<1x32xf32, #tpu.memory_space<vmem>> -> memref<32xf32, #tpu.memory_space<vmem>>
    %353 = tpu.memref_slice %arg9[%c0_i32_196] : memref<2x!tpu.dma_semaphore, #tpu.memory_space<semaphore_mem>> -> memref<1x!tpu.dma_semaphore, #tpu.memory_space<semaphore_mem>>
    %354 = tpu.memref_squeeze %353 : memref<1x!tpu.dma_semaphore, #tpu.memory_space<semaphore_mem>> -> memref<!tpu.dma_semaphore, #tpu.memory_space<semaphore_mem>>
    tpu.wait_dma2 semaphore(%354 : memref<!tpu.dma_semaphore, #tpu.memory_space<semaphore_mem>>) src(%350 : memref<32xf32, #tpu.memory_space<any>>) dst(%352 : memref<32xf32, #tpu.memory_space<vmem>>)
    %c0_i32_199 = arith.constant 0 : i32
    %c5_i32_200 = arith.constant 5 : i32
    %c1_i32_201 = arith.constant 1 : i32
    %c0_i32_202 = arith.constant 0 : i32
    %355 = tpu.memref_slice %arg4[%c0_i32_199, %c0_i32_202] : memref<320x32xf32, #tpu.memory_space<any>> -> memref<1x32xf32, #tpu.memory_space<any>>
    %356 = tpu.memref_squeeze %355 : memref<1x32xf32, #tpu.memory_space<any>> -> memref<32xf32, #tpu.memory_space<any>>
    %c0_i32_203 = arith.constant 0 : i32
    %357 = tpu.memref_slice %arg8[%c5_i32_200, %c0_i32_203] : memref<16x32xf32, #tpu.memory_space<vmem>> -> memref<1x32xf32, #tpu.memory_space<vmem>>
    %358 = tpu.memref_squeeze %357 : memref<1x32xf32, #tpu.memory_space<vmem>> -> memref<32xf32, #tpu.memory_space<vmem>>
    %359 = tpu.memref_slice %arg9[%c1_i32_201] : memref<2x!tpu.dma_semaphore, #tpu.memory_space<semaphore_mem>> -> memref<1x!tpu.dma_semaphore, #tpu.memory_space<semaphore_mem>>
    %360 = tpu.memref_squeeze %359 : memref<1x!tpu.dma_semaphore, #tpu.memory_space<semaphore_mem>> -> memref<!tpu.dma_semaphore, #tpu.memory_space<semaphore_mem>>
    tpu.wait_dma2 semaphore(%360 : memref<!tpu.dma_semaphore, #tpu.memory_space<semaphore_mem>>) src(%356 : memref<32xf32, #tpu.memory_space<any>>) dst(%358 : memref<32xf32, #tpu.memory_space<vmem>>)
    %c0_i32_204 = arith.constant 0 : i32
    %c6_i32_205 = arith.constant 6 : i32
    %c0_i32_206 = arith.constant 0 : i32
    %c0_i32_207 = arith.constant 0 : i32
    %361 = tpu.memref_slice %arg3[%c0_i32_204, %c0_i32_207] : memref<256x32xf32, #tpu.memory_space<any>> -> memref<1x32xf32, #tpu.memory_space<any>>
    %362 = tpu.memref_squeeze %361 : memref<1x32xf32, #tpu.memory_space<any>> -> memref<32xf32, #tpu.memory_space<any>>
    %c0_i32_208 = arith.constant 0 : i32
    %363 = tpu.memref_slice %arg7[%c6_i32_205, %c0_i32_208] : memref<16x32xf32, #tpu.memory_space<vmem>> -> memref<1x32xf32, #tpu.memory_space<vmem>>
    %364 = tpu.memref_squeeze %363 : memref<1x32xf32, #tpu.memory_space<vmem>> -> memref<32xf32, #tpu.memory_space<vmem>>
    %365 = tpu.memref_slice %arg9[%c0_i32_206] : memref<2x!tpu.dma_semaphore, #tpu.memory_space<semaphore_mem>> -> memref<1x!tpu.dma_semaphore, #tpu.memory_space<semaphore_mem>>
    %366 = tpu.memref_squeeze %365 : memref<1x!tpu.dma_semaphore, #tpu.memory_space<semaphore_mem>> -> memref<!tpu.dma_semaphore, #tpu.memory_space<semaphore_mem>>
    tpu.wait_dma2 semaphore(%366 : memref<!tpu.dma_semaphore, #tpu.memory_space<semaphore_mem>>) src(%362 : memref<32xf32, #tpu.memory_space<any>>) dst(%364 : memref<32xf32, #tpu.memory_space<vmem>>)
    %c0_i32_209 = arith.constant 0 : i32
    %c6_i32_210 = arith.constant 6 : i32
    %c1_i32_211 = arith.constant 1 : i32
    %c0_i32_212 = arith.constant 0 : i32
    %367 = tpu.memref_slice %arg4[%c0_i32_209, %c0_i32_212] : memref<320x32xf32, #tpu.memory_space<any>> -> memref<1x32xf32, #tpu.memory_space<any>>
    %368 = tpu.memref_squeeze %367 : memref<1x32xf32, #tpu.memory_space<any>> -> memref<32xf32, #tpu.memory_space<any>>
    %c0_i32_213 = arith.constant 0 : i32
    %369 = tpu.memref_slice %arg8[%c6_i32_210, %c0_i32_213] : memref<16x32xf32, #tpu.memory_space<vmem>> -> memref<1x32xf32, #tpu.memory_space<vmem>>
    %370 = tpu.memref_squeeze %369 : memref<1x32xf32, #tpu.memory_space<vmem>> -> memref<32xf32, #tpu.memory_space<vmem>>
    %371 = tpu.memref_slice %arg9[%c1_i32_211] : memref<2x!tpu.dma_semaphore, #tpu.memory_space<semaphore_mem>> -> memref<1x!tpu.dma_semaphore, #tpu.memory_space<semaphore_mem>>
    %372 = tpu.memref_squeeze %371 : memref<1x!tpu.dma_semaphore, #tpu.memory_space<semaphore_mem>> -> memref<!tpu.dma_semaphore, #tpu.memory_space<semaphore_mem>>
    tpu.wait_dma2 semaphore(%372 : memref<!tpu.dma_semaphore, #tpu.memory_space<semaphore_mem>>) src(%368 : memref<32xf32, #tpu.memory_space<any>>) dst(%370 : memref<32xf32, #tpu.memory_space<vmem>>)
    %c0_i32_214 = arith.constant 0 : i32
    %c7_i32_215 = arith.constant 7 : i32
    %c0_i32_216 = arith.constant 0 : i32
    %c0_i32_217 = arith.constant 0 : i32
    %373 = tpu.memref_slice %arg3[%c0_i32_214, %c0_i32_217] : memref<256x32xf32, #tpu.memory_space<any>> -> memref<1x32xf32, #tpu.memory_space<any>>
    %374 = tpu.memref_squeeze %373 : memref<1x32xf32, #tpu.memory_space<any>> -> memref<32xf32, #tpu.memory_space<any>>
    %c0_i32_218 = arith.constant 0 : i32
    %375 = tpu.memref_slice %arg7[%c7_i32_215, %c0_i32_218] : memref<16x32xf32, #tpu.memory_space<vmem>> -> memref<1x32xf32, #tpu.memory_space<vmem>>
    %376 = tpu.memref_squeeze %375 : memref<1x32xf32, #tpu.memory_space<vmem>> -> memref<32xf32, #tpu.memory_space<vmem>>
    %377 = tpu.memref_slice %arg9[%c0_i32_216] : memref<2x!tpu.dma_semaphore, #tpu.memory_space<semaphore_mem>> -> memref<1x!tpu.dma_semaphore, #tpu.memory_space<semaphore_mem>>
    %378 = tpu.memref_squeeze %377 : memref<1x!tpu.dma_semaphore, #tpu.memory_space<semaphore_mem>> -> memref<!tpu.dma_semaphore, #tpu.memory_space<semaphore_mem>>
    tpu.wait_dma2 semaphore(%378 : memref<!tpu.dma_semaphore, #tpu.memory_space<semaphore_mem>>) src(%374 : memref<32xf32, #tpu.memory_space<any>>) dst(%376 : memref<32xf32, #tpu.memory_space<vmem>>)
    %c0_i32_219 = arith.constant 0 : i32
    %c7_i32_220 = arith.constant 7 : i32
    %c1_i32_221 = arith.constant 1 : i32
    %c0_i32_222 = arith.constant 0 : i32
    %379 = tpu.memref_slice %arg4[%c0_i32_219, %c0_i32_222] : memref<320x32xf32, #tpu.memory_space<any>> -> memref<1x32xf32, #tpu.memory_space<any>>
    %380 = tpu.memref_squeeze %379 : memref<1x32xf32, #tpu.memory_space<any>> -> memref<32xf32, #tpu.memory_space<any>>
    %c0_i32_223 = arith.constant 0 : i32
    %381 = tpu.memref_slice %arg8[%c7_i32_220, %c0_i32_223] : memref<16x32xf32, #tpu.memory_space<vmem>> -> memref<1x32xf32, #tpu.memory_space<vmem>>
    %382 = tpu.memref_squeeze %381 : memref<1x32xf32, #tpu.memory_space<vmem>> -> memref<32xf32, #tpu.memory_space<vmem>>
    %383 = tpu.memref_slice %arg9[%c1_i32_221] : memref<2x!tpu.dma_semaphore, #tpu.memory_space<semaphore_mem>> -> memref<1x!tpu.dma_semaphore, #tpu.memory_space<semaphore_mem>>
    %384 = tpu.memref_squeeze %383 : memref<1x!tpu.dma_semaphore, #tpu.memory_space<semaphore_mem>> -> memref<!tpu.dma_semaphore, #tpu.memory_space<semaphore_mem>>
    tpu.wait_dma2 semaphore(%384 : memref<!tpu.dma_semaphore, #tpu.memory_space<semaphore_mem>>) src(%380 : memref<32xf32, #tpu.memory_space<any>>) dst(%382 : memref<32xf32, #tpu.memory_space<vmem>>)
    %c0_i32_224 = arith.constant 0 : i32
    %c8_i32_225 = arith.constant 8 : i32
    %c0_i32_226 = arith.constant 0 : i32
    %c0_i32_227 = arith.constant 0 : i32
    %385 = tpu.memref_slice %arg3[%c0_i32_224, %c0_i32_227] : memref<256x32xf32, #tpu.memory_space<any>> -> memref<1x32xf32, #tpu.memory_space<any>>
    %386 = tpu.memref_squeeze %385 : memref<1x32xf32, #tpu.memory_space<any>> -> memref<32xf32, #tpu.memory_space<any>>
    %c0_i32_228 = arith.constant 0 : i32
    %387 = tpu.memref_slice %arg7[%c8_i32_225, %c0_i32_228] : memref<16x32xf32, #tpu.memory_space<vmem>> -> memref<1x32xf32, #tpu.memory_space<vmem>>
    %388 = tpu.memref_squeeze %387 : memref<1x32xf32, #tpu.memory_space<vmem>> -> memref<32xf32, #tpu.memory_space<vmem>>
    %389 = tpu.memref_slice %arg9[%c0_i32_226] : memref<2x!tpu.dma_semaphore, #tpu.memory_space<semaphore_mem>> -> memref<1x!tpu.dma_semaphore, #tpu.memory_space<semaphore_mem>>
    %390 = tpu.memref_squeeze %389 : memref<1x!tpu.dma_semaphore, #tpu.memory_space<semaphore_mem>> -> memref<!tpu.dma_semaphore, #tpu.memory_space<semaphore_mem>>
    tpu.wait_dma2 semaphore(%390 : memref<!tpu.dma_semaphore, #tpu.memory_space<semaphore_mem>>) src(%386 : memref<32xf32, #tpu.memory_space<any>>) dst(%388 : memref<32xf32, #tpu.memory_space<vmem>>)
    %c0_i32_229 = arith.constant 0 : i32
    %c8_i32_230 = arith.constant 8 : i32
    %c1_i32_231 = arith.constant 1 : i32
    %c0_i32_232 = arith.constant 0 : i32
    %391 = tpu.memref_slice %arg4[%c0_i32_229, %c0_i32_232] : memref<320x32xf32, #tpu.memory_space<any>> -> memref<1x32xf32, #tpu.memory_space<any>>
    %392 = tpu.memref_squeeze %391 : memref<1x32xf32, #tpu.memory_space<any>> -> memref<32xf32, #tpu.memory_space<any>>
    %c0_i32_233 = arith.constant 0 : i32
    %393 = tpu.memref_slice %arg8[%c8_i32_230, %c0_i32_233] : memref<16x32xf32, #tpu.memory_space<vmem>> -> memref<1x32xf32, #tpu.memory_space<vmem>>
    %394 = tpu.memref_squeeze %393 : memref<1x32xf32, #tpu.memory_space<vmem>> -> memref<32xf32, #tpu.memory_space<vmem>>
    %395 = tpu.memref_slice %arg9[%c1_i32_231] : memref<2x!tpu.dma_semaphore, #tpu.memory_space<semaphore_mem>> -> memref<1x!tpu.dma_semaphore, #tpu.memory_space<semaphore_mem>>
    %396 = tpu.memref_squeeze %395 : memref<1x!tpu.dma_semaphore, #tpu.memory_space<semaphore_mem>> -> memref<!tpu.dma_semaphore, #tpu.memory_space<semaphore_mem>>
    tpu.wait_dma2 semaphore(%396 : memref<!tpu.dma_semaphore, #tpu.memory_space<semaphore_mem>>) src(%392 : memref<32xf32, #tpu.memory_space<any>>) dst(%394 : memref<32xf32, #tpu.memory_space<vmem>>)
    %c0_i32_234 = arith.constant 0 : i32
    %c9_i32_235 = arith.constant 9 : i32
    %c0_i32_236 = arith.constant 0 : i32
    %c0_i32_237 = arith.constant 0 : i32
    %397 = tpu.memref_slice %arg3[%c0_i32_234, %c0_i32_237] : memref<256x32xf32, #tpu.memory_space<any>> -> memref<1x32xf32, #tpu.memory_space<any>>
    %398 = tpu.memref_squeeze %397 : memref<1x32xf32, #tpu.memory_space<any>> -> memref<32xf32, #tpu.memory_space<any>>
    %c0_i32_238 = arith.constant 0 : i32
    %399 = tpu.memref_slice %arg7[%c9_i32_235, %c0_i32_238] : memref<16x32xf32, #tpu.memory_space<vmem>> -> memref<1x32xf32, #tpu.memory_space<vmem>>
    %400 = tpu.memref_squeeze %399 : memref<1x32xf32, #tpu.memory_space<vmem>> -> memref<32xf32, #tpu.memory_space<vmem>>
    %401 = tpu.memref_slice %arg9[%c0_i32_236] : memref<2x!tpu.dma_semaphore, #tpu.memory_space<semaphore_mem>> -> memref<1x!tpu.dma_semaphore, #tpu.memory_space<semaphore_mem>>
    %402 = tpu.memref_squeeze %401 : memref<1x!tpu.dma_semaphore, #tpu.memory_space<semaphore_mem>> -> memref<!tpu.dma_semaphore, #tpu.memory_space<semaphore_mem>>
    tpu.wait_dma2 semaphore(%402 : memref<!tpu.dma_semaphore, #tpu.memory_space<semaphore_mem>>) src(%398 : memref<32xf32, #tpu.memory_space<any>>) dst(%400 : memref<32xf32, #tpu.memory_space<vmem>>)
    %c0_i32_239 = arith.constant 0 : i32
    %c9_i32_240 = arith.constant 9 : i32
    %c1_i32_241 = arith.constant 1 : i32
    %c0_i32_242 = arith.constant 0 : i32
    %403 = tpu.memref_slice %arg4[%c0_i32_239, %c0_i32_242] : memref<320x32xf32, #tpu.memory_space<any>> -> memref<1x32xf32, #tpu.memory_space<any>>
    %404 = tpu.memref_squeeze %403 : memref<1x32xf32, #tpu.memory_space<any>> -> memref<32xf32, #tpu.memory_space<any>>
    %c0_i32_243 = arith.constant 0 : i32
    %405 = tpu.memref_slice %arg8[%c9_i32_240, %c0_i32_243] : memref<16x32xf32, #tpu.memory_space<vmem>> -> memref<1x32xf32, #tpu.memory_space<vmem>>
    %406 = tpu.memref_squeeze %405 : memref<1x32xf32, #tpu.memory_space<vmem>> -> memref<32xf32, #tpu.memory_space<vmem>>
    %407 = tpu.memref_slice %arg9[%c1_i32_241] : memref<2x!tpu.dma_semaphore, #tpu.memory_space<semaphore_mem>> -> memref<1x!tpu.dma_semaphore, #tpu.memory_space<semaphore_mem>>
    %408 = tpu.memref_squeeze %407 : memref<1x!tpu.dma_semaphore, #tpu.memory_space<semaphore_mem>> -> memref<!tpu.dma_semaphore, #tpu.memory_space<semaphore_mem>>
    tpu.wait_dma2 semaphore(%408 : memref<!tpu.dma_semaphore, #tpu.memory_space<semaphore_mem>>) src(%404 : memref<32xf32, #tpu.memory_space<any>>) dst(%406 : memref<32xf32, #tpu.memory_space<vmem>>)
    %c0_i32_244 = arith.constant 0 : i32
    %c10_i32_245 = arith.constant 10 : i32
    %c0_i32_246 = arith.constant 0 : i32
    %c0_i32_247 = arith.constant 0 : i32
    %409 = tpu.memref_slice %arg3[%c0_i32_244, %c0_i32_247] : memref<256x32xf32, #tpu.memory_space<any>> -> memref<1x32xf32, #tpu.memory_space<any>>
    %410 = tpu.memref_squeeze %409 : memref<1x32xf32, #tpu.memory_space<any>> -> memref<32xf32, #tpu.memory_space<any>>
    %c0_i32_248 = arith.constant 0 : i32
    %411 = tpu.memref_slice %arg7[%c10_i32_245, %c0_i32_248] : memref<16x32xf32, #tpu.memory_space<vmem>> -> memref<1x32xf32, #tpu.memory_space<vmem>>
    %412 = tpu.memref_squeeze %411 : memref<1x32xf32, #tpu.memory_space<vmem>> -> memref<32xf32, #tpu.memory_space<vmem>>
    %413 = tpu.memref_slice %arg9[%c0_i32_246] : memref<2x!tpu.dma_semaphore, #tpu.memory_space<semaphore_mem>> -> memref<1x!tpu.dma_semaphore, #tpu.memory_space<semaphore_mem>>
    %414 = tpu.memref_squeeze %413 : memref<1x!tpu.dma_semaphore, #tpu.memory_space<semaphore_mem>> -> memref<!tpu.dma_semaphore, #tpu.memory_space<semaphore_mem>>
    tpu.wait_dma2 semaphore(%414 : memref<!tpu.dma_semaphore, #tpu.memory_space<semaphore_mem>>) src(%410 : memref<32xf32, #tpu.memory_space<any>>) dst(%412 : memref<32xf32, #tpu.memory_space<vmem>>)
    %c0_i32_249 = arith.constant 0 : i32
    %c10_i32_250 = arith.constant 10 : i32
    %c1_i32_251 = arith.constant 1 : i32
    %c0_i32_252 = arith.constant 0 : i32
    %415 = tpu.memref_slice %arg4[%c0_i32_249, %c0_i32_252] : memref<320x32xf32, #tpu.memory_space<any>> -> memref<1x32xf32, #tpu.memory_space<any>>
    %416 = tpu.memref_squeeze %415 : memref<1x32xf32, #tpu.memory_space<any>> -> memref<32xf32, #tpu.memory_space<any>>
    %c0_i32_253 = arith.constant 0 : i32
    %417 = tpu.memref_slice %arg8[%c10_i32_250, %c0_i32_253] : memref<16x32xf32, #tpu.memory_space<vmem>> -> memref<1x32xf32, #tpu.memory_space<vmem>>
    %418 = tpu.memref_squeeze %417 : memref<1x32xf32, #tpu.memory_space<vmem>> -> memref<32xf32, #tpu.memory_space<vmem>>
    %419 = tpu.memref_slice %arg9[%c1_i32_251] : memref<2x!tpu.dma_semaphore, #tpu.memory_space<semaphore_mem>> -> memref<1x!tpu.dma_semaphore, #tpu.memory_space<semaphore_mem>>
    %420 = tpu.memref_squeeze %419 : memref<1x!tpu.dma_semaphore, #tpu.memory_space<semaphore_mem>> -> memref<!tpu.dma_semaphore, #tpu.memory_space<semaphore_mem>>
    tpu.wait_dma2 semaphore(%420 : memref<!tpu.dma_semaphore, #tpu.memory_space<semaphore_mem>>) src(%416 : memref<32xf32, #tpu.memory_space<any>>) dst(%418 : memref<32xf32, #tpu.memory_space<vmem>>)
    %c0_i32_254 = arith.constant 0 : i32
    %c11_i32_255 = arith.constant 11 : i32
    %c0_i32_256 = arith.constant 0 : i32
    %c0_i32_257 = arith.constant 0 : i32
    %421 = tpu.memref_slice %arg3[%c0_i32_254, %c0_i32_257] : memref<256x32xf32, #tpu.memory_space<any>> -> memref<1x32xf32, #tpu.memory_space<any>>
    %422 = tpu.memref_squeeze %421 : memref<1x32xf32, #tpu.memory_space<any>> -> memref<32xf32, #tpu.memory_space<any>>
    %c0_i32_258 = arith.constant 0 : i32
    %423 = tpu.memref_slice %arg7[%c11_i32_255, %c0_i32_258] : memref<16x32xf32, #tpu.memory_space<vmem>> -> memref<1x32xf32, #tpu.memory_space<vmem>>
    %424 = tpu.memref_squeeze %423 : memref<1x32xf32, #tpu.memory_space<vmem>> -> memref<32xf32, #tpu.memory_space<vmem>>
    %425 = tpu.memref_slice %arg9[%c0_i32_256] : memref<2x!tpu.dma_semaphore, #tpu.memory_space<semaphore_mem>> -> memref<1x!tpu.dma_semaphore, #tpu.memory_space<semaphore_mem>>
    %426 = tpu.memref_squeeze %425 : memref<1x!tpu.dma_semaphore, #tpu.memory_space<semaphore_mem>> -> memref<!tpu.dma_semaphore, #tpu.memory_space<semaphore_mem>>
    tpu.wait_dma2 semaphore(%426 : memref<!tpu.dma_semaphore, #tpu.memory_space<semaphore_mem>>) src(%422 : memref<32xf32, #tpu.memory_space<any>>) dst(%424 : memref<32xf32, #tpu.memory_space<vmem>>)
    %c0_i32_259 = arith.constant 0 : i32
    %c11_i32_260 = arith.constant 11 : i32
    %c1_i32_261 = arith.constant 1 : i32
    %c0_i32_262 = arith.constant 0 : i32
    %427 = tpu.memref_slice %arg4[%c0_i32_259, %c0_i32_262] : memref<320x32xf32, #tpu.memory_space<any>> -> memref<1x32xf32, #tpu.memory_space<any>>
    %428 = tpu.memref_squeeze %427 : memref<1x32xf32, #tpu.memory_space<any>> -> memref<32xf32, #tpu.memory_space<any>>
    %c0_i32_263 = arith.constant 0 : i32
    %429 = tpu.memref_slice %arg8[%c11_i32_260, %c0_i32_263] : memref<16x32xf32, #tpu.memory_space<vmem>> -> memref<1x32xf32, #tpu.memory_space<vmem>>
    %430 = tpu.memref_squeeze %429 : memref<1x32xf32, #tpu.memory_space<vmem>> -> memref<32xf32, #tpu.memory_space<vmem>>
    %431 = tpu.memref_slice %arg9[%c1_i32_261] : memref<2x!tpu.dma_semaphore, #tpu.memory_space<semaphore_mem>> -> memref<1x!tpu.dma_semaphore, #tpu.memory_space<semaphore_mem>>
    %432 = tpu.memref_squeeze %431 : memref<1x!tpu.dma_semaphore, #tpu.memory_space<semaphore_mem>> -> memref<!tpu.dma_semaphore, #tpu.memory_space<semaphore_mem>>
    tpu.wait_dma2 semaphore(%432 : memref<!tpu.dma_semaphore, #tpu.memory_space<semaphore_mem>>) src(%428 : memref<32xf32, #tpu.memory_space<any>>) dst(%430 : memref<32xf32, #tpu.memory_space<vmem>>)
    %c0_i32_264 = arith.constant 0 : i32
    %c12_i32_265 = arith.constant 12 : i32
    %c0_i32_266 = arith.constant 0 : i32
    %c0_i32_267 = arith.constant 0 : i32
    %433 = tpu.memref_slice %arg3[%c0_i32_264, %c0_i32_267] : memref<256x32xf32, #tpu.memory_space<any>> -> memref<1x32xf32, #tpu.memory_space<any>>
    %434 = tpu.memref_squeeze %433 : memref<1x32xf32, #tpu.memory_space<any>> -> memref<32xf32, #tpu.memory_space<any>>
    %c0_i32_268 = arith.constant 0 : i32
    %435 = tpu.memref_slice %arg7[%c12_i32_265, %c0_i32_268] : memref<16x32xf32, #tpu.memory_space<vmem>> -> memref<1x32xf32, #tpu.memory_space<vmem>>
    %436 = tpu.memref_squeeze %435 : memref<1x32xf32, #tpu.memory_space<vmem>> -> memref<32xf32, #tpu.memory_space<vmem>>
    %437 = tpu.memref_slice %arg9[%c0_i32_266] : memref<2x!tpu.dma_semaphore, #tpu.memory_space<semaphore_mem>> -> memref<1x!tpu.dma_semaphore, #tpu.memory_space<semaphore_mem>>
    %438 = tpu.memref_squeeze %437 : memref<1x!tpu.dma_semaphore, #tpu.memory_space<semaphore_mem>> -> memref<!tpu.dma_semaphore, #tpu.memory_space<semaphore_mem>>
    tpu.wait_dma2 semaphore(%438 : memref<!tpu.dma_semaphore, #tpu.memory_space<semaphore_mem>>) src(%434 : memref<32xf32, #tpu.memory_space<any>>) dst(%436 : memref<32xf32, #tpu.memory_space<vmem>>)
    %c0_i32_269 = arith.constant 0 : i32
    %c12_i32_270 = arith.constant 12 : i32
    %c1_i32_271 = arith.constant 1 : i32
    %c0_i32_272 = arith.constant 0 : i32
    %439 = tpu.memref_slice %arg4[%c0_i32_269, %c0_i32_272] : memref<320x32xf32, #tpu.memory_space<any>> -> memref<1x32xf32, #tpu.memory_space<any>>
    %440 = tpu.memref_squeeze %439 : memref<1x32xf32, #tpu.memory_space<any>> -> memref<32xf32, #tpu.memory_space<any>>
    %c0_i32_273 = arith.constant 0 : i32
    %441 = tpu.memref_slice %arg8[%c12_i32_270, %c0_i32_273] : memref<16x32xf32, #tpu.memory_space<vmem>> -> memref<1x32xf32, #tpu.memory_space<vmem>>
    %442 = tpu.memref_squeeze %441 : memref<1x32xf32, #tpu.memory_space<vmem>> -> memref<32xf32, #tpu.memory_space<vmem>>
    %443 = tpu.memref_slice %arg9[%c1_i32_271] : memref<2x!tpu.dma_semaphore, #tpu.memory_space<semaphore_mem>> -> memref<1x!tpu.dma_semaphore, #tpu.memory_space<semaphore_mem>>
    %444 = tpu.memref_squeeze %443 : memref<1x!tpu.dma_semaphore, #tpu.memory_space<semaphore_mem>> -> memref<!tpu.dma_semaphore, #tpu.memory_space<semaphore_mem>>
    tpu.wait_dma2 semaphore(%444 : memref<!tpu.dma_semaphore, #tpu.memory_space<semaphore_mem>>) src(%440 : memref<32xf32, #tpu.memory_space<any>>) dst(%442 : memref<32xf32, #tpu.memory_space<vmem>>)
    %c0_i32_274 = arith.constant 0 : i32
    %c13_i32_275 = arith.constant 13 : i32
    %c0_i32_276 = arith.constant 0 : i32
    %c0_i32_277 = arith.constant 0 : i32
    %445 = tpu.memref_slice %arg3[%c0_i32_274, %c0_i32_277] : memref<256x32xf32, #tpu.memory_space<any>> -> memref<1x32xf32, #tpu.memory_space<any>>
    %446 = tpu.memref_squeeze %445 : memref<1x32xf32, #tpu.memory_space<any>> -> memref<32xf32, #tpu.memory_space<any>>
    %c0_i32_278 = arith.constant 0 : i32
    %447 = tpu.memref_slice %arg7[%c13_i32_275, %c0_i32_278] : memref<16x32xf32, #tpu.memory_space<vmem>> -> memref<1x32xf32, #tpu.memory_space<vmem>>
    %448 = tpu.memref_squeeze %447 : memref<1x32xf32, #tpu.memory_space<vmem>> -> memref<32xf32, #tpu.memory_space<vmem>>
    %449 = tpu.memref_slice %arg9[%c0_i32_276] : memref<2x!tpu.dma_semaphore, #tpu.memory_space<semaphore_mem>> -> memref<1x!tpu.dma_semaphore, #tpu.memory_space<semaphore_mem>>
    %450 = tpu.memref_squeeze %449 : memref<1x!tpu.dma_semaphore, #tpu.memory_space<semaphore_mem>> -> memref<!tpu.dma_semaphore, #tpu.memory_space<semaphore_mem>>
    tpu.wait_dma2 semaphore(%450 : memref<!tpu.dma_semaphore, #tpu.memory_space<semaphore_mem>>) src(%446 : memref<32xf32, #tpu.memory_space<any>>) dst(%448 : memref<32xf32, #tpu.memory_space<vmem>>)
    %c0_i32_279 = arith.constant 0 : i32
    %c13_i32_280 = arith.constant 13 : i32
    %c1_i32_281 = arith.constant 1 : i32
    %c0_i32_282 = arith.constant 0 : i32
    %451 = tpu.memref_slice %arg4[%c0_i32_279, %c0_i32_282] : memref<320x32xf32, #tpu.memory_space<any>> -> memref<1x32xf32, #tpu.memory_space<any>>
    %452 = tpu.memref_squeeze %451 : memref<1x32xf32, #tpu.memory_space<any>> -> memref<32xf32, #tpu.memory_space<any>>
    %c0_i32_283 = arith.constant 0 : i32
    %453 = tpu.memref_slice %arg8[%c13_i32_280, %c0_i32_283] : memref<16x32xf32, #tpu.memory_space<vmem>> -> memref<1x32xf32, #tpu.memory_space<vmem>>
    %454 = tpu.memref_squeeze %453 : memref<1x32xf32, #tpu.memory_space<vmem>> -> memref<32xf32, #tpu.memory_space<vmem>>
    %455 = tpu.memref_slice %arg9[%c1_i32_281] : memref<2x!tpu.dma_semaphore, #tpu.memory_space<semaphore_mem>> -> memref<1x!tpu.dma_semaphore, #tpu.memory_space<semaphore_mem>>
    %456 = tpu.memref_squeeze %455 : memref<1x!tpu.dma_semaphore, #tpu.memory_space<semaphore_mem>> -> memref<!tpu.dma_semaphore, #tpu.memory_space<semaphore_mem>>
    tpu.wait_dma2 semaphore(%456 : memref<!tpu.dma_semaphore, #tpu.memory_space<semaphore_mem>>) src(%452 : memref<32xf32, #tpu.memory_space<any>>) dst(%454 : memref<32xf32, #tpu.memory_space<vmem>>)
    %c0_i32_284 = arith.constant 0 : i32
    %c14_i32_285 = arith.constant 14 : i32
    %c0_i32_286 = arith.constant 0 : i32
    %c0_i32_287 = arith.constant 0 : i32
    %457 = tpu.memref_slice %arg3[%c0_i32_284, %c0_i32_287] : memref<256x32xf32, #tpu.memory_space<any>> -> memref<1x32xf32, #tpu.memory_space<any>>
    %458 = tpu.memref_squeeze %457 : memref<1x32xf32, #tpu.memory_space<any>> -> memref<32xf32, #tpu.memory_space<any>>
    %c0_i32_288 = arith.constant 0 : i32
    %459 = tpu.memref_slice %arg7[%c14_i32_285, %c0_i32_288] : memref<16x32xf32, #tpu.memory_space<vmem>> -> memref<1x32xf32, #tpu.memory_space<vmem>>
    %460 = tpu.memref_squeeze %459 : memref<1x32xf32, #tpu.memory_space<vmem>> -> memref<32xf32, #tpu.memory_space<vmem>>
    %461 = tpu.memref_slice %arg9[%c0_i32_286] : memref<2x!tpu.dma_semaphore, #tpu.memory_space<semaphore_mem>> -> memref<1x!tpu.dma_semaphore, #tpu.memory_space<semaphore_mem>>
    %462 = tpu.memref_squeeze %461 : memref<1x!tpu.dma_semaphore, #tpu.memory_space<semaphore_mem>> -> memref<!tpu.dma_semaphore, #tpu.memory_space<semaphore_mem>>
    tpu.wait_dma2 semaphore(%462 : memref<!tpu.dma_semaphore, #tpu.memory_space<semaphore_mem>>) src(%458 : memref<32xf32, #tpu.memory_space<any>>) dst(%460 : memref<32xf32, #tpu.memory_space<vmem>>)
    %c0_i32_289 = arith.constant 0 : i32
    %c14_i32_290 = arith.constant 14 : i32
    %c1_i32_291 = arith.constant 1 : i32
    %c0_i32_292 = arith.constant 0 : i32
    %463 = tpu.memref_slice %arg4[%c0_i32_289, %c0_i32_292] : memref<320x32xf32, #tpu.memory_space<any>> -> memref<1x32xf32, #tpu.memory_space<any>>
    %464 = tpu.memref_squeeze %463 : memref<1x32xf32, #tpu.memory_space<any>> -> memref<32xf32, #tpu.memory_space<any>>
    %c0_i32_293 = arith.constant 0 : i32
    %465 = tpu.memref_slice %arg8[%c14_i32_290, %c0_i32_293] : memref<16x32xf32, #tpu.memory_space<vmem>> -> memref<1x32xf32, #tpu.memory_space<vmem>>
    %466 = tpu.memref_squeeze %465 : memref<1x32xf32, #tpu.memory_space<vmem>> -> memref<32xf32, #tpu.memory_space<vmem>>
    %467 = tpu.memref_slice %arg9[%c1_i32_291] : memref<2x!tpu.dma_semaphore, #tpu.memory_space<semaphore_mem>> -> memref<1x!tpu.dma_semaphore, #tpu.memory_space<semaphore_mem>>
    %468 = tpu.memref_squeeze %467 : memref<1x!tpu.dma_semaphore, #tpu.memory_space<semaphore_mem>> -> memref<!tpu.dma_semaphore, #tpu.memory_space<semaphore_mem>>
    tpu.wait_dma2 semaphore(%468 : memref<!tpu.dma_semaphore, #tpu.memory_space<semaphore_mem>>) src(%464 : memref<32xf32, #tpu.memory_space<any>>) dst(%466 : memref<32xf32, #tpu.memory_space<vmem>>)
    %c0_i32_294 = arith.constant 0 : i32
    %c15_i32_295 = arith.constant 15 : i32
    %c0_i32_296 = arith.constant 0 : i32
    %c0_i32_297 = arith.constant 0 : i32
    %469 = tpu.memref_slice %arg3[%c0_i32_294, %c0_i32_297] : memref<256x32xf32, #tpu.memory_space<any>> -> memref<1x32xf32, #tpu.memory_space<any>>
    %470 = tpu.memref_squeeze %469 : memref<1x32xf32, #tpu.memory_space<any>> -> memref<32xf32, #tpu.memory_space<any>>
    %c0_i32_298 = arith.constant 0 : i32
    %471 = tpu.memref_slice %arg7[%c15_i32_295, %c0_i32_298] : memref<16x32xf32, #tpu.memory_space<vmem>> -> memref<1x32xf32, #tpu.memory_space<vmem>>
    %472 = tpu.memref_squeeze %471 : memref<1x32xf32, #tpu.memory_space<vmem>> -> memref<32xf32, #tpu.memory_space<vmem>>
    %473 = tpu.memref_slice %arg9[%c0_i32_296] : memref<2x!tpu.dma_semaphore, #tpu.memory_space<semaphore_mem>> -> memref<1x!tpu.dma_semaphore, #tpu.memory_space<semaphore_mem>>
    %474 = tpu.memref_squeeze %473 : memref<1x!tpu.dma_semaphore, #tpu.memory_space<semaphore_mem>> -> memref<!tpu.dma_semaphore, #tpu.memory_space<semaphore_mem>>
    tpu.wait_dma2 semaphore(%474 : memref<!tpu.dma_semaphore, #tpu.memory_space<semaphore_mem>>) src(%470 : memref<32xf32, #tpu.memory_space<any>>) dst(%472 : memref<32xf32, #tpu.memory_space<vmem>>)
    %c0_i32_299 = arith.constant 0 : i32
    %c15_i32_300 = arith.constant 15 : i32
    %c1_i32_301 = arith.constant 1 : i32
    %c0_i32_302 = arith.constant 0 : i32
    %475 = tpu.memref_slice %arg4[%c0_i32_299, %c0_i32_302] : memref<320x32xf32, #tpu.memory_space<any>> -> memref<1x32xf32, #tpu.memory_space<any>>
    %476 = tpu.memref_squeeze %475 : memref<1x32xf32, #tpu.memory_space<any>> -> memref<32xf32, #tpu.memory_space<any>>
    %c0_i32_303 = arith.constant 0 : i32
    %477 = tpu.memref_slice %arg8[%c15_i32_300, %c0_i32_303] : memref<16x32xf32, #tpu.memory_space<vmem>> -> memref<1x32xf32, #tpu.memory_space<vmem>>
    %478 = tpu.memref_squeeze %477 : memref<1x32xf32, #tpu.memory_space<vmem>> -> memref<32xf32, #tpu.memory_space<vmem>>
    %479 = tpu.memref_slice %arg9[%c1_i32_301] : memref<2x!tpu.dma_semaphore, #tpu.memory_space<semaphore_mem>> -> memref<1x!tpu.dma_semaphore, #tpu.memory_space<semaphore_mem>>
    %480 = tpu.memref_squeeze %479 : memref<1x!tpu.dma_semaphore, #tpu.memory_space<semaphore_mem>> -> memref<!tpu.dma_semaphore, #tpu.memory_space<semaphore_mem>>
    tpu.wait_dma2 semaphore(%480 : memref<!tpu.dma_semaphore, #tpu.memory_space<semaphore_mem>>) src(%476 : memref<32xf32, #tpu.memory_space<any>>) dst(%478 : memref<32xf32, #tpu.memory_space<vmem>>)
    %c0 = arith.constant 0 : index
    %c0_304 = arith.constant 0 : index
    %481 = vector.load %arg7[%c0, %c0_304] : memref<16x32xf32, #tpu.memory_space<vmem>>, vector<16x32xf32>
    %c0_305 = arith.constant 0 : index
    %c0_306 = arith.constant 0 : index
    %482 = vector.load %arg5[%c0_305, %c0_306] : memref<16x32xf32, #tpu.memory_space<vmem>>, vector<16x32xf32>
    tpu.vector_store %arg5[%c0_305, %c0_306], %481 {strides = array<i32>} : memref<16x32xf32, #tpu.memory_space<vmem>>, vector<16x32xf32>,
    %c0_307 = arith.constant 0 : index
    %c0_308 = arith.constant 0 : index
    %483 = vector.load %arg8[%c0_307, %c0_308] : memref<16x32xf32, #tpu.memory_space<vmem>>, vector<16x32xf32>
    %c0_309 = arith.constant 0 : index
    %c0_310 = arith.constant 0 : index
    %484 = vector.load %arg6[%c0_309, %c0_310] : memref<16x32xf32, #tpu.memory_space<vmem>>, vector<16x32xf32>
    tpu.vector_store %arg6[%c0_309, %c0_310], %483 {strides = array<i32>} : memref<16x32xf32, #tpu.memory_space<vmem>>, vector<16x32xf32>,
    return
  }
  func.func @transform_2(%arg0: i32, %arg1: memref<16xi32, #tpu.memory_space<smem>>, %arg2: memref<16xi32, #tpu.memory_space<smem>>) -> (i32, i32) {
    %c0_i32 = arith.constant 0 : i32
    %c0_i32_0 = arith.constant 0 : i32
    return %arg0, %c0_i32 : i32, i32
  }
  func.func @transform_3(%arg0: i32, %arg1: memref<16xi32, #tpu.memory_space<smem>>, %arg2: memref<16xi32, #tpu.memory_space<smem>>) -> (i32, i32) {
    %c0_i32 = arith.constant 0 : i32
    %c0_i32_0 = arith.constant 0 : i32
    return %arg0, %c0_i32 : i32, i32
  }
}

</mosaic_0001>

<llo_original>
// kernel: bme_embedding_forward.1
$region0: #{bme_embedding_forward.1}
  #allocation0 [shape = 'u32[]', space=smem, size = 0x4, offset = 0x4, fixed_abs, tag = 'smem constant byte address 0x4 - core index']
  #allocation1 [shape = 'u32[144,128]{1,0:T(1,128)}', space=vmem, size = 0x12000, scoped, tag = 'internal scratch']
  #allocation2 [shape = 'f32[16,32]{1,0:T(8,128)}', space=vmem, size = 0x2000, scoped, tag = 'scratch operand']
  #allocation3 [shape = 'f32[16,32]{1,0:T(8,128)}', space=vmem, size = 0x2000, scoped, tag = 'scratch operand']
  #allocation4 [shape = 's32[2]{0}', space=sflag, size = 0x8, scoped, tag = 'scratch operand']
  #allocation5 [shape = 's32[1]{0}', space=sflag, size = 0x4, scoped, tag = 'scoped memory for bme_embedding_forward.1']
  #allocation6 [shape = 'u8[512]{0}', space=smem, size = 0x200, scoped, tag = 'prefetched SMEM operand 0']
  #allocation7 [shape = 'u8[512]{0}', space=smem, size = 0x200, scoped, tag = 'prefetched SMEM operand 1']
  #allocation12 [shape = 's32[]', space=sflag, size = 0x4, offset = 0, fixed_abs, tag = 'sflag constant byte address 0x0 - dummy sync flag']
  #allocation13 [shape = 's32[]', space=sflag, size = 0x4, offset = 0, fixed_abs, tag = 'sflag constant byte address 0x0 - dummy sync flag']
  #allocation14 [shape = 's32[]', space=sflag, size = 0x4, offset = 0, fixed_abs, tag = 'sflag constant byte address 0x0 - dummy sync flag']
  #allocation15 [shape = 's32[]', space=sflag, size = 0x4, offset = 0, fixed_abs, tag = 'sflag constant byte address 0x0 - dummy sync flag']
  #allocation16 [shape = 's32[]', space=sflag, size = 0x4, offset = 0, fixed_abs, tag = 'sflag constant byte address 0x0 - dummy sync flag']
  #allocation17 [shape = 's32[]', space=sflag, size = 0x4, offset = 0, fixed_abs, tag = 'sflag constant byte address 0x0 - dummy sync flag']
  #allocation18 [shape = 's32[]', space=sflag, size = 0x4, offset = 0, fixed_abs, tag = 'sflag constant byte address 0x0 - dummy sync flag']
  #allocation19 [shape = 's32[]', space=sflag, size = 0x4, offset = 0, fixed_abs, tag = 'sflag constant byte address 0x0 - dummy sync flag']
  #allocation20 [shape = 's32[]', space=sflag, size = 0x4, offset = 0, fixed_abs, tag = 'sflag constant byte address 0x0 - dummy sync flag']
  #allocation21 [shape = 's32[]', space=sflag, size = 0x4, offset = 0, fixed_abs, tag = 'sflag constant byte address 0x0 - dummy sync flag']
  #allocation22 [shape = 's32[]', space=sflag, size = 0x4, offset = 0, fixed_abs, tag = 'sflag constant byte address 0x0 - dummy sync flag']
  #allocation23 [shape = 's32[]', space=sflag, size = 0x4, offset = 0, fixed_abs, tag = 'sflag constant byte address 0x0 - dummy sync flag']
  #allocation24 [shape = 's32[]', space=sflag, size = 0x4, offset = 0, fixed_abs, tag = 'sflag constant byte address 0x0 - dummy sync flag']
  #allocation25 [shape = 's32[]', space=sflag, size = 0x4, offset = 0, fixed_abs, tag = 'sflag constant byte address 0x0 - dummy sync flag']
  #allocation26 [shape = 's32[]', space=sflag, size = 0x4, offset = 0, fixed_abs, tag = 'sflag constant byte address 0x0 - dummy sync flag']
  #allocation27 [shape = 's32[]', space=sflag, size = 0x4, offset = 0, fixed_abs, tag = 'sflag constant byte address 0x0 - dummy sync flag']
  #allocation28 [shape = 's32[]', space=sflag, size = 0x4, offset = 0, fixed_abs, tag = 'sflag constant byte address 0x0 - dummy sync flag']
  #allocation29 [shape = 's32[]', space=sflag, size = 0x4, offset = 0, fixed_abs, tag = 'sflag constant byte address 0x0 - dummy sync flag']
  #allocation30 [shape = 's32[]', space=sflag, size = 0x4, offset = 0, fixed_abs, tag = 'sflag constant byte address 0x0 - dummy sync flag']
  #allocation31 [shape = 's32[]', space=sflag, size = 0x4, offset = 0, fixed_abs, tag = 'sflag constant byte address 0x0 - dummy sync flag']
  #allocation32 [shape = 's32[]', space=sflag, size = 0x4, offset = 0, fixed_abs, tag = 'sflag constant byte address 0x0 - dummy sync flag']
  #allocation33 [shape = 's32[]', space=sflag, size = 0x4, offset = 0, fixed_abs, tag = 'sflag constant byte address 0x0 - dummy sync flag']
  #allocation34 [shape = 's32[]', space=sflag, size = 0x4, offset = 0, fixed_abs, tag = 'sflag constant byte address 0x0 - dummy sync flag']
  #allocation35 [shape = 's32[]', space=sflag, size = 0x4, offset = 0, fixed_abs, tag = 'sflag constant byte address 0x0 - dummy sync flag']
  #allocation36 [shape = 's32[]', space=sflag, size = 0x4, offset = 0, fixed_abs, tag = 'sflag constant byte address 0x0 - dummy sync flag']
  #allocation37 [shape = 's32[]', space=sflag, size = 0x4, offset = 0, fixed_abs, tag = 'sflag constant byte address 0x0 - dummy sync flag']
  #allocation38 [shape = 's32[]', space=sflag, size = 0x4, offset = 0, fixed_abs, tag = 'sflag constant byte address 0x0 - dummy sync flag']
  #allocation39 [shape = 's32[]', space=sflag, size = 0x4, offset = 0, fixed_abs, tag = 'sflag constant byte address 0x0 - dummy sync flag']
  #allocation40 [shape = 's32[]', space=sflag, size = 0x4, offset = 0, fixed_abs, tag = 'sflag constant byte address 0x0 - dummy sync flag']
  #allocation41 [shape = 's32[]', space=sflag, size = 0x4, offset = 0, fixed_abs, tag = 'sflag constant byte address 0x0 - dummy sync flag']
  #allocation42 [shape = 's32[]', space=sflag, size = 0x4, offset = 0, fixed_abs, tag = 'sflag constant byte address 0x0 - dummy sync flag']
  #allocation43 [shape = 's32[]', space=sflag, size = 0x4, offset = 0, fixed_abs, tag = 'sflag constant byte address 0x0 - dummy sync flag']
  %s0 = inlined_call_operand.vmem [shape: s32[16], index: 0, kind: input, shape index: {}]
  %s1 = inlined_call_operand.vmem [shape: s32[16], index: 1, kind: input, shape index: {}]
  %s2 = inlined_call_operand.vmem [shape: f32[256,32], index: 2, kind: input, shape index: {}]
  %s3 = inlined_call_operand.vmem [shape: f32[320,32], index: 3, kind: input, shape index: {}]
  %s4 = inlined_call_operand.hbm [shape: f32[16,32], index: 4, kind: output, shape index: {0}]
  %s5 = inlined_call_operand.hbm [shape: f32[16,32], index: 5, kind: output, shape index: {1}]
  %6 = xla_tuple %s4, %s5
  %s7 = sld [smem:[#allocation0]]
  $region978: #{bme_embedding_forward.1} parent=0
    _
  %s9 = ssub.s32 1, %s7
  %s10 = scalar_select 0, %s9, %s7
  %s11 = sshll.u32 %s0, 4
  %s12 = int_to_ptr.vmem [resolvable:$true] %s11
  %14 = dma.vmem_to_smem %s12, 16, [#allocation6], [#allocation5]
  %s15 = sshll.u32 %s1, 4
  %s16 = int_to_ptr.vmem [resolvable:$true] %s15
  %18 = dma.vmem_to_smem %s16, 16, [#allocation7], [#allocation5]
  %19 = dma.done [#allocation5], 32
  %20 = sfence
  $region1: #{bme_embedding_forward.1} parent=0
    #allocation8 [shape = 'u8[8192]{0}', space=vmem, size = 0x2000, scoped, tag = 'output window, operand 0, single buffered']
    #allocation9 [shape = 's32[1]{0}', space=sflag, size = 0x4, scoped, tag = 'scoped memory for bme_embedding_forward.1']
    #allocation10 [shape = 'u8[8192]{0}', space=vmem, size = 0x2000, scoped, tag = 'output window, operand 1, single buffered']
    #allocation11 [shape = 's32[1]{0}', space=sflag, size = 0x4, scoped, tag = 'scoped memory for bme_embedding_forward.1']
    %21 = vsyncpa [#allocation9], 0
    %22 = vsyncpa [#allocation11], 0
    %s23 = smul.u32 0, 16
    %s24 = sld [smem:[#allocation6 + %s23]]
    %s25 = scalar_lea.vmem %s2, %s24
    %p27 = scmp.lt.u32.totalorder 1, 8
    %p28 = pneg %p27
    // Predicated region
    $region2: #{bme_embedding_forward.1} parent=1 // pred_check
      _
    $region3: #{bme_embedding_forward.1} parent=1 // pred_check_branch
      %30 = sbr.rel (%p27) target = $region5
    $region4: #{bme_embedding_forward.1} parent=1 // pred_region
      %s46 = sand.u32 1, 7
      %p47 = scmp.eq.s32.totalorder %s46, 0
      %p48 = pneg %p47
      // Predicated region
      $region17: #{bme_embedding_forward.1} parent=4 // pred_check
        _
      $region18: #{bme_embedding_forward.1} parent=4 // pred_check_branch
        %50 = sbr.rel (%p47) target = $region20
      $region19: #{bme_embedding_forward.1} parent=4 // pred_region
        %s51 = sand.u32 1, 7
        %s52 = ssub.s32 1, %s51
        %s53 = scalar_lea.vmem %s25, %s52
        %s54 = ssub.s32 1, %s51
        %s55 = scalar_lea.vmem [#allocation2], %s54
        %s56 = sshll.u32 1, %s51
        %s57 = ssub.s32 %s56, 1
        loop: start=0, step=1, limit=1
        $region21: #{bme_embedding_forward.1} parent=19 // loop_pre_header
          _
        $region22: #{bme_embedding_forward.1} parent=19 // loop_header
          %s59 = sphi 0, %s63
          %p60 = scmp.ge.s32.totalorder %s59, 1
          %s64 = sphi %s53, %s53
          %s65 = sphi %s55, %s55
        $region23: #{bme_embedding_forward.1} parent=19 // loop_header_branch
          %62 = sbr.rel (%p60) target = $region27
        $region24: #{bme_embedding_forward.1} parent=19 // loop_body
          %v66 = vld [vmem:[%s64] sm:%s57]
          %67 = vst [vmem:[%s65] sm:%s57] %v66
        $region25: #{bme_embedding_forward.1} parent=19 // loop_footer
          %s63 = sadd.s32 1, %s59
        $region26: #{bme_embedding_forward.1} parent=19 // loop_footer_branch
          %58 = sbr.rel target = $region22
        $region27: #{bme_embedding_forward.1} parent=19 // loop_exit
          _
      $region20: #{bme_embedding_forward.1} parent=4 // pred_fallthru
        _
    $region5: #{bme_embedding_forward.1} parent=1 // pred_fallthru
      _
    // Predicated region
    $region6: #{bme_embedding_forward.1} parent=1 // pred_check
      %p31 = pneg %p27
    $region7: #{bme_embedding_forward.1} parent=1 // pred_check_branch
      %33 = sbr.rel (%p31) target = $region9
    $region8: #{bme_embedding_forward.1} parent=1 // pred_region
      %s34 = sshll.u32 1, 1
      %s35 = ssub.s32 %s34, 1
      loop: start=0, step=1, limit=1
      $region10: #{bme_embedding_forward.1} parent=8 // loop_pre_header
        _
      $region11: #{bme_embedding_forward.1} parent=8 // loop_header
        %s37 = sphi 0, %s41
        %p38 = scmp.ge.s32.totalorder %s37, 1
        %s42 = sphi %s25, %s25
        %s43 = sphi [#allocation2], [#allocation2]
      $region12: #{bme_embedding_forward.1} parent=8 // loop_header_branch
        %40 = sbr.rel (%p38) target = $region16
      $region13: #{bme_embedding_forward.1} parent=8 // loop_body
        %v44 = vld [vmem:[%s42] sm:%s35]
        %45 = vst [vmem:[%s43] sm:%s35] %v44
      $region14: #{bme_embedding_forward.1} parent=8 // loop_footer
        %s41 = sadd.s32 1, %s37
      $region15: #{bme_embedding_forward.1} parent=8 // loop_footer_branch
        %36 = sbr.rel target = $region11
      $region16: #{bme_embedding_forward.1} parent=8 // loop_exit
        _
    $region9: #{bme_embedding_forward.1} parent=1 // pred_fallthru
      _
    // Predicated region
    $region28: #{bme_embedding_forward.1} parent=1 // pred_check
      _
    $region29: #{bme_embedding_forward.1} parent=1 // pred_check_branch
      %70 = sbr.rel (0) target = $region31
    $region30: #{bme_embedding_forward.1} parent=1 // pred_region
      %71 = vsyncadd [#allocation4], 16
    $region31: #{bme_embedding_forward.1} parent=1 // pred_fallthru
      _
    %s72 = sld [smem:[#allocation7 + %s23]]
    %s73 = scalar_lea.vmem %s3, %s72
    %s74 = scalar_lea.sflag [#allocation4], 1
    %p76 = scmp.lt.u32.totalorder 1, 8
    %p77 = pneg %p76
    // Predicated region
    $region32: #{bme_embedding_forward.1} parent=1 // pred_check
      _
    $region33: #{bme_embedding_forward.1} parent=1 // pred_check_branch
      %79 = sbr.rel (%p76) target = $region35
    $region34: #{bme_embedding_forward.1} parent=1 // pred_region
      %s95 = sand.u32 1, 7
      %p96 = scmp.eq.s32.totalorder %s95, 0
      %p97 = pneg %p96
      // Predicated region
      $region47: #{bme_embedding_forward.1} parent=34 // pred_check
        _
      $region48: #{bme_embedding_forward.1} parent=34 // pred_check_branch
        %99 = sbr.rel (%p96) target = $region50
      $region49: #{bme_embedding_forward.1} parent=34 // pred_region
        %s100 = sand.u32 1, 7
        %s101 = ssub.s32 1, %s100
        %s102 = scalar_lea.vmem %s73, %s101
        %s103 = ssub.s32 1, %s100
        %s104 = scalar_lea.vmem [#allocation3], %s103
        %s105 = sshll.u32 1, %s100
        %s106 = ssub.s32 %s105, 1
        loop: start=0, step=1, limit=1
        $region51: #{bme_embedding_forward.1} parent=49 // loop_pre_header
          _
        $region52: #{bme_embedding_forward.1} parent=49 // loop_header
          %s108 = sphi 0, %s112
          %p109 = scmp.ge.s32.totalorder %s108, 1
          %s113 = sphi %s102, %s102
          %s114 = sphi %s104, %s104
        $region53: #{bme_embedding_forward.1} parent=49 // loop_header_branch
          %111 = sbr.rel (%p109) target = $region57
        $region54: #{bme_embedding_forward.1} parent=49 // loop_body
          %v115 = vld [vmem:[%s113] sm:%s106]
          %116 = vst [vmem:[%s114] sm:%s106] %v115
        $region55: #{bme_embedding_forward.1} parent=49 // loop_footer
          %s112 = sadd.s32 1, %s108
        $region56: #{bme_embedding_forward.1} parent=49 // loop_footer_branch
          %107 = sbr.rel target = $region52
        $region57: #{bme_embedding_forward.1} parent=49 // loop_exit
          _
      $region50: #{bme_embedding_forward.1} parent=34 // pred_fallthru
        _
    $region35: #{bme_embedding_forward.1} parent=1 // pred_fallthru
      _
    // Predicated region
    $region36: #{bme_embedding_forward.1} parent=1 // pred_check
      %p80 = pneg %p76
    $region37: #{bme_embedding_forward.1} parent=1 // pred_check_branch
      %82 = sbr.rel (%p80) target = $region39
    $region38: #{bme_embedding_forward.1} parent=1 // pred_region
      %s83 = sshll.u32 1, 1
      %s84 = ssub.s32 %s83, 1
      loop: start=0, step=1, limit=1
      $region40: #{bme_embedding_forward.1} parent=38 // loop_pre_header
        _
      $region41: #{bme_embedding_forward.1} parent=38 // loop_header
        %s86 = sphi 0, %s90
        %p87 = scmp.ge.s32.totalorder %s86, 1
        %s91 = sphi %s73, %s73
        %s92 = sphi [#allocation3], [#allocation3]
      $region42: #{bme_embedding_forward.1} parent=38 // loop_header_branch
        %89 = sbr.rel (%p87) target = $region46
      $region43: #{bme_embedding_forward.1} parent=38 // loop_body
        %v93 = vld [vmem:[%s91] sm:%s84]
        %94 = vst [vmem:[%s92] sm:%s84] %v93
      $region44: #{bme_embedding_forward.1} parent=38 // loop_footer
        %s90 = sadd.s32 1, %s86
      $region45: #{bme_embedding_forward.1} parent=38 // loop_footer_branch
        %85 = sbr.rel target = $region41
      $region46: #{bme_embedding_forward.1} parent=38 // loop_exit
        _
    $region39: #{bme_embedding_forward.1} parent=1 // pred_fallthru
      _
    // Predicated region
    $region58: #{bme_embedding_forward.1} parent=1 // pred_check
      _
    $region59: #{bme_embedding_forward.1} parent=1 // pred_check_branch
      %119 = sbr.rel (0) target = $region61
    $region60: #{bme_embedding_forward.1} parent=1 // pred_region
      %120 = vsyncadd %s74, 16
    $region61: #{bme_embedding_forward.1} parent=1 // pred_fallthru
      _
    %s121 = sadd.s32 %s23, 1
    %s122 = sld [smem:[#allocation6 + %s121]]
    %s123 = scalar_lea.vmem %s2, %s122
    %s124 = scalar_lea.vmem [#allocation2], 1
    %p126 = scmp.lt.u32.totalorder 1, 8
    %p127 = pneg %p126
    // Predicated region
    $region62: #{bme_embedding_forward.1} parent=1 // pred_check
      _
    $region63: #{bme_embedding_forward.1} parent=1 // pred_check_branch
      %129 = sbr.rel (%p126) target = $region65
    $region64: #{bme_embedding_forward.1} parent=1 // pred_region
      %s145 = sand.u32 1, 7
      %p146 = scmp.eq.s32.totalorder %s145, 0
      %p147 = pneg %p146
      // Predicated region
      $region77: #{bme_embedding_forward.1} parent=64 // pred_check
        _
      $region78: #{bme_embedding_forward.1} parent=64 // pred_check_branch
        %149 = sbr.rel (%p146) target = $region80
      $region79: #{bme_embedding_forward.1} parent=64 // pred_region
        %s150 = sand.u32 1, 7
        %s151 = ssub.s32 1, %s150
        %s152 = scalar_lea.vmem %s123, %s151
        %s153 = ssub.s32 1, %s150
        %s154 = scalar_lea.vmem %s124, %s153 [#allocation2]
        %s155 = sshll.u32 1, %s150
        %s156 = ssub.s32 %s155, 1
        loop: start=0, step=1, limit=1
        $region81: #{bme_embedding_forward.1} parent=79 // loop_pre_header
          _
        $region82: #{bme_embedding_forward.1} parent=79 // loop_header
          %s158 = sphi 0, %s162
          %p159 = scmp.ge.s32.totalorder %s158, 1
          %s163 = sphi %s152, %s152
          %s164 = sphi %s154, %s154
        $region83: #{bme_embedding_forward.1} parent=79 // loop_header_branch
          %161 = sbr.rel (%p159) target = $region87
        $region84: #{bme_embedding_forward.1} parent=79 // loop_body
          %v165 = vld [vmem:[%s163] sm:%s156]
          %166 = vst [vmem:[%s164] sm:%s156] %v165
        $region85: #{bme_embedding_forward.1} parent=79 // loop_footer
          %s162 = sadd.s32 1, %s158
        $region86: #{bme_embedding_forward.1} parent=79 // loop_footer_branch
          %157 = sbr.rel target = $region82
        $region87: #{bme_embedding_forward.1} parent=79 // loop_exit
          _
      $region80: #{bme_embedding_forward.1} parent=64 // pred_fallthru
        _
    $region65: #{bme_embedding_forward.1} parent=1 // pred_fallthru
      _
    // Predicated region
    $region66: #{bme_embedding_forward.1} parent=1 // pred_check
      %p130 = pneg %p126
    $region67: #{bme_embedding_forward.1} parent=1 // pred_check_branch
      %132 = sbr.rel (%p130) target = $region69
    $region68: #{bme_embedding_forward.1} parent=1 // pred_region
      %s133 = sshll.u32 1, 1
      %s134 = ssub.s32 %s133, 1
      loop: start=0, step=1, limit=1
      $region70: #{bme_embedding_forward.1} parent=68 // loop_pre_header
        _
      $region71: #{bme_embedding_forward.1} parent=68 // loop_header
        %s136 = sphi 0, %s140
        %p137 = scmp.ge.s32.totalorder %s136, 1
        %s141 = sphi %s123, %s123
        %s142 = sphi %s124, %s124
      $region72: #{bme_embedding_forward.1} parent=68 // loop_header_branch
        %139 = sbr.rel (%p137) target = $region76
      $region73: #{bme_embedding_forward.1} parent=68 // loop_body
        %v143 = vld [vmem:[%s141] sm:%s134]
        %144 = vst [vmem:[%s142] sm:%s134] %v143
      $region74: #{bme_embedding_forward.1} parent=68 // loop_footer
        %s140 = sadd.s32 1, %s136
      $region75: #{bme_embedding_forward.1} parent=68 // loop_footer_branch
        %135 = sbr.rel target = $region71
      $region76: #{bme_embedding_forward.1} parent=68 // loop_exit
        _
    $region69: #{bme_embedding_forward.1} parent=1 // pred_fallthru
      _
    // Predicated region
    $region88: #{bme_embedding_forward.1} parent=1 // pred_check
      _
    $region89: #{bme_embedding_forward.1} parent=1 // pred_check_branch
      %169 = sbr.rel (0) target = $region91
    $region90: #{bme_embedding_forward.1} parent=1 // pred_region
      %170 = vsyncadd [#allocation4], 16
    $region91: #{bme_embedding_forward.1} parent=1 // pred_fallthru
      _
    %s171 = sld [smem:[#allocation7 + %s121]]
    %s172 = scalar_lea.vmem %s3, %s171
    %s173 = scalar_lea.vmem [#allocation3], 1
    %p175 = scmp.lt.u32.totalorder 1, 8
    %p176 = pneg %p175
    // Predicated region
    $region92: #{bme_embedding_forward.1} parent=1 // pred_check
      _
    $region93: #{bme_embedding_forward.1} parent=1 // pred_check_branch
      %178 = sbr.rel (%p175) target = $region95
    $region94: #{bme_embedding_forward.1} parent=1 // pred_region
      %s194 = sand.u32 1, 7
      %p195 = scmp.eq.s32.totalorder %s194, 0
      %p196 = pneg %p195
      // Predicated region
      $region107: #{bme_embedding_forward.1} parent=94 // pred_check
        _
      $region108: #{bme_embedding_forward.1} parent=94 // pred_check_branch
        %198 = sbr.rel (%p195) target = $region110
      $region109: #{bme_embedding_forward.1} parent=94 // pred_region
        %s199 = sand.u32 1, 7
        %s200 = ssub.s32 1, %s199
        %s201 = scalar_lea.vmem %s172, %s200
        %s202 = ssub.s32 1, %s199
        %s203 = scalar_lea.vmem %s173, %s202 [#allocation3]
        %s204 = sshll.u32 1, %s199
        %s205 = ssub.s32 %s204, 1
        loop: start=0, step=1, limit=1
        $region111: #{bme_embedding_forward.1} parent=109 // loop_pre_header
          _
        $region112: #{bme_embedding_forward.1} parent=109 // loop_header
          %s207 = sphi 0, %s211
          %p208 = scmp.ge.s32.totalorder %s207, 1
          %s212 = sphi %s201, %s201
          %s213 = sphi %s203, %s203
        $region113: #{bme_embedding_forward.1} parent=109 // loop_header_branch
          %210 = sbr.rel (%p208) target = $region117
        $region114: #{bme_embedding_forward.1} parent=109 // loop_body
          %v214 = vld [vmem:[%s212] sm:%s205]
          %215 = vst [vmem:[%s213] sm:%s205] %v214
        $region115: #{bme_embedding_forward.1} parent=109 // loop_footer
          %s211 = sadd.s32 1, %s207
        $region116: #{bme_embedding_forward.1} parent=109 // loop_footer_branch
          %206 = sbr.rel target = $region112
        $region117: #{bme_embedding_forward.1} parent=109 // loop_exit
          _
      $region110: #{bme_embedding_forward.1} parent=94 // pred_fallthru
        _
    $region95: #{bme_embedding_forward.1} parent=1 // pred_fallthru
      _
    // Predicated region
    $region96: #{bme_embedding_forward.1} parent=1 // pred_check
      %p179 = pneg %p175
    $region97: #{bme_embedding_forward.1} parent=1 // pred_check_branch
      %181 = sbr.rel (%p179) target = $region99
    $region98: #{bme_embedding_forward.1} parent=1 // pred_region
      %s182 = sshll.u32 1, 1
      %s183 = ssub.s32 %s182, 1
      loop: start=0, step=1, limit=1
      $region100: #{bme_embedding_forward.1} parent=98 // loop_pre_header
        _
      $region101: #{bme_embedding_forward.1} parent=98 // loop_header
        %s185 = sphi 0, %s189
        %p186 = scmp.ge.s32.totalorder %s185, 1
        %s190 = sphi %s172, %s172
        %s191 = sphi %s173, %s173
      $region102: #{bme_embedding_forward.1} parent=98 // loop_header_branch
        %188 = sbr.rel (%p186) target = $region106
      $region103: #{bme_embedding_forward.1} parent=98 // loop_body
        %v192 = vld [vmem:[%s190] sm:%s183]
        %193 = vst [vmem:[%s191] sm:%s183] %v192
      $region104: #{bme_embedding_forward.1} parent=98 // loop_footer
        %s189 = sadd.s32 1, %s185
      $region105: #{bme_embedding_forward.1} parent=98 // loop_footer_branch
        %184 = sbr.rel target = $region101
      $region106: #{bme_embedding_forward.1} parent=98 // loop_exit
        _
    $region99: #{bme_embedding_forward.1} parent=1 // pred_fallthru
      _
    // Predicated region
    $region118: #{bme_embedding_forward.1} parent=1 // pred_check
      _
    $region119: #{bme_embedding_forward.1} parent=1 // pred_check_branch
      %218 = sbr.rel (0) target = $region121
    $region120: #{bme_embedding_forward.1} parent=1 // pred_region
      %219 = vsyncadd %s74, 16
    $region121: #{bme_embedding_forward.1} parent=1 // pred_fallthru
      _
    %s220 = sadd.s32 %s23, 2
    %s221 = sld [smem:[#allocation6 + %s220]]
    %s222 = scalar_lea.vmem %s2, %s221
    %s223 = scalar_lea.vmem [#allocation2], 2
    %p225 = scmp.lt.u32.totalorder 1, 8
    %p226 = pneg %p225
    // Predicated region
    $region122: #{bme_embedding_forward.1} parent=1 // pred_check
      _
    $region123: #{bme_embedding_forward.1} parent=1 // pred_check_branch
      %228 = sbr.rel (%p225) target = $region125
    $region124: #{bme_embedding_forward.1} parent=1 // pred_region
      %s244 = sand.u32 1, 7
      %p245 = scmp.eq.s32.totalorder %s244, 0
      %p246 = pneg %p245
      // Predicated region
      $region137: #{bme_embedding_forward.1} parent=124 // pred_check
        _
      $region138: #{bme_embedding_forward.1} parent=124 // pred_check_branch
        %248 = sbr.rel (%p245) target = $region140
      $region139: #{bme_embedding_forward.1} parent=124 // pred_region
        %s249 = sand.u32 1, 7
        %s250 = ssub.s32 1, %s249
        %s251 = scalar_lea.vmem %s222, %s250
        %s252 = ssub.s32 1, %s249
        %s253 = scalar_lea.vmem %s223, %s252 [#allocation2]
        %s254 = sshll.u32 1, %s249
        %s255 = ssub.s32 %s254, 1
        loop: start=0, step=1, limit=1
        $region141: #{bme_embedding_forward.1} parent=139 // loop_pre_header
          _
        $region142: #{bme_embedding_forward.1} parent=139 // loop_header
          %s257 = sphi 0, %s261
          %p258 = scmp.ge.s32.totalorder %s257, 1
          %s262 = sphi %s251, %s251
          %s263 = sphi %s253, %s253
        $region143: #{bme_embedding_forward.1} parent=139 // loop_header_branch
          %260 = sbr.rel (%p258) target = $region147
        $region144: #{bme_embedding_forward.1} parent=139 // loop_body
          %v264 = vld [vmem:[%s262] sm:%s255]
          %265 = vst [vmem:[%s263] sm:%s255] %v264
        $region145: #{bme_embedding_forward.1} parent=139 // loop_footer
          %s261 = sadd.s32 1, %s257
        $region146: #{bme_embedding_forward.1} parent=139 // loop_footer_branch
          %256 = sbr.rel target = $region142
        $region147: #{bme_embedding_forward.1} parent=139 // loop_exit
          _
      $region140: #{bme_embedding_forward.1} parent=124 // pred_fallthru
        _
    $region125: #{bme_embedding_forward.1} parent=1 // pred_fallthru
      _
    // Predicated region
    $region126: #{bme_embedding_forward.1} parent=1 // pred_check
      %p229 = pneg %p225
    $region127: #{bme_embedding_forward.1} parent=1 // pred_check_branch
      %231 = sbr.rel (%p229) target = $region129
    $region128: #{bme_embedding_forward.1} parent=1 // pred_region
      %s232 = sshll.u32 1, 1
      %s233 = ssub.s32 %s232, 1
      loop: start=0, step=1, limit=1
      $region130: #{bme_embedding_forward.1} parent=128 // loop_pre_header
        _
      $region131: #{bme_embedding_forward.1} parent=128 // loop_header
        %s235 = sphi 0, %s239
        %p236 = scmp.ge.s32.totalorder %s235, 1
        %s240 = sphi %s222, %s222
        %s241 = sphi %s223, %s223
      $region132: #{bme_embedding_forward.1} parent=128 // loop_header_branch
        %238 = sbr.rel (%p236) target = $region136
      $region133: #{bme_embedding_forward.1} parent=128 // loop_body
        %v242 = vld [vmem:[%s240] sm:%s233]
        %243 = vst [vmem:[%s241] sm:%s233] %v242
      $region134: #{bme_embedding_forward.1} parent=128 // loop_footer
        %s239 = sadd.s32 1, %s235
      $region135: #{bme_embedding_forward.1} parent=128 // loop_footer_branch
        %234 = sbr.rel target = $region131
      $region136: #{bme_embedding_forward.1} parent=128 // loop_exit
        _
    $region129: #{bme_embedding_forward.1} parent=1 // pred_fallthru
      _
    // Predicated region
    $region148: #{bme_embedding_forward.1} parent=1 // pred_check
      _
    $region149: #{bme_embedding_forward.1} parent=1 // pred_check_branch
      %268 = sbr.rel (0) target = $region151
    $region150: #{bme_embedding_forward.1} parent=1 // pred_region
      %269 = vsyncadd [#allocation4], 16
    $region151: #{bme_embedding_forward.1} parent=1 // pred_fallthru
      _
    %s270 = sld [smem:[#allocation7 + %s220]]
    %s271 = scalar_lea.vmem %s3, %s270
    %s272 = scalar_lea.vmem [#allocation3], 2
    %p274 = scmp.lt.u32.totalorder 1, 8
    %p275 = pneg %p274
    // Predicated region
    $region152: #{bme_embedding_forward.1} parent=1 // pred_check
      _
    $region153: #{bme_embedding_forward.1} parent=1 // pred_check_branch
      %277 = sbr.rel (%p274) target = $region155
    $region154: #{bme_embedding_forward.1} parent=1 // pred_region
      %s293 = sand.u32 1, 7
      %p294 = scmp.eq.s32.totalorder %s293, 0
      %p295 = pneg %p294
      // Predicated region
      $region167: #{bme_embedding_forward.1} parent=154 // pred_check
        _
      $region168: #{bme_embedding_forward.1} parent=154 // pred_check_branch
        %297 = sbr.rel (%p294) target = $region170
      $region169: #{bme_embedding_forward.1} parent=154 // pred_region
        %s298 = sand.u32 1, 7
        %s299 = ssub.s32 1, %s298
        %s300 = scalar_lea.vmem %s271, %s299
        %s301 = ssub.s32 1, %s298
        %s302 = scalar_lea.vmem %s272, %s301 [#allocation3]
        %s303 = sshll.u32 1, %s298
        %s304 = ssub.s32 %s303, 1
        loop: start=0, step=1, limit=1
        $region171: #{bme_embedding_forward.1} parent=169 // loop_pre_header
          _
        $region172: #{bme_embedding_forward.1} parent=169 // loop_header
          %s306 = sphi 0, %s310
          %p307 = scmp.ge.s32.totalorder %s306, 1
          %s311 = sphi %s300, %s300
          %s312 = sphi %s302, %s302
        $region173: #{bme_embedding_forward.1} parent=169 // loop_header_branch
          %309 = sbr.rel (%p307) target = $region177
        $region174: #{bme_embedding_forward.1} parent=169 // loop_body
          %v313 = vld [vmem:[%s311] sm:%s304]
          %314 = vst [vmem:[%s312] sm:%s304] %v313
        $region175: #{bme_embedding_forward.1} parent=169 // loop_footer
          %s310 = sadd.s32 1, %s306
        $region176: #{bme_embedding_forward.1} parent=169 // loop_footer_branch
          %305 = sbr.rel target = $region172
        $region177: #{bme_embedding_forward.1} parent=169 // loop_exit
          _
      $region170: #{bme_embedding_forward.1} parent=154 // pred_fallthru
        _
    $region155: #{bme_embedding_forward.1} parent=1 // pred_fallthru
      _
    // Predicated region
    $region156: #{bme_embedding_forward.1} parent=1 // pred_check
      %p278 = pneg %p274
    $region157: #{bme_embedding_forward.1} parent=1 // pred_check_branch
      %280 = sbr.rel (%p278) target = $region159
    $region158: #{bme_embedding_forward.1} parent=1 // pred_region
      %s281 = sshll.u32 1, 1
      %s282 = ssub.s32 %s281, 1
      loop: start=0, step=1, limit=1
      $region160: #{bme_embedding_forward.1} parent=158 // loop_pre_header
        _
      $region161: #{bme_embedding_forward.1} parent=158 // loop_header
        %s284 = sphi 0, %s288
        %p285 = scmp.ge.s32.totalorder %s284, 1
        %s289 = sphi %s271, %s271
        %s290 = sphi %s272, %s272
      $region162: #{bme_embedding_forward.1} parent=158 // loop_header_branch
        %287 = sbr.rel (%p285) target = $region166
      $region163: #{bme_embedding_forward.1} parent=158 // loop_body
        %v291 = vld [vmem:[%s289] sm:%s282]
        %292 = vst [vmem:[%s290] sm:%s282] %v291
      $region164: #{bme_embedding_forward.1} parent=158 // loop_footer
        %s288 = sadd.s32 1, %s284
      $region165: #{bme_embedding_forward.1} parent=158 // loop_footer_branch
        %283 = sbr.rel target = $region161
      $region166: #{bme_embedding_forward.1} parent=158 // loop_exit
        _
    $region159: #{bme_embedding_forward.1} parent=1 // pred_fallthru
      _
    // Predicated region
    $region178: #{bme_embedding_forward.1} parent=1 // pred_check
      _
    $region179: #{bme_embedding_forward.1} parent=1 // pred_check_branch
      %317 = sbr.rel (0) target = $region181
    $region180: #{bme_embedding_forward.1} parent=1 // pred_region
      %318 = vsyncadd %s74, 16
    $region181: #{bme_embedding_forward.1} parent=1 // pred_fallthru
      _
    %s319 = sadd.s32 %s23, 3
    %s320 = sld [smem:[#allocation6 + %s319]]
    %s321 = scalar_lea.vmem %s2, %s320
    %s322 = scalar_lea.vmem [#allocation2], 3
    %p324 = scmp.lt.u32.totalorder 1, 8
    %p325 = pneg %p324
    // Predicated region
    $region182: #{bme_embedding_forward.1} parent=1 // pred_check
      _
    $region183: #{bme_embedding_forward.1} parent=1 // pred_check_branch
      %327 = sbr.rel (%p324) target = $region185
    $region184: #{bme_embedding_forward.1} parent=1 // pred_region
      %s343 = sand.u32 1, 7
      %p344 = scmp.eq.s32.totalorder %s343, 0
      %p345 = pneg %p344
      // Predicated region
      $region197: #{bme_embedding_forward.1} parent=184 // pred_check
        _
      $region198: #{bme_embedding_forward.1} parent=184 // pred_check_branch
        %347 = sbr.rel (%p344) target = $region200
      $region199: #{bme_embedding_forward.1} parent=184 // pred_region
        %s348 = sand.u32 1, 7
        %s349 = ssub.s32 1, %s348
        %s350 = scalar_lea.vmem %s321, %s349
        %s351 = ssub.s32 1, %s348
        %s352 = scalar_lea.vmem %s322, %s351 [#allocation2]
        %s353 = sshll.u32 1, %s348
        %s354 = ssub.s32 %s353, 1
        loop: start=0, step=1, limit=1
        $region201: #{bme_embedding_forward.1} parent=199 // loop_pre_header
          _
        $region202: #{bme_embedding_forward.1} parent=199 // loop_header
          %s356 = sphi 0, %s360
          %p357 = scmp.ge.s32.totalorder %s356, 1
          %s361 = sphi %s350, %s350
          %s362 = sphi %s352, %s352
        $region203: #{bme_embedding_forward.1} parent=199 // loop_header_branch
          %359 = sbr.rel (%p357) target = $region207
        $region204: #{bme_embedding_forward.1} parent=199 // loop_body
          %v363 = vld [vmem:[%s361] sm:%s354]
          %364 = vst [vmem:[%s362] sm:%s354] %v363
        $region205: #{bme_embedding_forward.1} parent=199 // loop_footer
          %s360 = sadd.s32 1, %s356
        $region206: #{bme_embedding_forward.1} parent=199 // loop_footer_branch
          %355 = sbr.rel target = $region202
        $region207: #{bme_embedding_forward.1} parent=199 // loop_exit
          _
      $region200: #{bme_embedding_forward.1} parent=184 // pred_fallthru
        _
    $region185: #{bme_embedding_forward.1} parent=1 // pred_fallthru
      _
    // Predicated region
    $region186: #{bme_embedding_forward.1} parent=1 // pred_check
      %p328 = pneg %p324
    $region187: #{bme_embedding_forward.1} parent=1 // pred_check_branch
      %330 = sbr.rel (%p328) target = $region189
    $region188: #{bme_embedding_forward.1} parent=1 // pred_region
      %s331 = sshll.u32 1, 1
      %s332 = ssub.s32 %s331, 1
      loop: start=0, step=1, limit=1
      $region190: #{bme_embedding_forward.1} parent=188 // loop_pre_header
        _
      $region191: #{bme_embedding_forward.1} parent=188 // loop_header
        %s334 = sphi 0, %s338
        %p335 = scmp.ge.s32.totalorder %s334, 1
        %s339 = sphi %s321, %s321
        %s340 = sphi %s322, %s322
      $region192: #{bme_embedding_forward.1} parent=188 // loop_header_branch
        %337 = sbr.rel (%p335) target = $region196
      $region193: #{bme_embedding_forward.1} parent=188 // loop_body
        %v341 = vld [vmem:[%s339] sm:%s332]
        %342 = vst [vmem:[%s340] sm:%s332] %v341
      $region194: #{bme_embedding_forward.1} parent=188 // loop_footer
        %s338 = sadd.s32 1, %s334
      $region195: #{bme_embedding_forward.1} parent=188 // loop_footer_branch
        %333 = sbr.rel target = $region191
      $region196: #{bme_embedding_forward.1} parent=188 // loop_exit
        _
    $region189: #{bme_embedding_forward.1} parent=1 // pred_fallthru
      _
    // Predicated region
    $region208: #{bme_embedding_forward.1} parent=1 // pred_check
      _
    $region209: #{bme_embedding_forward.1} parent=1 // pred_check_branch
      %367 = sbr.rel (0) target = $region211
    $region210: #{bme_embedding_forward.1} parent=1 // pred_region
      %368 = vsyncadd [#allocation4], 16
    $region211: #{bme_embedding_forward.1} parent=1 // pred_fallthru
      _
    %s369 = sld [smem:[#allocation7 + %s319]]
    %s370 = scalar_lea.vmem %s3, %s369
    %s371 = scalar_lea.vmem [#allocation3], 3
    %p373 = scmp.lt.u32.totalorder 1, 8
    %p374 = pneg %p373
    // Predicated region
    $region212: #{bme_embedding_forward.1} parent=1 // pred_check
      _
    $region213: #{bme_embedding_forward.1} parent=1 // pred_check_branch
      %376 = sbr.rel (%p373) target = $region215
    $region214: #{bme_embedding_forward.1} parent=1 // pred_region
      %s392 = sand.u32 1, 7
      %p393 = scmp.eq.s32.totalorder %s392, 0
      %p394 = pneg %p393
      // Predicated region
      $region227: #{bme_embedding_forward.1} parent=214 // pred_check
        _
      $region228: #{bme_embedding_forward.1} parent=214 // pred_check_branch
        %396 = sbr.rel (%p393) target = $region230
      $region229: #{bme_embedding_forward.1} parent=214 // pred_region
        %s397 = sand.u32 1, 7
        %s398 = ssub.s32 1, %s397
        %s399 = scalar_lea.vmem %s370, %s398
        %s400 = ssub.s32 1, %s397
        %s401 = scalar_lea.vmem %s371, %s400 [#allocation3]
        %s402 = sshll.u32 1, %s397
        %s403 = ssub.s32 %s402, 1
        loop: start=0, step=1, limit=1
        $region231: #{bme_embedding_forward.1} parent=229 // loop_pre_header
          _
        $region232: #{bme_embedding_forward.1} parent=229 // loop_header
          %s405 = sphi 0, %s409
          %p406 = scmp.ge.s32.totalorder %s405, 1
          %s410 = sphi %s399, %s399
          %s411 = sphi %s401, %s401
        $region233: #{bme_embedding_forward.1} parent=229 // loop_header_branch
          %408 = sbr.rel (%p406) target = $region237
        $region234: #{bme_embedding_forward.1} parent=229 // loop_body
          %v412 = vld [vmem:[%s410] sm:%s403]
          %413 = vst [vmem:[%s411] sm:%s403] %v412
        $region235: #{bme_embedding_forward.1} parent=229 // loop_footer
          %s409 = sadd.s32 1, %s405
        $region236: #{bme_embedding_forward.1} parent=229 // loop_footer_branch
          %404 = sbr.rel target = $region232
        $region237: #{bme_embedding_forward.1} parent=229 // loop_exit
          _
      $region230: #{bme_embedding_forward.1} parent=214 // pred_fallthru
        _
    $region215: #{bme_embedding_forward.1} parent=1 // pred_fallthru
      _
    // Predicated region
    $region216: #{bme_embedding_forward.1} parent=1 // pred_check
      %p377 = pneg %p373
    $region217: #{bme_embedding_forward.1} parent=1 // pred_check_branch
      %379 = sbr.rel (%p377) target = $region219
    $region218: #{bme_embedding_forward.1} parent=1 // pred_region
      %s380 = sshll.u32 1, 1
      %s381 = ssub.s32 %s380, 1
      loop: start=0, step=1, limit=1
      $region220: #{bme_embedding_forward.1} parent=218 // loop_pre_header
        _
      $region221: #{bme_embedding_forward.1} parent=218 // loop_header
        %s383 = sphi 0, %s387
        %p384 = scmp.ge.s32.totalorder %s383, 1
        %s388 = sphi %s370, %s370
        %s389 = sphi %s371, %s371
      $region222: #{bme_embedding_forward.1} parent=218 // loop_header_branch
        %386 = sbr.rel (%p384) target = $region226
      $region223: #{bme_embedding_forward.1} parent=218 // loop_body
        %v390 = vld [vmem:[%s388] sm:%s381]
        %391 = vst [vmem:[%s389] sm:%s381] %v390
      $region224: #{bme_embedding_forward.1} parent=218 // loop_footer
        %s387 = sadd.s32 1, %s383
      $region225: #{bme_embedding_forward.1} parent=218 // loop_footer_branch
        %382 = sbr.rel target = $region221
      $region226: #{bme_embedding_forward.1} parent=218 // loop_exit
        _
    $region219: #{bme_embedding_forward.1} parent=1 // pred_fallthru
      _
    // Predicated region
    $region238: #{bme_embedding_forward.1} parent=1 // pred_check
      _
    $region239: #{bme_embedding_forward.1} parent=1 // pred_check_branch
      %416 = sbr.rel (0) target = $region241
    $region240: #{bme_embedding_forward.1} parent=1 // pred_region
      %417 = vsyncadd %s74, 16
    $region241: #{bme_embedding_forward.1} parent=1 // pred_fallthru
      _
    %s418 = sadd.s32 %s23, 4
    %s419 = sld [smem:[#allocation6 + %s418]]
    %s420 = scalar_lea.vmem %s2, %s419
    %s421 = scalar_lea.vmem [#allocation2], 4
    %p423 = scmp.lt.u32.totalorder 1, 8
    %p424 = pneg %p423
    // Predicated region
    $region242: #{bme_embedding_forward.1} parent=1 // pred_check
      _
    $region243: #{bme_embedding_forward.1} parent=1 // pred_check_branch
      %426 = sbr.rel (%p423) target = $region245
    $region244: #{bme_embedding_forward.1} parent=1 // pred_region
      %s442 = sand.u32 1, 7
      %p443 = scmp.eq.s32.totalorder %s442, 0
      %p444 = pneg %p443
      // Predicated region
      $region257: #{bme_embedding_forward.1} parent=244 // pred_check
        _
      $region258: #{bme_embedding_forward.1} parent=244 // pred_check_branch
        %446 = sbr.rel (%p443) target = $region260
      $region259: #{bme_embedding_forward.1} parent=244 // pred_region
        %s447 = sand.u32 1, 7
        %s448 = ssub.s32 1, %s447
        %s449 = scalar_lea.vmem %s420, %s448
        %s450 = ssub.s32 1, %s447
        %s451 = scalar_lea.vmem %s421, %s450 [#allocation2]
        %s452 = sshll.u32 1, %s447
        %s453 = ssub.s32 %s452, 1
        loop: start=0, step=1, limit=1
        $region261: #{bme_embedding_forward.1} parent=259 // loop_pre_header
          _
        $region262: #{bme_embedding_forward.1} parent=259 // loop_header
          %s455 = sphi 0, %s459
          %p456 = scmp.ge.s32.totalorder %s455, 1
          %s460 = sphi %s449, %s449
          %s461 = sphi %s451, %s451
        $region263: #{bme_embedding_forward.1} parent=259 // loop_header_branch
          %458 = sbr.rel (%p456) target = $region267
        $region264: #{bme_embedding_forward.1} parent=259 // loop_body
          %v462 = vld [vmem:[%s460] sm:%s453]
          %463 = vst [vmem:[%s461] sm:%s453] %v462
        $region265: #{bme_embedding_forward.1} parent=259 // loop_footer
          %s459 = sadd.s32 1, %s455
        $region266: #{bme_embedding_forward.1} parent=259 // loop_footer_branch
          %454 = sbr.rel target = $region262
        $region267: #{bme_embedding_forward.1} parent=259 // loop_exit
          _
      $region260: #{bme_embedding_forward.1} parent=244 // pred_fallthru
        _
    $region245: #{bme_embedding_forward.1} parent=1 // pred_fallthru
      _
    // Predicated region
    $region246: #{bme_embedding_forward.1} parent=1 // pred_check
      %p427 = pneg %p423
    $region247: #{bme_embedding_forward.1} parent=1 // pred_check_branch
      %429 = sbr.rel (%p427) target = $region249
    $region248: #{bme_embedding_forward.1} parent=1 // pred_region
      %s430 = sshll.u32 1, 1
      %s431 = ssub.s32 %s430, 1
      loop: start=0, step=1, limit=1
      $region250: #{bme_embedding_forward.1} parent=248 // loop_pre_header
        _
      $region251: #{bme_embedding_forward.1} parent=248 // loop_header
        %s433 = sphi 0, %s437
        %p434 = scmp.ge.s32.totalorder %s433, 1
        %s438 = sphi %s420, %s420
        %s439 = sphi %s421, %s421
      $region252: #{bme_embedding_forward.1} parent=248 // loop_header_branch
        %436 = sbr.rel (%p434) target = $region256
      $region253: #{bme_embedding_forward.1} parent=248 // loop_body
        %v440 = vld [vmem:[%s438] sm:%s431]
        %441 = vst [vmem:[%s439] sm:%s431] %v440
      $region254: #{bme_embedding_forward.1} parent=248 // loop_footer
        %s437 = sadd.s32 1, %s433
      $region255: #{bme_embedding_forward.1} parent=248 // loop_footer_branch
        %432 = sbr.rel target = $region251
      $region256: #{bme_embedding_forward.1} parent=248 // loop_exit
        _
    $region249: #{bme_embedding_forward.1} parent=1 // pred_fallthru
      _
    // Predicated region
    $region268: #{bme_embedding_forward.1} parent=1 // pred_check
      _
    $region269: #{bme_embedding_forward.1} parent=1 // pred_check_branch
      %466 = sbr.rel (0) target = $region271
    $region270: #{bme_embedding_forward.1} parent=1 // pred_region
      %467 = vsyncadd [#allocation4], 16
    $region271: #{bme_embedding_forward.1} parent=1 // pred_fallthru
      _
    %s468 = sld [smem:[#allocation7 + %s418]]
    %s469 = scalar_lea.vmem %s3, %s468
    %s470 = scalar_lea.vmem [#allocation3], 4
    %p472 = scmp.lt.u32.totalorder 1, 8
    %p473 = pneg %p472
    // Predicated region
    $region272: #{bme_embedding_forward.1} parent=1 // pred_check
      _
    $region273: #{bme_embedding_forward.1} parent=1 // pred_check_branch
      %475 = sbr.rel (%p472) target = $region275
    $region274: #{bme_embedding_forward.1} parent=1 // pred_region
      %s491 = sand.u32 1, 7
      %p492 = scmp.eq.s32.totalorder %s491, 0
      %p493 = pneg %p492
      // Predicated region
      $region287: #{bme_embedding_forward.1} parent=274 // pred_check
        _
      $region288: #{bme_embedding_forward.1} parent=274 // pred_check_branch
        %495 = sbr.rel (%p492) target = $region290
      $region289: #{bme_embedding_forward.1} parent=274 // pred_region
        %s496 = sand.u32 1, 7
        %s497 = ssub.s32 1, %s496
        %s498 = scalar_lea.vmem %s469, %s497
        %s499 = ssub.s32 1, %s496
        %s500 = scalar_lea.vmem %s470, %s499 [#allocation3]
        %s501 = sshll.u32 1, %s496
        %s502 = ssub.s32 %s501, 1
        loop: start=0, step=1, limit=1
        $region291: #{bme_embedding_forward.1} parent=289 // loop_pre_header
          _
        $region292: #{bme_embedding_forward.1} parent=289 // loop_header
          %s504 = sphi 0, %s508
          %p505 = scmp.ge.s32.totalorder %s504, 1
          %s509 = sphi %s498, %s498
          %s510 = sphi %s500, %s500
        $region293: #{bme_embedding_forward.1} parent=289 // loop_header_branch
          %507 = sbr.rel (%p505) target = $region297
        $region294: #{bme_embedding_forward.1} parent=289 // loop_body
          %v511 = vld [vmem:[%s509] sm:%s502]
          %512 = vst [vmem:[%s510] sm:%s502] %v511
        $region295: #{bme_embedding_forward.1} parent=289 // loop_footer
          %s508 = sadd.s32 1, %s504
        $region296: #{bme_embedding_forward.1} parent=289 // loop_footer_branch
          %503 = sbr.rel target = $region292
        $region297: #{bme_embedding_forward.1} parent=289 // loop_exit
          _
      $region290: #{bme_embedding_forward.1} parent=274 // pred_fallthru
        _
    $region275: #{bme_embedding_forward.1} parent=1 // pred_fallthru
      _
    // Predicated region
    $region276: #{bme_embedding_forward.1} parent=1 // pred_check
      %p476 = pneg %p472
    $region277: #{bme_embedding_forward.1} parent=1 // pred_check_branch
      %478 = sbr.rel (%p476) target = $region279
    $region278: #{bme_embedding_forward.1} parent=1 // pred_region
      %s479 = sshll.u32 1, 1
      %s480 = ssub.s32 %s479, 1
      loop: start=0, step=1, limit=1
      $region280: #{bme_embedding_forward.1} parent=278 // loop_pre_header
        _
      $region281: #{bme_embedding_forward.1} parent=278 // loop_header
        %s482 = sphi 0, %s486
        %p483 = scmp.ge.s32.totalorder %s482, 1
        %s487 = sphi %s469, %s469
        %s488 = sphi %s470, %s470
      $region282: #{bme_embedding_forward.1} parent=278 // loop_header_branch
        %485 = sbr.rel (%p483) target = $region286
      $region283: #{bme_embedding_forward.1} parent=278 // loop_body
        %v489 = vld [vmem:[%s487] sm:%s480]
        %490 = vst [vmem:[%s488] sm:%s480] %v489
      $region284: #{bme_embedding_forward.1} parent=278 // loop_footer
        %s486 = sadd.s32 1, %s482
      $region285: #{bme_embedding_forward.1} parent=278 // loop_footer_branch
        %481 = sbr.rel target = $region281
      $region286: #{bme_embedding_forward.1} parent=278 // loop_exit
        _
    $region279: #{bme_embedding_forward.1} parent=1 // pred_fallthru
      _
    // Predicated region
    $region298: #{bme_embedding_forward.1} parent=1 // pred_check
      _
    $region299: #{bme_embedding_forward.1} parent=1 // pred_check_branch
      %515 = sbr.rel (0) target = $region301
    $region300: #{bme_embedding_forward.1} parent=1 // pred_region
      %516 = vsyncadd %s74, 16
    $region301: #{bme_embedding_forward.1} parent=1 // pred_fallthru
      _
    %s517 = sadd.s32 %s23, 5
    %s518 = sld [smem:[#allocation6 + %s517]]
    %s519 = scalar_lea.vmem %s2, %s518
    %s520 = scalar_lea.vmem [#allocation2], 5
    %p522 = scmp.lt.u32.totalorder 1, 8
    %p523 = pneg %p522
    // Predicated region
    $region302: #{bme_embedding_forward.1} parent=1 // pred_check
      _
    $region303: #{bme_embedding_forward.1} parent=1 // pred_check_branch
      %525 = sbr.rel (%p522) target = $region305
    $region304: #{bme_embedding_forward.1} parent=1 // pred_region
      %s541 = sand.u32 1, 7
      %p542 = scmp.eq.s32.totalorder %s541, 0
      %p543 = pneg %p542
      // Predicated region
      $region317: #{bme_embedding_forward.1} parent=304 // pred_check
        _
      $region318: #{bme_embedding_forward.1} parent=304 // pred_check_branch
        %545 = sbr.rel (%p542) target = $region320
      $region319: #{bme_embedding_forward.1} parent=304 // pred_region
        %s546 = sand.u32 1, 7
        %s547 = ssub.s32 1, %s546
        %s548 = scalar_lea.vmem %s519, %s547
        %s549 = ssub.s32 1, %s546
        %s550 = scalar_lea.vmem %s520, %s549 [#allocation2]
        %s551 = sshll.u32 1, %s546
        %s552 = ssub.s32 %s551, 1
        loop: start=0, step=1, limit=1
        $region321: #{bme_embedding_forward.1} parent=319 // loop_pre_header
          _
        $region322: #{bme_embedding_forward.1} parent=319 // loop_header
          %s554 = sphi 0, %s558
          %p555 = scmp.ge.s32.totalorder %s554, 1
          %s559 = sphi %s548, %s548
          %s560 = sphi %s550, %s550
        $region323: #{bme_embedding_forward.1} parent=319 // loop_header_branch
          %557 = sbr.rel (%p555) target = $region327
        $region324: #{bme_embedding_forward.1} parent=319 // loop_body
          %v561 = vld [vmem:[%s559] sm:%s552]
          %562 = vst [vmem:[%s560] sm:%s552] %v561
        $region325: #{bme_embedding_forward.1} parent=319 // loop_footer
          %s558 = sadd.s32 1, %s554
        $region326: #{bme_embedding_forward.1} parent=319 // loop_footer_branch
          %553 = sbr.rel target = $region322
        $region327: #{bme_embedding_forward.1} parent=319 // loop_exit
          _
      $region320: #{bme_embedding_forward.1} parent=304 // pred_fallthru
        _
    $region305: #{bme_embedding_forward.1} parent=1 // pred_fallthru
      _
    // Predicated region
    $region306: #{bme_embedding_forward.1} parent=1 // pred_check
      %p526 = pneg %p522
    $region307: #{bme_embedding_forward.1} parent=1 // pred_check_branch
      %528 = sbr.rel (%p526) target = $region309
    $region308: #{bme_embedding_forward.1} parent=1 // pred_region
      %s529 = sshll.u32 1, 1
      %s530 = ssub.s32 %s529, 1
      loop: start=0, step=1, limit=1
      $region310: #{bme_embedding_forward.1} parent=308 // loop_pre_header
        _
      $region311: #{bme_embedding_forward.1} parent=308 // loop_header
        %s532 = sphi 0, %s536
        %p533 = scmp.ge.s32.totalorder %s532, 1
        %s537 = sphi %s519, %s519
        %s538 = sphi %s520, %s520
      $region312: #{bme_embedding_forward.1} parent=308 // loop_header_branch
        %535 = sbr.rel (%p533) target = $region316
      $region313: #{bme_embedding_forward.1} parent=308 // loop_body
        %v539 = vld [vmem:[%s537] sm:%s530]
        %540 = vst [vmem:[%s538] sm:%s530] %v539
      $region314: #{bme_embedding_forward.1} parent=308 // loop_footer
        %s536 = sadd.s32 1, %s532
      $region315: #{bme_embedding_forward.1} parent=308 // loop_footer_branch
        %531 = sbr.rel target = $region311
      $region316: #{bme_embedding_forward.1} parent=308 // loop_exit
        _
    $region309: #{bme_embedding_forward.1} parent=1 // pred_fallthru
      _
    // Predicated region
    $region328: #{bme_embedding_forward.1} parent=1 // pred_check
      _
    $region329: #{bme_embedding_forward.1} parent=1 // pred_check_branch
      %565 = sbr.rel (0) target = $region331
    $region330: #{bme_embedding_forward.1} parent=1 // pred_region
      %566 = vsyncadd [#allocation4], 16
    $region331: #{bme_embedding_forward.1} parent=1 // pred_fallthru
      _
    %s567 = sld [smem:[#allocation7 + %s517]]
    %s568 = scalar_lea.vmem %s3, %s567
    %s569 = scalar_lea.vmem [#allocation3], 5
    %p571 = scmp.lt.u32.totalorder 1, 8
    %p572 = pneg %p571
    // Predicated region
    $region332: #{bme_embedding_forward.1} parent=1 // pred_check
      _
    $region333: #{bme_embedding_forward.1} parent=1 // pred_check_branch
      %574 = sbr.rel (%p571) target = $region335
    $region334: #{bme_embedding_forward.1} parent=1 // pred_region
      %s590 = sand.u32 1, 7
      %p591 = scmp.eq.s32.totalorder %s590, 0
      %p592 = pneg %p591
      // Predicated region
      $region347: #{bme_embedding_forward.1} parent=334 // pred_check
        _
      $region348: #{bme_embedding_forward.1} parent=334 // pred_check_branch
        %594 = sbr.rel (%p591) target = $region350
      $region349: #{bme_embedding_forward.1} parent=334 // pred_region
        %s595 = sand.u32 1, 7
        %s596 = ssub.s32 1, %s595
        %s597 = scalar_lea.vmem %s568, %s596
        %s598 = ssub.s32 1, %s595
        %s599 = scalar_lea.vmem %s569, %s598 [#allocation3]
        %s600 = sshll.u32 1, %s595
        %s601 = ssub.s32 %s600, 1
        loop: start=0, step=1, limit=1
        $region351: #{bme_embedding_forward.1} parent=349 // loop_pre_header
          _
        $region352: #{bme_embedding_forward.1} parent=349 // loop_header
          %s603 = sphi 0, %s607
          %p604 = scmp.ge.s32.totalorder %s603, 1
          %s608 = sphi %s597, %s597
          %s609 = sphi %s599, %s599
        $region353: #{bme_embedding_forward.1} parent=349 // loop_header_branch
          %606 = sbr.rel (%p604) target = $region357
        $region354: #{bme_embedding_forward.1} parent=349 // loop_body
          %v610 = vld [vmem:[%s608] sm:%s601]
          %611 = vst [vmem:[%s609] sm:%s601] %v610
        $region355: #{bme_embedding_forward.1} parent=349 // loop_footer
          %s607 = sadd.s32 1, %s603
        $region356: #{bme_embedding_forward.1} parent=349 // loop_footer_branch
          %602 = sbr.rel target = $region352
        $region357: #{bme_embedding_forward.1} parent=349 // loop_exit
          _
      $region350: #{bme_embedding_forward.1} parent=334 // pred_fallthru
        _
    $region335: #{bme_embedding_forward.1} parent=1 // pred_fallthru
      _
    // Predicated region
    $region336: #{bme_embedding_forward.1} parent=1 // pred_check
      %p575 = pneg %p571
    $region337: #{bme_embedding_forward.1} parent=1 // pred_check_branch
      %577 = sbr.rel (%p575) target = $region339
    $region338: #{bme_embedding_forward.1} parent=1 // pred_region
      %s578 = sshll.u32 1, 1
      %s579 = ssub.s32 %s578, 1
      loop: start=0, step=1, limit=1
      $region340: #{bme_embedding_forward.1} parent=338 // loop_pre_header
        _
      $region341: #{bme_embedding_forward.1} parent=338 // loop_header
        %s581 = sphi 0, %s585
        %p582 = scmp.ge.s32.totalorder %s581, 1
        %s586 = sphi %s568, %s568
        %s587 = sphi %s569, %s569
      $region342: #{bme_embedding_forward.1} parent=338 // loop_header_branch
        %584 = sbr.rel (%p582) target = $region346
      $region343: #{bme_embedding_forward.1} parent=338 // loop_body
        %v588 = vld [vmem:[%s586] sm:%s579]
        %589 = vst [vmem:[%s587] sm:%s579] %v588
      $region344: #{bme_embedding_forward.1} parent=338 // loop_footer
        %s585 = sadd.s32 1, %s581
      $region345: #{bme_embedding_forward.1} parent=338 // loop_footer_branch
        %580 = sbr.rel target = $region341
      $region346: #{bme_embedding_forward.1} parent=338 // loop_exit
        _
    $region339: #{bme_embedding_forward.1} parent=1 // pred_fallthru
      _
    // Predicated region
    $region358: #{bme_embedding_forward.1} parent=1 // pred_check
      _
    $region359: #{bme_embedding_forward.1} parent=1 // pred_check_branch
      %614 = sbr.rel (0) target = $region361
    $region360: #{bme_embedding_forward.1} parent=1 // pred_region
      %615 = vsyncadd %s74, 16
    $region361: #{bme_embedding_forward.1} parent=1 // pred_fallthru
      _
    %s616 = sadd.s32 %s23, 6
    %s617 = sld [smem:[#allocation6 + %s616]]
    %s618 = scalar_lea.vmem %s2, %s617
    %s619 = scalar_lea.vmem [#allocation2], 6
    %p621 = scmp.lt.u32.totalorder 1, 8
    %p622 = pneg %p621
    // Predicated region
    $region362: #{bme_embedding_forward.1} parent=1 // pred_check
      _
    $region363: #{bme_embedding_forward.1} parent=1 // pred_check_branch
      %624 = sbr.rel (%p621) target = $region365
    $region364: #{bme_embedding_forward.1} parent=1 // pred_region
      %s640 = sand.u32 1, 7
      %p641 = scmp.eq.s32.totalorder %s640, 0
      %p642 = pneg %p641
      // Predicated region
      $region377: #{bme_embedding_forward.1} parent=364 // pred_check
        _
      $region378: #{bme_embedding_forward.1} parent=364 // pred_check_branch
        %644 = sbr.rel (%p641) target = $region380
      $region379: #{bme_embedding_forward.1} parent=364 // pred_region
        %s645 = sand.u32 1, 7
        %s646 = ssub.s32 1, %s645
        %s647 = scalar_lea.vmem %s618, %s646
        %s648 = ssub.s32 1, %s645
        %s649 = scalar_lea.vmem %s619, %s648 [#allocation2]
        %s650 = sshll.u32 1, %s645
        %s651 = ssub.s32 %s650, 1
        loop: start=0, step=1, limit=1
        $region381: #{bme_embedding_forward.1} parent=379 // loop_pre_header
          _
        $region382: #{bme_embedding_forward.1} parent=379 // loop_header
          %s653 = sphi 0, %s657
          %p654 = scmp.ge.s32.totalorder %s653, 1
          %s658 = sphi %s647, %s647
          %s659 = sphi %s649, %s649
        $region383: #{bme_embedding_forward.1} parent=379 // loop_header_branch
          %656 = sbr.rel (%p654) target = $region387
        $region384: #{bme_embedding_forward.1} parent=379 // loop_body
          %v660 = vld [vmem:[%s658] sm:%s651]
          %661 = vst [vmem:[%s659] sm:%s651] %v660
        $region385: #{bme_embedding_forward.1} parent=379 // loop_footer
          %s657 = sadd.s32 1, %s653
        $region386: #{bme_embedding_forward.1} parent=379 // loop_footer_branch
          %652 = sbr.rel target = $region382
        $region387: #{bme_embedding_forward.1} parent=379 // loop_exit
          _
      $region380: #{bme_embedding_forward.1} parent=364 // pred_fallthru
        _
    $region365: #{bme_embedding_forward.1} parent=1 // pred_fallthru
      _
    // Predicated region
    $region366: #{bme_embedding_forward.1} parent=1 // pred_check
      %p625 = pneg %p621
    $region367: #{bme_embedding_forward.1} parent=1 // pred_check_branch
      %627 = sbr.rel (%p625) target = $region369
    $region368: #{bme_embedding_forward.1} parent=1 // pred_region
      %s628 = sshll.u32 1, 1
      %s629 = ssub.s32 %s628, 1
      loop: start=0, step=1, limit=1
      $region370: #{bme_embedding_forward.1} parent=368 // loop_pre_header
        _
      $region371: #{bme_embedding_forward.1} parent=368 // loop_header
        %s631 = sphi 0, %s635
        %p632 = scmp.ge.s32.totalorder %s631, 1
        %s636 = sphi %s618, %s618
        %s637 = sphi %s619, %s619
      $region372: #{bme_embedding_forward.1} parent=368 // loop_header_branch
        %634 = sbr.rel (%p632) target = $region376
      $region373: #{bme_embedding_forward.1} parent=368 // loop_body
        %v638 = vld [vmem:[%s636] sm:%s629]
        %639 = vst [vmem:[%s637] sm:%s629] %v638
      $region374: #{bme_embedding_forward.1} parent=368 // loop_footer
        %s635 = sadd.s32 1, %s631
      $region375: #{bme_embedding_forward.1} parent=368 // loop_footer_branch
        %630 = sbr.rel target = $region371
      $region376: #{bme_embedding_forward.1} parent=368 // loop_exit
        _
    $region369: #{bme_embedding_forward.1} parent=1 // pred_fallthru
      _
    // Predicated region
    $region388: #{bme_embedding_forward.1} parent=1 // pred_check
      _
    $region389: #{bme_embedding_forward.1} parent=1 // pred_check_branch
      %664 = sbr.rel (0) target = $region391
    $region390: #{bme_embedding_forward.1} parent=1 // pred_region
      %665 = vsyncadd [#allocation4], 16
    $region391: #{bme_embedding_forward.1} parent=1 // pred_fallthru
      _
    %s666 = sld [smem:[#allocation7 + %s616]]
    %s667 = scalar_lea.vmem %s3, %s666
    %s668 = scalar_lea.vmem [#allocation3], 6
    %p670 = scmp.lt.u32.totalorder 1, 8
    %p671 = pneg %p670
    // Predicated region
    $region392: #{bme_embedding_forward.1} parent=1 // pred_check
      _
    $region393: #{bme_embedding_forward.1} parent=1 // pred_check_branch
      %673 = sbr.rel (%p670) target = $region395
    $region394: #{bme_embedding_forward.1} parent=1 // pred_region
      %s689 = sand.u32 1, 7
      %p690 = scmp.eq.s32.totalorder %s689, 0
      %p691 = pneg %p690
      // Predicated region
      $region407: #{bme_embedding_forward.1} parent=394 // pred_check
        _
      $region408: #{bme_embedding_forward.1} parent=394 // pred_check_branch
        %693 = sbr.rel (%p690) target = $region410
      $region409: #{bme_embedding_forward.1} parent=394 // pred_region
        %s694 = sand.u32 1, 7
        %s695 = ssub.s32 1, %s694
        %s696 = scalar_lea.vmem %s667, %s695
        %s697 = ssub.s32 1, %s694
        %s698 = scalar_lea.vmem %s668, %s697 [#allocation3]
        %s699 = sshll.u32 1, %s694
        %s700 = ssub.s32 %s699, 1
        loop: start=0, step=1, limit=1
        $region411: #{bme_embedding_forward.1} parent=409 // loop_pre_header
          _
        $region412: #{bme_embedding_forward.1} parent=409 // loop_header
          %s702 = sphi 0, %s706
          %p703 = scmp.ge.s32.totalorder %s702, 1
          %s707 = sphi %s696, %s696
          %s708 = sphi %s698, %s698
        $region413: #{bme_embedding_forward.1} parent=409 // loop_header_branch
          %705 = sbr.rel (%p703) target = $region417
        $region414: #{bme_embedding_forward.1} parent=409 // loop_body
          %v709 = vld [vmem:[%s707] sm:%s700]
          %710 = vst [vmem:[%s708] sm:%s700] %v709
        $region415: #{bme_embedding_forward.1} parent=409 // loop_footer
          %s706 = sadd.s32 1, %s702
        $region416: #{bme_embedding_forward.1} parent=409 // loop_footer_branch
          %701 = sbr.rel target = $region412
        $region417: #{bme_embedding_forward.1} parent=409 // loop_exit
          _
      $region410: #{bme_embedding_forward.1} parent=394 // pred_fallthru
        _
    $region395: #{bme_embedding_forward.1} parent=1 // pred_fallthru
      _
    // Predicated region
    $region396: #{bme_embedding_forward.1} parent=1 // pred_check
      %p674 = pneg %p670
    $region397: #{bme_embedding_forward.1} parent=1 // pred_check_branch
      %676 = sbr.rel (%p674) target = $region399
    $region398: #{bme_embedding_forward.1} parent=1 // pred_region
      %s677 = sshll.u32 1, 1
      %s678 = ssub.s32 %s677, 1
      loop: start=0, step=1, limit=1
      $region400: #{bme_embedding_forward.1} parent=398 // loop_pre_header
        _
      $region401: #{bme_embedding_forward.1} parent=398 // loop_header
        %s680 = sphi 0, %s684
        %p681 = scmp.ge.s32.totalorder %s680, 1
        %s685 = sphi %s667, %s667
        %s686 = sphi %s668, %s668
      $region402: #{bme_embedding_forward.1} parent=398 // loop_header_branch
        %683 = sbr.rel (%p681) target = $region406
      $region403: #{bme_embedding_forward.1} parent=398 // loop_body
        %v687 = vld [vmem:[%s685] sm:%s678]
        %688 = vst [vmem:[%s686] sm:%s678] %v687
      $region404: #{bme_embedding_forward.1} parent=398 // loop_footer
        %s684 = sadd.s32 1, %s680
      $region405: #{bme_embedding_forward.1} parent=398 // loop_footer_branch
        %679 = sbr.rel target = $region401
      $region406: #{bme_embedding_forward.1} parent=398 // loop_exit
        _
    $region399: #{bme_embedding_forward.1} parent=1 // pred_fallthru
      _
    // Predicated region
    $region418: #{bme_embedding_forward.1} parent=1 // pred_check
      _
    $region419: #{bme_embedding_forward.1} parent=1 // pred_check_branch
      %713 = sbr.rel (0) target = $region421
    $region420: #{bme_embedding_forward.1} parent=1 // pred_region
      %714 = vsyncadd %s74, 16
    $region421: #{bme_embedding_forward.1} parent=1 // pred_fallthru
      _
    %s715 = sadd.s32 %s23, 7
    %s716 = sld [smem:[#allocation6 + %s715]]
    %s717 = scalar_lea.vmem %s2, %s716
    %s718 = scalar_lea.vmem [#allocation2], 7
    %p720 = scmp.lt.u32.totalorder 1, 8
    %p721 = pneg %p720
    // Predicated region
    $region422: #{bme_embedding_forward.1} parent=1 // pred_check
      _
    $region423: #{bme_embedding_forward.1} parent=1 // pred_check_branch
      %723 = sbr.rel (%p720) target = $region425
    $region424: #{bme_embedding_forward.1} parent=1 // pred_region
      %s739 = sand.u32 1, 7
      %p740 = scmp.eq.s32.totalorder %s739, 0
      %p741 = pneg %p740
      // Predicated region
      $region437: #{bme_embedding_forward.1} parent=424 // pred_check
        _
      $region438: #{bme_embedding_forward.1} parent=424 // pred_check_branch
        %743 = sbr.rel (%p740) target = $region440
      $region439: #{bme_embedding_forward.1} parent=424 // pred_region
        %s744 = sand.u32 1, 7
        %s745 = ssub.s32 1, %s744
        %s746 = scalar_lea.vmem %s717, %s745
        %s747 = ssub.s32 1, %s744
        %s748 = scalar_lea.vmem %s718, %s747 [#allocation2]
        %s749 = sshll.u32 1, %s744
        %s750 = ssub.s32 %s749, 1
        loop: start=0, step=1, limit=1
        $region441: #{bme_embedding_forward.1} parent=439 // loop_pre_header
          _
        $region442: #{bme_embedding_forward.1} parent=439 // loop_header
          %s752 = sphi 0, %s756
          %p753 = scmp.ge.s32.totalorder %s752, 1
          %s757 = sphi %s746, %s746
          %s758 = sphi %s748, %s748
        $region443: #{bme_embedding_forward.1} parent=439 // loop_header_branch
          %755 = sbr.rel (%p753) target = $region447
        $region444: #{bme_embedding_forward.1} parent=439 // loop_body
          %v759 = vld [vmem:[%s757] sm:%s750]
          %760 = vst [vmem:[%s758] sm:%s750] %v759
        $region445: #{bme_embedding_forward.1} parent=439 // loop_footer
          %s756 = sadd.s32 1, %s752
        $region446: #{bme_embedding_forward.1} parent=439 // loop_footer_branch
          %751 = sbr.rel target = $region442
        $region447: #{bme_embedding_forward.1} parent=439 // loop_exit
          _
      $region440: #{bme_embedding_forward.1} parent=424 // pred_fallthru
        _
    $region425: #{bme_embedding_forward.1} parent=1 // pred_fallthru
      _
    // Predicated region
    $region426: #{bme_embedding_forward.1} parent=1 // pred_check
      %p724 = pneg %p720
    $region427: #{bme_embedding_forward.1} parent=1 // pred_check_branch
      %726 = sbr.rel (%p724) target = $region429
    $region428: #{bme_embedding_forward.1} parent=1 // pred_region
      %s727 = sshll.u32 1, 1
      %s728 = ssub.s32 %s727, 1
      loop: start=0, step=1, limit=1
      $region430: #{bme_embedding_forward.1} parent=428 // loop_pre_header
        _
      $region431: #{bme_embedding_forward.1} parent=428 // loop_header
        %s730 = sphi 0, %s734
        %p731 = scmp.ge.s32.totalorder %s730, 1
        %s735 = sphi %s717, %s717
        %s736 = sphi %s718, %s718
      $region432: #{bme_embedding_forward.1} parent=428 // loop_header_branch
        %733 = sbr.rel (%p731) target = $region436
      $region433: #{bme_embedding_forward.1} parent=428 // loop_body
        %v737 = vld [vmem:[%s735] sm:%s728]
        %738 = vst [vmem:[%s736] sm:%s728] %v737
      $region434: #{bme_embedding_forward.1} parent=428 // loop_footer
        %s734 = sadd.s32 1, %s730
      $region435: #{bme_embedding_forward.1} parent=428 // loop_footer_branch
        %729 = sbr.rel target = $region431
      $region436: #{bme_embedding_forward.1} parent=428 // loop_exit
        _
    $region429: #{bme_embedding_forward.1} parent=1 // pred_fallthru
      _
    // Predicated region
    $region448: #{bme_embedding_forward.1} parent=1 // pred_check
      _
    $region449: #{bme_embedding_forward.1} parent=1 // pred_check_branch
      %763 = sbr.rel (0) target = $region451
    $region450: #{bme_embedding_forward.1} parent=1 // pred_region
      %764 = vsyncadd [#allocation4], 16
    $region451: #{bme_embedding_forward.1} parent=1 // pred_fallthru
      _
    %s765 = sld [smem:[#allocation7 + %s715]]
    %s766 = scalar_lea.vmem %s3, %s765
    %s767 = scalar_lea.vmem [#allocation3], 7
    %p769 = scmp.lt.u32.totalorder 1, 8
    %p770 = pneg %p769
    // Predicated region
    $region452: #{bme_embedding_forward.1} parent=1 // pred_check
      _
    $region453: #{bme_embedding_forward.1} parent=1 // pred_check_branch
      %772 = sbr.rel (%p769) target = $region455
    $region454: #{bme_embedding_forward.1} parent=1 // pred_region
      %s788 = sand.u32 1, 7
      %p789 = scmp.eq.s32.totalorder %s788, 0
      %p790 = pneg %p789
      // Predicated region
      $region467: #{bme_embedding_forward.1} parent=454 // pred_check
        _
      $region468: #{bme_embedding_forward.1} parent=454 // pred_check_branch
        %792 = sbr.rel (%p789) target = $region470
      $region469: #{bme_embedding_forward.1} parent=454 // pred_region
        %s793 = sand.u32 1, 7
        %s794 = ssub.s32 1, %s793
        %s795 = scalar_lea.vmem %s766, %s794
        %s796 = ssub.s32 1, %s793
        %s797 = scalar_lea.vmem %s767, %s796 [#allocation3]
        %s798 = sshll.u32 1, %s793
        %s799 = ssub.s32 %s798, 1
        loop: start=0, step=1, limit=1
        $region471: #{bme_embedding_forward.1} parent=469 // loop_pre_header
          _
        $region472: #{bme_embedding_forward.1} parent=469 // loop_header
          %s801 = sphi 0, %s805
          %p802 = scmp.ge.s32.totalorder %s801, 1
          %s806 = sphi %s795, %s795
          %s807 = sphi %s797, %s797
        $region473: #{bme_embedding_forward.1} parent=469 // loop_header_branch
          %804 = sbr.rel (%p802) target = $region477
        $region474: #{bme_embedding_forward.1} parent=469 // loop_body
          %v808 = vld [vmem:[%s806] sm:%s799]
          %809 = vst [vmem:[%s807] sm:%s799] %v808
        $region475: #{bme_embedding_forward.1} parent=469 // loop_footer
          %s805 = sadd.s32 1, %s801
        $region476: #{bme_embedding_forward.1} parent=469 // loop_footer_branch
          %800 = sbr.rel target = $region472
        $region477: #{bme_embedding_forward.1} parent=469 // loop_exit
          _
      $region470: #{bme_embedding_forward.1} parent=454 // pred_fallthru
        _
    $region455: #{bme_embedding_forward.1} parent=1 // pred_fallthru
      _
    // Predicated region
    $region456: #{bme_embedding_forward.1} parent=1 // pred_check
      %p773 = pneg %p769
    $region457: #{bme_embedding_forward.1} parent=1 // pred_check_branch
      %775 = sbr.rel (%p773) target = $region459
    $region458: #{bme_embedding_forward.1} parent=1 // pred_region
      %s776 = sshll.u32 1, 1
      %s777 = ssub.s32 %s776, 1
      loop: start=0, step=1, limit=1
      $region460: #{bme_embedding_forward.1} parent=458 // loop_pre_header
        _
      $region461: #{bme_embedding_forward.1} parent=458 // loop_header
        %s779 = sphi 0, %s783
        %p780 = scmp.ge.s32.totalorder %s779, 1
        %s784 = sphi %s766, %s766
        %s785 = sphi %s767, %s767
      $region462: #{bme_embedding_forward.1} parent=458 // loop_header_branch
        %782 = sbr.rel (%p780) target = $region466
      $region463: #{bme_embedding_forward.1} parent=458 // loop_body
        %v786 = vld [vmem:[%s784] sm:%s777]
        %787 = vst [vmem:[%s785] sm:%s777] %v786
      $region464: #{bme_embedding_forward.1} parent=458 // loop_footer
        %s783 = sadd.s32 1, %s779
      $region465: #{bme_embedding_forward.1} parent=458 // loop_footer_branch
        %778 = sbr.rel target = $region461
      $region466: #{bme_embedding_forward.1} parent=458 // loop_exit
        _
    $region459: #{bme_embedding_forward.1} parent=1 // pred_fallthru
      _
    // Predicated region
    $region478: #{bme_embedding_forward.1} parent=1 // pred_check
      _
    $region479: #{bme_embedding_forward.1} parent=1 // pred_check_branch
      %812 = sbr.rel (0) target = $region481
    $region480: #{bme_embedding_forward.1} parent=1 // pred_region
      %813 = vsyncadd %s74, 16
    $region481: #{bme_embedding_forward.1} parent=1 // pred_fallthru
      _
    %s814 = sadd.s32 %s23, 8
    %s815 = sld [smem:[#allocation6 + %s814]]
    %s816 = scalar_lea.vmem %s2, %s815
    %s817 = scalar_lea.vmem [#allocation2], 8
    %p819 = scmp.lt.u32.totalorder 1, 8
    %p820 = pneg %p819
    // Predicated region
    $region482: #{bme_embedding_forward.1} parent=1 // pred_check
      _
    $region483: #{bme_embedding_forward.1} parent=1 // pred_check_branch
      %822 = sbr.rel (%p819) target = $region485
    $region484: #{bme_embedding_forward.1} parent=1 // pred_region
      %s838 = sand.u32 1, 7
      %p839 = scmp.eq.s32.totalorder %s838, 0
      %p840 = pneg %p839
      // Predicated region
      $region497: #{bme_embedding_forward.1} parent=484 // pred_check
        _
      $region498: #{bme_embedding_forward.1} parent=484 // pred_check_branch
        %842 = sbr.rel (%p839) target = $region500
      $region499: #{bme_embedding_forward.1} parent=484 // pred_region
        %s843 = sand.u32 1, 7
        %s844 = ssub.s32 1, %s843
        %s845 = scalar_lea.vmem %s816, %s844
        %s846 = ssub.s32 1, %s843
        %s847 = scalar_lea.vmem %s817, %s846 [#allocation2]
        %s848 = sshll.u32 1, %s843
        %s849 = ssub.s32 %s848, 1
        loop: start=0, step=1, limit=1
        $region501: #{bme_embedding_forward.1} parent=499 // loop_pre_header
          _
        $region502: #{bme_embedding_forward.1} parent=499 // loop_header
          %s851 = sphi 0, %s855
          %p852 = scmp.ge.s32.totalorder %s851, 1
          %s856 = sphi %s845, %s845
          %s857 = sphi %s847, %s847
        $region503: #{bme_embedding_forward.1} parent=499 // loop_header_branch
          %854 = sbr.rel (%p852) target = $region507
        $region504: #{bme_embedding_forward.1} parent=499 // loop_body
          %v858 = vld [vmem:[%s856] sm:%s849]
          %859 = vst [vmem:[%s857] sm:%s849] %v858
        $region505: #{bme_embedding_forward.1} parent=499 // loop_footer
          %s855 = sadd.s32 1, %s851
        $region506: #{bme_embedding_forward.1} parent=499 // loop_footer_branch
          %850 = sbr.rel target = $region502
        $region507: #{bme_embedding_forward.1} parent=499 // loop_exit
          _
      $region500: #{bme_embedding_forward.1} parent=484 // pred_fallthru
        _
    $region485: #{bme_embedding_forward.1} parent=1 // pred_fallthru
      _
    // Predicated region
    $region486: #{bme_embedding_forward.1} parent=1 // pred_check
      %p823 = pneg %p819
    $region487: #{bme_embedding_forward.1} parent=1 // pred_check_branch
      %825 = sbr.rel (%p823) target = $region489
    $region488: #{bme_embedding_forward.1} parent=1 // pred_region
      %s826 = sshll.u32 1, 1
      %s827 = ssub.s32 %s826, 1
      loop: start=0, step=1, limit=1
      $region490: #{bme_embedding_forward.1} parent=488 // loop_pre_header
        _
      $region491: #{bme_embedding_forward.1} parent=488 // loop_header
        %s829 = sphi 0, %s833
        %p830 = scmp.ge.s32.totalorder %s829, 1
        %s834 = sphi %s816, %s816
        %s835 = sphi %s817, %s817
      $region492: #{bme_embedding_forward.1} parent=488 // loop_header_branch
        %832 = sbr.rel (%p830) target = $region496
      $region493: #{bme_embedding_forward.1} parent=488 // loop_body
        %v836 = vld [vmem:[%s834] sm:%s827]
        %837 = vst [vmem:[%s835] sm:%s827] %v836
      $region494: #{bme_embedding_forward.1} parent=488 // loop_footer
        %s833 = sadd.s32 1, %s829
      $region495: #{bme_embedding_forward.1} parent=488 // loop_footer_branch
        %828 = sbr.rel target = $region491
      $region496: #{bme_embedding_forward.1} parent=488 // loop_exit
        _
    $region489: #{bme_embedding_forward.1} parent=1 // pred_fallthru
      _
    // Predicated region
    $region508: #{bme_embedding_forward.1} parent=1 // pred_check
      _
    $region509: #{bme_embedding_forward.1} parent=1 // pred_check_branch
      %862 = sbr.rel (0) target = $region511
    $region510: #{bme_embedding_forward.1} parent=1 // pred_region
      %863 = vsyncadd [#allocation4], 16
    $region511: #{bme_embedding_forward.1} parent=1 // pred_fallthru
      _
    %s864 = sld [smem:[#allocation7 + %s814]]
    %s865 = scalar_lea.vmem %s3, %s864
    %s866 = scalar_lea.vmem [#allocation3], 8
    %p868 = scmp.lt.u32.totalorder 1, 8
    %p869 = pneg %p868
    // Predicated region
    $region512: #{bme_embedding_forward.1} parent=1 // pred_check
      _
    $region513: #{bme_embedding_forward.1} parent=1 // pred_check_branch
      %871 = sbr.rel (%p868) target = $region515
    $region514: #{bme_embedding_forward.1} parent=1 // pred_region
      %s887 = sand.u32 1, 7
      %p888 = scmp.eq.s32.totalorder %s887, 0
      %p889 = pneg %p888
      // Predicated region
      $region527: #{bme_embedding_forward.1} parent=514 // pred_check
        _
      $region528: #{bme_embedding_forward.1} parent=514 // pred_check_branch
        %891 = sbr.rel (%p888) target = $region530
      $region529: #{bme_embedding_forward.1} parent=514 // pred_region
        %s892 = sand.u32 1, 7
        %s893 = ssub.s32 1, %s892
        %s894 = scalar_lea.vmem %s865, %s893
        %s895 = ssub.s32 1, %s892
        %s896 = scalar_lea.vmem %s866, %s895 [#allocation3]
        %s897 = sshll.u32 1, %s892
        %s898 = ssub.s32 %s897, 1
        loop: start=0, step=1, limit=1
        $region531: #{bme_embedding_forward.1} parent=529 // loop_pre_header
          _
        $region532: #{bme_embedding_forward.1} parent=529 // loop_header
          %s900 = sphi 0, %s904
          %p901 = scmp.ge.s32.totalorder %s900, 1
          %s905 = sphi %s894, %s894
          %s906 = sphi %s896, %s896
        $region533: #{bme_embedding_forward.1} parent=529 // loop_header_branch
          %903 = sbr.rel (%p901) target = $region537
        $region534: #{bme_embedding_forward.1} parent=529 // loop_body
          %v907 = vld [vmem:[%s905] sm:%s898]
          %908 = vst [vmem:[%s906] sm:%s898] %v907
        $region535: #{bme_embedding_forward.1} parent=529 // loop_footer
          %s904 = sadd.s32 1, %s900
        $region536: #{bme_embedding_forward.1} parent=529 // loop_footer_branch
          %899 = sbr.rel target = $region532
        $region537: #{bme_embedding_forward.1} parent=529 // loop_exit
          _
      $region530: #{bme_embedding_forward.1} parent=514 // pred_fallthru
        _
    $region515: #{bme_embedding_forward.1} parent=1 // pred_fallthru
      _
    // Predicated region
    $region516: #{bme_embedding_forward.1} parent=1 // pred_check
      %p872 = pneg %p868
    $region517: #{bme_embedding_forward.1} parent=1 // pred_check_branch
      %874 = sbr.rel (%p872) target = $region519
    $region518: #{bme_embedding_forward.1} parent=1 // pred_region
      %s875 = sshll.u32 1, 1
      %s876 = ssub.s32 %s875, 1
      loop: start=0, step=1, limit=1
      $region520: #{bme_embedding_forward.1} parent=518 // loop_pre_header
        _
      $region521: #{bme_embedding_forward.1} parent=518 // loop_header
        %s878 = sphi 0, %s882
        %p879 = scmp.ge.s32.totalorder %s878, 1
        %s883 = sphi %s865, %s865
        %s884 = sphi %s866, %s866
      $region522: #{bme_embedding_forward.1} parent=518 // loop_header_branch
        %881 = sbr.rel (%p879) target = $region526
      $region523: #{bme_embedding_forward.1} parent=518 // loop_body
        %v885 = vld [vmem:[%s883] sm:%s876]
        %886 = vst [vmem:[%s884] sm:%s876] %v885
      $region524: #{bme_embedding_forward.1} parent=518 // loop_footer
        %s882 = sadd.s32 1, %s878
      $region525: #{bme_embedding_forward.1} parent=518 // loop_footer_branch
        %877 = sbr.rel target = $region521
      $region526: #{bme_embedding_forward.1} parent=518 // loop_exit
        _
    $region519: #{bme_embedding_forward.1} parent=1 // pred_fallthru
      _
    // Predicated region
    $region538: #{bme_embedding_forward.1} parent=1 // pred_check
      _
    $region539: #{bme_embedding_forward.1} parent=1 // pred_check_branch
      %911 = sbr.rel (0) target = $region541
    $region540: #{bme_embedding_forward.1} parent=1 // pred_region
      %912 = vsyncadd %s74, 16
    $region541: #{bme_embedding_forward.1} parent=1 // pred_fallthru
      _
    %s913 = sadd.s32 %s23, 9
    %s914 = sld [smem:[#allocation6 + %s913]]
    %s915 = scalar_lea.vmem %s2, %s914
    %s916 = scalar_lea.vmem [#allocation2], 9
    %p918 = scmp.lt.u32.totalorder 1, 8
    %p919 = pneg %p918
    // Predicated region
    $region542: #{bme_embedding_forward.1} parent=1 // pred_check
      _
    $region543: #{bme_embedding_forward.1} parent=1 // pred_check_branch
      %921 = sbr.rel (%p918) target = $region545
    $region544: #{bme_embedding_forward.1} parent=1 // pred_region
      %s937 = sand.u32 1, 7
      %p938 = scmp.eq.s32.totalorder %s937, 0
      %p939 = pneg %p938
      // Predicated region
      $region557: #{bme_embedding_forward.1} parent=544 // pred_check
        _
      $region558: #{bme_embedding_forward.1} parent=544 // pred_check_branch
        %941 = sbr.rel (%p938) target = $region560
      $region559: #{bme_embedding_forward.1} parent=544 // pred_region
        %s942 = sand.u32 1, 7
        %s943 = ssub.s32 1, %s942
        %s944 = scalar_lea.vmem %s915, %s943
        %s945 = ssub.s32 1, %s942
        %s946 = scalar_lea.vmem %s916, %s945 [#allocation2]
        %s947 = sshll.u32 1, %s942
        %s948 = ssub.s32 %s947, 1
        loop: start=0, step=1, limit=1
        $region561: #{bme_embedding_forward.1} parent=559 // loop_pre_header
          _
        $region562: #{bme_embedding_forward.1} parent=559 // loop_header
          %s950 = sphi 0, %s954
          %p951 = scmp.ge.s32.totalorder %s950, 1
          %s955 = sphi %s944, %s944
          %s956 = sphi %s946, %s946
        $region563: #{bme_embedding_forward.1} parent=559 // loop_header_branch
          %953 = sbr.rel (%p951) target = $region567
        $region564: #{bme_embedding_forward.1} parent=559 // loop_body
          %v957 = vld [vmem:[%s955] sm:%s948]
          %958 = vst [vmem:[%s956] sm:%s948] %v957
        $region565: #{bme_embedding_forward.1} parent=559 // loop_footer
          %s954 = sadd.s32 1, %s950
        $region566: #{bme_embedding_forward.1} parent=559 // loop_footer_branch
          %949 = sbr.rel target = $region562
        $region567: #{bme_embedding_forward.1} parent=559 // loop_exit
          _
      $region560: #{bme_embedding_forward.1} parent=544 // pred_fallthru
        _
    $region545: #{bme_embedding_forward.1} parent=1 // pred_fallthru
      _
    // Predicated region
    $region546: #{bme_embedding_forward.1} parent=1 // pred_check
      %p922 = pneg %p918
    $region547: #{bme_embedding_forward.1} parent=1 // pred_check_branch
      %924 = sbr.rel (%p922) target = $region549
    $region548: #{bme_embedding_forward.1} parent=1 // pred_region
      %s925 = sshll.u32 1, 1
      %s926 = ssub.s32 %s925, 1
      loop: start=0, step=1, limit=1
      $region550: #{bme_embedding_forward.1} parent=548 // loop_pre_header
        _
      $region551: #{bme_embedding_forward.1} parent=548 // loop_header
        %s928 = sphi 0, %s932
        %p929 = scmp.ge.s32.totalorder %s928, 1
        %s933 = sphi %s915, %s915
        %s934 = sphi %s916, %s916
      $region552: #{bme_embedding_forward.1} parent=548 // loop_header_branch
        %931 = sbr.rel (%p929) target = $region556
      $region553: #{bme_embedding_forward.1} parent=548 // loop_body
        %v935 = vld [vmem:[%s933] sm:%s926]
        %936 = vst [vmem:[%s934] sm:%s926] %v935
      $region554: #{bme_embedding_forward.1} parent=548 // loop_footer
        %s932 = sadd.s32 1, %s928
      $region555: #{bme_embedding_forward.1} parent=548 // loop_footer_branch
        %927 = sbr.rel target = $region551
      $region556: #{bme_embedding_forward.1} parent=548 // loop_exit
        _
    $region549: #{bme_embedding_forward.1} parent=1 // pred_fallthru
      _
    // Predicated region
    $region568: #{bme_embedding_forward.1} parent=1 // pred_check
      _
    $region569: #{bme_embedding_forward.1} parent=1 // pred_check_branch
      %961 = sbr.rel (0) target = $region571
    $region570: #{bme_embedding_forward.1} parent=1 // pred_region
      %962 = vsyncadd [#allocation4], 16
    $region571: #{bme_embedding_forward.1} parent=1 // pred_fallthru
      _
    %s963 = sld [smem:[#allocation7 + %s913]]
    %s964 = scalar_lea.vmem %s3, %s963
    %s965 = scalar_lea.vmem [#allocation3], 9
    %p967 = scmp.lt.u32.totalorder 1, 8
    %p968 = pneg %p967
    // Predicated region
    $region572: #{bme_embedding_forward.1} parent=1 // pred_check
      _
    $region573: #{bme_embedding_forward.1} parent=1 // pred_check_branch
      %970 = sbr.rel (%p967) target = $region575
    $region574: #{bme_embedding_forward.1} parent=1 // pred_region
      %s986 = sand.u32 1, 7
      %p987 = scmp.eq.s32.totalorder %s986, 0
      %p988 = pneg %p987
      // Predicated region
      $region587: #{bme_embedding_forward.1} parent=574 // pred_check
        _
      $region588: #{bme_embedding_forward.1} parent=574 // pred_check_branch
        %990 = sbr.rel (%p987) target = $region590
      $region589: #{bme_embedding_forward.1} parent=574 // pred_region
        %s991 = sand.u32 1, 7
        %s992 = ssub.s32 1, %s991
        %s993 = scalar_lea.vmem %s964, %s992
        %s994 = ssub.s32 1, %s991
        %s995 = scalar_lea.vmem %s965, %s994 [#allocation3]
        %s996 = sshll.u32 1, %s991
        %s997 = ssub.s32 %s996, 1
        loop: start=0, step=1, limit=1
        $region591: #{bme_embedding_forward.1} parent=589 // loop_pre_header
          _
        $region592: #{bme_embedding_forward.1} parent=589 // loop_header
          %s999 = sphi 0, %s1003
          %p1000 = scmp.ge.s32.totalorder %s999, 1
          %s1004 = sphi %s993, %s993
          %s1005 = sphi %s995, %s995
        $region593: #{bme_embedding_forward.1} parent=589 // loop_header_branch
          %1002 = sbr.rel (%p1000) target = $region597
        $region594: #{bme_embedding_forward.1} parent=589 // loop_body
          %v1006 = vld [vmem:[%s1004] sm:%s997]
          %1007 = vst [vmem:[%s1005] sm:%s997] %v1006
        $region595: #{bme_embedding_forward.1} parent=589 // loop_footer
          %s1003 = sadd.s32 1, %s999
        $region596: #{bme_embedding_forward.1} parent=589 // loop_footer_branch
          %998 = sbr.rel target = $region592
        $region597: #{bme_embedding_forward.1} parent=589 // loop_exit
          _
      $region590: #{bme_embedding_forward.1} parent=574 // pred_fallthru
        _
    $region575: #{bme_embedding_forward.1} parent=1 // pred_fallthru
      _
    // Predicated region
    $region576: #{bme_embedding_forward.1} parent=1 // pred_check
      %p971 = pneg %p967
    $region577: #{bme_embedding_forward.1} parent=1 // pred_check_branch
      %973 = sbr.rel (%p971) target = $region579
    $region578: #{bme_embedding_forward.1} parent=1 // pred_region
      %s974 = sshll.u32 1, 1
      %s975 = ssub.s32 %s974, 1
      loop: start=0, step=1, limit=1
      $region580: #{bme_embedding_forward.1} parent=578 // loop_pre_header
        _
      $region581: #{bme_embedding_forward.1} parent=578 // loop_header
        %s977 = sphi 0, %s981
        %p978 = scmp.ge.s32.totalorder %s977, 1
        %s982 = sphi %s964, %s964
        %s983 = sphi %s965, %s965
      $region582: #{bme_embedding_forward.1} parent=578 // loop_header_branch
        %980 = sbr.rel (%p978) target = $region586
      $region583: #{bme_embedding_forward.1} parent=578 // loop_body
        %v984 = vld [vmem:[%s982] sm:%s975]
        %985 = vst [vmem:[%s983] sm:%s975] %v984
      $region584: #{bme_embedding_forward.1} parent=578 // loop_footer
        %s981 = sadd.s32 1, %s977
      $region585: #{bme_embedding_forward.1} parent=578 // loop_footer_branch
        %976 = sbr.rel target = $region581
      $region586: #{bme_embedding_forward.1} parent=578 // loop_exit
        _
    $region579: #{bme_embedding_forward.1} parent=1 // pred_fallthru
      _
    // Predicated region
    $region598: #{bme_embedding_forward.1} parent=1 // pred_check
      _
    $region599: #{bme_embedding_forward.1} parent=1 // pred_check_branch
      %1010 = sbr.rel (0) target = $region601
    $region600: #{bme_embedding_forward.1} parent=1 // pred_region
      %1011 = vsyncadd %s74, 16
    $region601: #{bme_embedding_forward.1} parent=1 // pred_fallthru
      _
    %s1012 = sadd.s32 %s23, 10
    %s1013 = sld [smem:[#allocation6 + %s1012]]
    %s1014 = scalar_lea.vmem %s2, %s1013
    %s1015 = scalar_lea.vmem [#allocation2], 10
    %p1017 = scmp.lt.u32.totalorder 1, 8
    %p1018 = pneg %p1017
    // Predicated region
    $region602: #{bme_embedding_forward.1} parent=1 // pred_check
      _
    $region603: #{bme_embedding_forward.1} parent=1 // pred_check_branch
      %1020 = sbr.rel (%p1017) target = $region605
    $region604: #{bme_embedding_forward.1} parent=1 // pred_region
      %s1036 = sand.u32 1, 7
      %p1037 = scmp.eq.s32.totalorder %s1036, 0
      %p1038 = pneg %p1037
      // Predicated region
      $region617: #{bme_embedding_forward.1} parent=604 // pred_check
        _
      $region618: #{bme_embedding_forward.1} parent=604 // pred_check_branch
        %1040 = sbr.rel (%p1037) target = $region620
      $region619: #{bme_embedding_forward.1} parent=604 // pred_region
        %s1041 = sand.u32 1, 7
        %s1042 = ssub.s32 1, %s1041
        %s1043 = scalar_lea.vmem %s1014, %s1042
        %s1044 = ssub.s32 1, %s1041
        %s1045 = scalar_lea.vmem %s1015, %s1044 [#allocation2]
        %s1046 = sshll.u32 1, %s1041
        %s1047 = ssub.s32 %s1046, 1
        loop: start=0, step=1, limit=1
        $region621: #{bme_embedding_forward.1} parent=619 // loop_pre_header
          _
        $region622: #{bme_embedding_forward.1} parent=619 // loop_header
          %s1049 = sphi 0, %s1053
          %p1050 = scmp.ge.s32.totalorder %s1049, 1
          %s1054 = sphi %s1043, %s1043
          %s1055 = sphi %s1045, %s1045
        $region623: #{bme_embedding_forward.1} parent=619 // loop_header_branch
          %1052 = sbr.rel (%p1050) target = $region627
        $region624: #{bme_embedding_forward.1} parent=619 // loop_body
          %v1056 = vld [vmem:[%s1054] sm:%s1047]
          %1057 = vst [vmem:[%s1055] sm:%s1047] %v1056
        $region625: #{bme_embedding_forward.1} parent=619 // loop_footer
          %s1053 = sadd.s32 1, %s1049
        $region626: #{bme_embedding_forward.1} parent=619 // loop_footer_branch
          %1048 = sbr.rel target = $region622
        $region627: #{bme_embedding_forward.1} parent=619 // loop_exit
          _
      $region620: #{bme_embedding_forward.1} parent=604 // pred_fallthru
        _
    $region605: #{bme_embedding_forward.1} parent=1 // pred_fallthru
      _
    // Predicated region
    $region606: #{bme_embedding_forward.1} parent=1 // pred_check
      %p1021 = pneg %p1017
    $region607: #{bme_embedding_forward.1} parent=1 // pred_check_branch
      %1023 = sbr.rel (%p1021) target = $region609
    $region608: #{bme_embedding_forward.1} parent=1 // pred_region
      %s1024 = sshll.u32 1, 1
      %s1025 = ssub.s32 %s1024, 1
      loop: start=0, step=1, limit=1
      $region610: #{bme_embedding_forward.1} parent=608 // loop_pre_header
        _
      $region611: #{bme_embedding_forward.1} parent=608 // loop_header
        %s1027 = sphi 0, %s1031
        %p1028 = scmp.ge.s32.totalorder %s1027, 1
        %s1032 = sphi %s1014, %s1014
        %s1033 = sphi %s1015, %s1015
      $region612: #{bme_embedding_forward.1} parent=608 // loop_header_branch
        %1030 = sbr.rel (%p1028) target = $region616
      $region613: #{bme_embedding_forward.1} parent=608 // loop_body
        %v1034 = vld [vmem:[%s1032] sm:%s1025]
        %1035 = vst [vmem:[%s1033] sm:%s1025] %v1034
      $region614: #{bme_embedding_forward.1} parent=608 // loop_footer
        %s1031 = sadd.s32 1, %s1027
      $region615: #{bme_embedding_forward.1} parent=608 // loop_footer_branch
        %1026 = sbr.rel target = $region611
      $region616: #{bme_embedding_forward.1} parent=608 // loop_exit
        _
    $region609: #{bme_embedding_forward.1} parent=1 // pred_fallthru
      _
    // Predicated region
    $region628: #{bme_embedding_forward.1} parent=1 // pred_check
      _
    $region629: #{bme_embedding_forward.1} parent=1 // pred_check_branch
      %1060 = sbr.rel (0) target = $region631
    $region630: #{bme_embedding_forward.1} parent=1 // pred_region
      %1061 = vsyncadd [#allocation4], 16
    $region631: #{bme_embedding_forward.1} parent=1 // pred_fallthru
      _
    %s1062 = sld [smem:[#allocation7 + %s1012]]
    %s1063 = scalar_lea.vmem %s3, %s1062
    %s1064 = scalar_lea.vmem [#allocation3], 10
    %p1066 = scmp.lt.u32.totalorder 1, 8
    %p1067 = pneg %p1066
    // Predicated region
    $region632: #{bme_embedding_forward.1} parent=1 // pred_check
      _
    $region633: #{bme_embedding_forward.1} parent=1 // pred_check_branch
      %1069 = sbr.rel (%p1066) target = $region635
    $region634: #{bme_embedding_forward.1} parent=1 // pred_region
      %s1085 = sand.u32 1, 7
      %p1086 = scmp.eq.s32.totalorder %s1085, 0
      %p1087 = pneg %p1086
      // Predicated region
      $region647: #{bme_embedding_forward.1} parent=634 // pred_check
        _
      $region648: #{bme_embedding_forward.1} parent=634 // pred_check_branch
        %1089 = sbr.rel (%p1086) target = $region650
      $region649: #{bme_embedding_forward.1} parent=634 // pred_region
        %s1090 = sand.u32 1, 7
        %s1091 = ssub.s32 1, %s1090
        %s1092 = scalar_lea.vmem %s1063, %s1091
        %s1093 = ssub.s32 1, %s1090
        %s1094 = scalar_lea.vmem %s1064, %s1093 [#allocation3]
        %s1095 = sshll.u32 1, %s1090
        %s1096 = ssub.s32 %s1095, 1
        loop: start=0, step=1, limit=1
        $region651: #{bme_embedding_forward.1} parent=649 // loop_pre_header
          _
        $region652: #{bme_embedding_forward.1} parent=649 // loop_header
          %s1098 = sphi 0, %s1102
          %p1099 = scmp.ge.s32.totalorder %s1098, 1
          %s1103 = sphi %s1092, %s1092
          %s1104 = sphi %s1094, %s1094
        $region653: #{bme_embedding_forward.1} parent=649 // loop_header_branch
          %1101 = sbr.rel (%p1099) target = $region657
        $region654: #{bme_embedding_forward.1} parent=649 // loop_body
          %v1105 = vld [vmem:[%s1103] sm:%s1096]
          %1106 = vst [vmem:[%s1104] sm:%s1096] %v1105
        $region655: #{bme_embedding_forward.1} parent=649 // loop_footer
          %s1102 = sadd.s32 1, %s1098
        $region656: #{bme_embedding_forward.1} parent=649 // loop_footer_branch
          %1097 = sbr.rel target = $region652
        $region657: #{bme_embedding_forward.1} parent=649 // loop_exit
          _
      $region650: #{bme_embedding_forward.1} parent=634 // pred_fallthru
        _
    $region635: #{bme_embedding_forward.1} parent=1 // pred_fallthru
      _
    // Predicated region
    $region636: #{bme_embedding_forward.1} parent=1 // pred_check
      %p1070 = pneg %p1066
    $region637: #{bme_embedding_forward.1} parent=1 // pred_check_branch
      %1072 = sbr.rel (%p1070) target = $region639
    $region638: #{bme_embedding_forward.1} parent=1 // pred_region
      %s1073 = sshll.u32 1, 1
      %s1074 = ssub.s32 %s1073, 1
      loop: start=0, step=1, limit=1
      $region640: #{bme_embedding_forward.1} parent=638 // loop_pre_header
        _
      $region641: #{bme_embedding_forward.1} parent=638 // loop_header
        %s1076 = sphi 0, %s1080
        %p1077 = scmp.ge.s32.totalorder %s1076, 1
        %s1081 = sphi %s1063, %s1063
        %s1082 = sphi %s1064, %s1064
      $region642: #{bme_embedding_forward.1} parent=638 // loop_header_branch
        %1079 = sbr.rel (%p1077) target = $region646
      $region643: #{bme_embedding_forward.1} parent=638 // loop_body
        %v1083 = vld [vmem:[%s1081] sm:%s1074]
        %1084 = vst [vmem:[%s1082] sm:%s1074] %v1083
      $region644: #{bme_embedding_forward.1} parent=638 // loop_footer
        %s1080 = sadd.s32 1, %s1076
      $region645: #{bme_embedding_forward.1} parent=638 // loop_footer_branch
        %1075 = sbr.rel target = $region641
      $region646: #{bme_embedding_forward.1} parent=638 // loop_exit
        _
    $region639: #{bme_embedding_forward.1} parent=1 // pred_fallthru
      _
    // Predicated region
    $region658: #{bme_embedding_forward.1} parent=1 // pred_check
      _
    $region659: #{bme_embedding_forward.1} parent=1 // pred_check_branch
      %1109 = sbr.rel (0) target = $region661
    $region660: #{bme_embedding_forward.1} parent=1 // pred_region
      %1110 = vsyncadd %s74, 16
    $region661: #{bme_embedding_forward.1} parent=1 // pred_fallthru
      _
    %s1111 = sadd.s32 %s23, 11
    %s1112 = sld [smem:[#allocation6 + %s1111]]
    %s1113 = scalar_lea.vmem %s2, %s1112
    %s1114 = scalar_lea.vmem [#allocation2], 11
    %p1116 = scmp.lt.u32.totalorder 1, 8
    %p1117 = pneg %p1116
    // Predicated region
    $region662: #{bme_embedding_forward.1} parent=1 // pred_check
      _
    $region663: #{bme_embedding_forward.1} parent=1 // pred_check_branch
      %1119 = sbr.rel (%p1116) target = $region665
    $region664: #{bme_embedding_forward.1} parent=1 // pred_region
      %s1135 = sand.u32 1, 7
      %p1136 = scmp.eq.s32.totalorder %s1135, 0
      %p1137 = pneg %p1136
      // Predicated region
      $region677: #{bme_embedding_forward.1} parent=664 // pred_check
        _
      $region678: #{bme_embedding_forward.1} parent=664 // pred_check_branch
        %1139 = sbr.rel (%p1136) target = $region680
      $region679: #{bme_embedding_forward.1} parent=664 // pred_region
        %s1140 = sand.u32 1, 7
        %s1141 = ssub.s32 1, %s1140
        %s1142 = scalar_lea.vmem %s1113, %s1141
        %s1143 = ssub.s32 1, %s1140
        %s1144 = scalar_lea.vmem %s1114, %s1143 [#allocation2]
        %s1145 = sshll.u32 1, %s1140
        %s1146 = ssub.s32 %s1145, 1
        loop: start=0, step=1, limit=1
        $region681: #{bme_embedding_forward.1} parent=679 // loop_pre_header
          _
        $region682: #{bme_embedding_forward.1} parent=679 // loop_header
          %s1148 = sphi 0, %s1152
          %p1149 = scmp.ge.s32.totalorder %s1148, 1
          %s1153 = sphi %s1142, %s1142
          %s1154 = sphi %s1144, %s1144
        $region683: #{bme_embedding_forward.1} parent=679 // loop_header_branch
          %1151 = sbr.rel (%p1149) target = $region687
        $region684: #{bme_embedding_forward.1} parent=679 // loop_body
          %v1155 = vld [vmem:[%s1153] sm:%s1146]
          %1156 = vst [vmem:[%s1154] sm:%s1146] %v1155
        $region685: #{bme_embedding_forward.1} parent=679 // loop_footer
          %s1152 = sadd.s32 1, %s1148
        $region686: #{bme_embedding_forward.1} parent=679 // loop_footer_branch
          %1147 = sbr.rel target = $region682
        $region687: #{bme_embedding_forward.1} parent=679 // loop_exit
          _
      $region680: #{bme_embedding_forward.1} parent=664 // pred_fallthru
        _
    $region665: #{bme_embedding_forward.1} parent=1 // pred_fallthru
      _
    // Predicated region
    $region666: #{bme_embedding_forward.1} parent=1 // pred_check
      %p1120 = pneg %p1116
    $region667: #{bme_embedding_forward.1} parent=1 // pred_check_branch
      %1122 = sbr.rel (%p1120) target = $region669
    $region668: #{bme_embedding_forward.1} parent=1 // pred_region
      %s1123 = sshll.u32 1, 1
      %s1124 = ssub.s32 %s1123, 1
      loop: start=0, step=1, limit=1
      $region670: #{bme_embedding_forward.1} parent=668 // loop_pre_header
        _
      $region671: #{bme_embedding_forward.1} parent=668 // loop_header
        %s1126 = sphi 0, %s1130
        %p1127 = scmp.ge.s32.totalorder %s1126, 1
        %s1131 = sphi %s1113, %s1113
        %s1132 = sphi %s1114, %s1114
      $region672: #{bme_embedding_forward.1} parent=668 // loop_header_branch
        %1129 = sbr.rel (%p1127) target = $region676
      $region673: #{bme_embedding_forward.1} parent=668 // loop_body
        %v1133 = vld [vmem:[%s1131] sm:%s1124]
        %1134 = vst [vmem:[%s1132] sm:%s1124] %v1133
      $region674: #{bme_embedding_forward.1} parent=668 // loop_footer
        %s1130 = sadd.s32 1, %s1126
      $region675: #{bme_embedding_forward.1} parent=668 // loop_footer_branch
        %1125 = sbr.rel target = $region671
      $region676: #{bme_embedding_forward.1} parent=668 // loop_exit
        _
    $region669: #{bme_embedding_forward.1} parent=1 // pred_fallthru
      _
    // Predicated region
    $region688: #{bme_embedding_forward.1} parent=1 // pred_check
      _
    $region689: #{bme_embedding_forward.1} parent=1 // pred_check_branch
      %1159 = sbr.rel (0) target = $region691
    $region690: #{bme_embedding_forward.1} parent=1 // pred_region
      %1160 = vsyncadd [#allocation4], 16
    $region691: #{bme_embedding_forward.1} parent=1 // pred_fallthru
      _
    %s1161 = sld [smem:[#allocation7 + %s1111]]
    %s1162 = scalar_lea.vmem %s3, %s1161
    %s1163 = scalar_lea.vmem [#allocation3], 11
    %p1165 = scmp.lt.u32.totalorder 1, 8
    %p1166 = pneg %p1165
    // Predicated region
    $region692: #{bme_embedding_forward.1} parent=1 // pred_check
      _
    $region693: #{bme_embedding_forward.1} parent=1 // pred_check_branch
      %1168 = sbr.rel (%p1165) target = $region695
    $region694: #{bme_embedding_forward.1} parent=1 // pred_region
      %s1184 = sand.u32 1, 7
      %p1185 = scmp.eq.s32.totalorder %s1184, 0
      %p1186 = pneg %p1185
      // Predicated region
      $region707: #{bme_embedding_forward.1} parent=694 // pred_check
        _
      $region708: #{bme_embedding_forward.1} parent=694 // pred_check_branch
        %1188 = sbr.rel (%p1185) target = $region710
      $region709: #{bme_embedding_forward.1} parent=694 // pred_region
        %s1189 = sand.u32 1, 7
        %s1190 = ssub.s32 1, %s1189
        %s1191 = scalar_lea.vmem %s1162, %s1190
        %s1192 = ssub.s32 1, %s1189
        %s1193 = scalar_lea.vmem %s1163, %s1192 [#allocation3]
        %s1194 = sshll.u32 1, %s1189
        %s1195 = ssub.s32 %s1194, 1
        loop: start=0, step=1, limit=1
        $region711: #{bme_embedding_forward.1} parent=709 // loop_pre_header
          _
        $region712: #{bme_embedding_forward.1} parent=709 // loop_header
          %s1197 = sphi 0, %s1201
          %p1198 = scmp.ge.s32.totalorder %s1197, 1
          %s1202 = sphi %s1191, %s1191
          %s1203 = sphi %s1193, %s1193
        $region713: #{bme_embedding_forward.1} parent=709 // loop_header_branch
          %1200 = sbr.rel (%p1198) target = $region717
        $region714: #{bme_embedding_forward.1} parent=709 // loop_body
          %v1204 = vld [vmem:[%s1202] sm:%s1195]
          %1205 = vst [vmem:[%s1203] sm:%s1195] %v1204
        $region715: #{bme_embedding_forward.1} parent=709 // loop_footer
          %s1201 = sadd.s32 1, %s1197
        $region716: #{bme_embedding_forward.1} parent=709 // loop_footer_branch
          %1196 = sbr.rel target = $region712
        $region717: #{bme_embedding_forward.1} parent=709 // loop_exit
          _
      $region710: #{bme_embedding_forward.1} parent=694 // pred_fallthru
        _
    $region695: #{bme_embedding_forward.1} parent=1 // pred_fallthru
      _
    // Predicated region
    $region696: #{bme_embedding_forward.1} parent=1 // pred_check
      %p1169 = pneg %p1165
    $region697: #{bme_embedding_forward.1} parent=1 // pred_check_branch
      %1171 = sbr.rel (%p1169) target = $region699
    $region698: #{bme_embedding_forward.1} parent=1 // pred_region
      %s1172 = sshll.u32 1, 1
      %s1173 = ssub.s32 %s1172, 1
      loop: start=0, step=1, limit=1
      $region700: #{bme_embedding_forward.1} parent=698 // loop_pre_header
        _
      $region701: #{bme_embedding_forward.1} parent=698 // loop_header
        %s1175 = sphi 0, %s1179
        %p1176 = scmp.ge.s32.totalorder %s1175, 1
        %s1180 = sphi %s1162, %s1162
        %s1181 = sphi %s1163, %s1163
      $region702: #{bme_embedding_forward.1} parent=698 // loop_header_branch
        %1178 = sbr.rel (%p1176) target = $region706
      $region703: #{bme_embedding_forward.1} parent=698 // loop_body
        %v1182 = vld [vmem:[%s1180] sm:%s1173]
        %1183 = vst [vmem:[%s1181] sm:%s1173] %v1182
      $region704: #{bme_embedding_forward.1} parent=698 // loop_footer
        %s1179 = sadd.s32 1, %s1175
      $region705: #{bme_embedding_forward.1} parent=698 // loop_footer_branch
        %1174 = sbr.rel target = $region701
      $region706: #{bme_embedding_forward.1} parent=698 // loop_exit
        _
    $region699: #{bme_embedding_forward.1} parent=1 // pred_fallthru
      _
    // Predicated region
    $region718: #{bme_embedding_forward.1} parent=1 // pred_check
      _
    $region719: #{bme_embedding_forward.1} parent=1 // pred_check_branch
      %1208 = sbr.rel (0) target = $region721
    $region720: #{bme_embedding_forward.1} parent=1 // pred_region
      %1209 = vsyncadd %s74, 16
    $region721: #{bme_embedding_forward.1} parent=1 // pred_fallthru
      _
    %s1210 = sadd.s32 %s23, 12
    %s1211 = sld [smem:[#allocation6 + %s1210]]
    %s1212 = scalar_lea.vmem %s2, %s1211
    %s1213 = scalar_lea.vmem [#allocation2], 12
    %p1215 = scmp.lt.u32.totalorder 1, 8
    %p1216 = pneg %p1215
    // Predicated region
    $region722: #{bme_embedding_forward.1} parent=1 // pred_check
      _
    $region723: #{bme_embedding_forward.1} parent=1 // pred_check_branch
      %1218 = sbr.rel (%p1215) target = $region725
    $region724: #{bme_embedding_forward.1} parent=1 // pred_region
      %s1234 = sand.u32 1, 7
      %p1235 = scmp.eq.s32.totalorder %s1234, 0
      %p1236 = pneg %p1235
      // Predicated region
      $region737: #{bme_embedding_forward.1} parent=724 // pred_check
        _
      $region738: #{bme_embedding_forward.1} parent=724 // pred_check_branch
        %1238 = sbr.rel (%p1235) target = $region740
      $region739: #{bme_embedding_forward.1} parent=724 // pred_region
        %s1239 = sand.u32 1, 7
        %s1240 = ssub.s32 1, %s1239
        %s1241 = scalar_lea.vmem %s1212, %s1240
        %s1242 = ssub.s32 1, %s1239
        %s1243 = scalar_lea.vmem %s1213, %s1242 [#allocation2]
        %s1244 = sshll.u32 1, %s1239
        %s1245 = ssub.s32 %s1244, 1
        loop: start=0, step=1, limit=1
        $region741: #{bme_embedding_forward.1} parent=739 // loop_pre_header
          _
        $region742: #{bme_embedding_forward.1} parent=739 // loop_header
          %s1247 = sphi 0, %s1251
          %p1248 = scmp.ge.s32.totalorder %s1247, 1
          %s1252 = sphi %s1241, %s1241
          %s1253 = sphi %s1243, %s1243
        $region743: #{bme_embedding_forward.1} parent=739 // loop_header_branch
          %1250 = sbr.rel (%p1248) target = $region747
        $region744: #{bme_embedding_forward.1} parent=739 // loop_body
          %v1254 = vld [vmem:[%s1252] sm:%s1245]
          %1255 = vst [vmem:[%s1253] sm:%s1245] %v1254
        $region745: #{bme_embedding_forward.1} parent=739 // loop_footer
          %s1251 = sadd.s32 1, %s1247
        $region746: #{bme_embedding_forward.1} parent=739 // loop_footer_branch
          %1246 = sbr.rel target = $region742
        $region747: #{bme_embedding_forward.1} parent=739 // loop_exit
          _
      $region740: #{bme_embedding_forward.1} parent=724 // pred_fallthru
        _
    $region725: #{bme_embedding_forward.1} parent=1 // pred_fallthru
      _
    // Predicated region
    $region726: #{bme_embedding_forward.1} parent=1 // pred_check
      %p1219 = pneg %p1215
    $region727: #{bme_embedding_forward.1} parent=1 // pred_check_branch
      %1221 = sbr.rel (%p1219) target = $region729
    $region728: #{bme_embedding_forward.1} parent=1 // pred_region
      %s1222 = sshll.u32 1, 1
      %s1223 = ssub.s32 %s1222, 1
      loop: start=0, step=1, limit=1
      $region730: #{bme_embedding_forward.1} parent=728 // loop_pre_header
        _
      $region731: #{bme_embedding_forward.1} parent=728 // loop_header
        %s1225 = sphi 0, %s1229
        %p1226 = scmp.ge.s32.totalorder %s1225, 1
        %s1230 = sphi %s1212, %s1212
        %s1231 = sphi %s1213, %s1213
      $region732: #{bme_embedding_forward.1} parent=728 // loop_header_branch
        %1228 = sbr.rel (%p1226) target = $region736
      $region733: #{bme_embedding_forward.1} parent=728 // loop_body
        %v1232 = vld [vmem:[%s1230] sm:%s1223]
        %1233 = vst [vmem:[%s1231] sm:%s1223] %v1232
      $region734: #{bme_embedding_forward.1} parent=728 // loop_footer
        %s1229 = sadd.s32 1, %s1225
      $region735: #{bme_embedding_forward.1} parent=728 // loop_footer_branch
        %1224 = sbr.rel target = $region731
      $region736: #{bme_embedding_forward.1} parent=728 // loop_exit
        _
    $region729: #{bme_embedding_forward.1} parent=1 // pred_fallthru
      _
    // Predicated region
    $region748: #{bme_embedding_forward.1} parent=1 // pred_check
      _
    $region749: #{bme_embedding_forward.1} parent=1 // pred_check_branch
      %1258 = sbr.rel (0) target = $region751
    $region750: #{bme_embedding_forward.1} parent=1 // pred_region
      %1259 = vsyncadd [#allocation4], 16
    $region751: #{bme_embedding_forward.1} parent=1 // pred_fallthru
      _
    %s1260 = sld [smem:[#allocation7 + %s1210]]
    %s1261 = scalar_lea.vmem %s3, %s1260
    %s1262 = scalar_lea.vmem [#allocation3], 12
    %p1264 = scmp.lt.u32.totalorder 1, 8
    %p1265 = pneg %p1264
    // Predicated region
    $region752: #{bme_embedding_forward.1} parent=1 // pred_check
      _
    $region753: #{bme_embedding_forward.1} parent=1 // pred_check_branch
      %1267 = sbr.rel (%p1264) target = $region755
    $region754: #{bme_embedding_forward.1} parent=1 // pred_region
      %s1283 = sand.u32 1, 7
      %p1284 = scmp.eq.s32.totalorder %s1283, 0
      %p1285 = pneg %p1284
      // Predicated region
      $region767: #{bme_embedding_forward.1} parent=754 // pred_check
        _
      $region768: #{bme_embedding_forward.1} parent=754 // pred_check_branch
        %1287 = sbr.rel (%p1284) target = $region770
      $region769: #{bme_embedding_forward.1} parent=754 // pred_region
        %s1288 = sand.u32 1, 7
        %s1289 = ssub.s32 1, %s1288
        %s1290 = scalar_lea.vmem %s1261, %s1289
        %s1291 = ssub.s32 1, %s1288
        %s1292 = scalar_lea.vmem %s1262, %s1291 [#allocation3]
        %s1293 = sshll.u32 1, %s1288
        %s1294 = ssub.s32 %s1293, 1
        loop: start=0, step=1, limit=1
        $region771: #{bme_embedding_forward.1} parent=769 // loop_pre_header
          _
        $region772: #{bme_embedding_forward.1} parent=769 // loop_header
          %s1296 = sphi 0, %s1300
          %p1297 = scmp.ge.s32.totalorder %s1296, 1
          %s1301 = sphi %s1290, %s1290
          %s1302 = sphi %s1292, %s1292
        $region773: #{bme_embedding_forward.1} parent=769 // loop_header_branch
          %1299 = sbr.rel (%p1297) target = $region777
        $region774: #{bme_embedding_forward.1} parent=769 // loop_body
          %v1303 = vld [vmem:[%s1301] sm:%s1294]
          %1304 = vst [vmem:[%s1302] sm:%s1294] %v1303
        $region775: #{bme_embedding_forward.1} parent=769 // loop_footer
          %s1300 = sadd.s32 1, %s1296
        $region776: #{bme_embedding_forward.1} parent=769 // loop_footer_branch
          %1295 = sbr.rel target = $region772
        $region777: #{bme_embedding_forward.1} parent=769 // loop_exit
          _
      $region770: #{bme_embedding_forward.1} parent=754 // pred_fallthru
        _
    $region755: #{bme_embedding_forward.1} parent=1 // pred_fallthru
      _
    // Predicated region
    $region756: #{bme_embedding_forward.1} parent=1 // pred_check
      %p1268 = pneg %p1264
    $region757: #{bme_embedding_forward.1} parent=1 // pred_check_branch
      %1270 = sbr.rel (%p1268) target = $region759
    $region758: #{bme_embedding_forward.1} parent=1 // pred_region
      %s1271 = sshll.u32 1, 1
      %s1272 = ssub.s32 %s1271, 1
      loop: start=0, step=1, limit=1
      $region760: #{bme_embedding_forward.1} parent=758 // loop_pre_header
        _
      $region761: #{bme_embedding_forward.1} parent=758 // loop_header
        %s1274 = sphi 0, %s1278
        %p1275 = scmp.ge.s32.totalorder %s1274, 1
        %s1279 = sphi %s1261, %s1261
        %s1280 = sphi %s1262, %s1262
      $region762: #{bme_embedding_forward.1} parent=758 // loop_header_branch
        %1277 = sbr.rel (%p1275) target = $region766
      $region763: #{bme_embedding_forward.1} parent=758 // loop_body
        %v1281 = vld [vmem:[%s1279] sm:%s1272]
        %1282 = vst [vmem:[%s1280] sm:%s1272] %v1281
      $region764: #{bme_embedding_forward.1} parent=758 // loop_footer
        %s1278 = sadd.s32 1, %s1274
      $region765: #{bme_embedding_forward.1} parent=758 // loop_footer_branch
        %1273 = sbr.rel target = $region761
      $region766: #{bme_embedding_forward.1} parent=758 // loop_exit
        _
    $region759: #{bme_embedding_forward.1} parent=1 // pred_fallthru
      _
    // Predicated region
    $region778: #{bme_embedding_forward.1} parent=1 // pred_check
      _
    $region779: #{bme_embedding_forward.1} parent=1 // pred_check_branch
      %1307 = sbr.rel (0) target = $region781
    $region780: #{bme_embedding_forward.1} parent=1 // pred_region
      %1308 = vsyncadd %s74, 16
    $region781: #{bme_embedding_forward.1} parent=1 // pred_fallthru
      _
    %s1309 = sadd.s32 %s23, 13
    %s1310 = sld [smem:[#allocation6 + %s1309]]
    %s1311 = scalar_lea.vmem %s2, %s1310
    %s1312 = scalar_lea.vmem [#allocation2], 13
    %p1314 = scmp.lt.u32.totalorder 1, 8
    %p1315 = pneg %p1314
    // Predicated region
    $region782: #{bme_embedding_forward.1} parent=1 // pred_check
      _
    $region783: #{bme_embedding_forward.1} parent=1 // pred_check_branch
      %1317 = sbr.rel (%p1314) target = $region785
    $region784: #{bme_embedding_forward.1} parent=1 // pred_region
      %s1333 = sand.u32 1, 7
      %p1334 = scmp.eq.s32.totalorder %s1333, 0
      %p1335 = pneg %p1334
      // Predicated region
      $region797: #{bme_embedding_forward.1} parent=784 // pred_check
        _
      $region798: #{bme_embedding_forward.1} parent=784 // pred_check_branch
        %1337 = sbr.rel (%p1334) target = $region800
      $region799: #{bme_embedding_forward.1} parent=784 // pred_region
        %s1338 = sand.u32 1, 7
        %s1339 = ssub.s32 1, %s1338
        %s1340 = scalar_lea.vmem %s1311, %s1339
        %s1341 = ssub.s32 1, %s1338
        %s1342 = scalar_lea.vmem %s1312, %s1341 [#allocation2]
        %s1343 = sshll.u32 1, %s1338
        %s1344 = ssub.s32 %s1343, 1
        loop: start=0, step=1, limit=1
        $region801: #{bme_embedding_forward.1} parent=799 // loop_pre_header
          _
        $region802: #{bme_embedding_forward.1} parent=799 // loop_header
          %s1346 = sphi 0, %s1350
          %p1347 = scmp.ge.s32.totalorder %s1346, 1
          %s1351 = sphi %s1340, %s1340
          %s1352 = sphi %s1342, %s1342
        $region803: #{bme_embedding_forward.1} parent=799 // loop_header_branch
          %1349 = sbr.rel (%p1347) target = $region807
        $region804: #{bme_embedding_forward.1} parent=799 // loop_body
          %v1353 = vld [vmem:[%s1351] sm:%s1344]
          %1354 = vst [vmem:[%s1352] sm:%s1344] %v1353
        $region805: #{bme_embedding_forward.1} parent=799 // loop_footer
          %s1350 = sadd.s32 1, %s1346
        $region806: #{bme_embedding_forward.1} parent=799 // loop_footer_branch
          %1345 = sbr.rel target = $region802
        $region807: #{bme_embedding_forward.1} parent=799 // loop_exit
          _
      $region800: #{bme_embedding_forward.1} parent=784 // pred_fallthru
        _
    $region785: #{bme_embedding_forward.1} parent=1 // pred_fallthru
      _
    // Predicated region
    $region786: #{bme_embedding_forward.1} parent=1 // pred_check
      %p1318 = pneg %p1314
    $region787: #{bme_embedding_forward.1} parent=1 // pred_check_branch
      %1320 = sbr.rel (%p1318) target = $region789
    $region788: #{bme_embedding_forward.1} parent=1 // pred_region
      %s1321 = sshll.u32 1, 1
      %s1322 = ssub.s32 %s1321, 1
      loop: start=0, step=1, limit=1
      $region790: #{bme_embedding_forward.1} parent=788 // loop_pre_header
        _
      $region791: #{bme_embedding_forward.1} parent=788 // loop_header
        %s1324 = sphi 0, %s1328
        %p1325 = scmp.ge.s32.totalorder %s1324, 1
        %s1329 = sphi %s1311, %s1311
        %s1330 = sphi %s1312, %s1312
      $region792: #{bme_embedding_forward.1} parent=788 // loop_header_branch
        %1327 = sbr.rel (%p1325) target = $region796
      $region793: #{bme_embedding_forward.1} parent=788 // loop_body
        %v1331 = vld [vmem:[%s1329] sm:%s1322]
        %1332 = vst [vmem:[%s1330] sm:%s1322] %v1331
      $region794: #{bme_embedding_forward.1} parent=788 // loop_footer
        %s1328 = sadd.s32 1, %s1324
      $region795: #{bme_embedding_forward.1} parent=788 // loop_footer_branch
        %1323 = sbr.rel target = $region791
      $region796: #{bme_embedding_forward.1} parent=788 // loop_exit
        _
    $region789: #{bme_embedding_forward.1} parent=1 // pred_fallthru
      _
    // Predicated region
    $region808: #{bme_embedding_forward.1} parent=1 // pred_check
      _
    $region809: #{bme_embedding_forward.1} parent=1 // pred_check_branch
      %1357 = sbr.rel (0) target = $region811
    $region810: #{bme_embedding_forward.1} parent=1 // pred_region
      %1358 = vsyncadd [#allocation4], 16
    $region811: #{bme_embedding_forward.1} parent=1 // pred_fallthru
      _
    %s1359 = sld [smem:[#allocation7 + %s1309]]
    %s1360 = scalar_lea.vmem %s3, %s1359
    %s1361 = scalar_lea.vmem [#allocation3], 13
    %p1363 = scmp.lt.u32.totalorder 1, 8
    %p1364 = pneg %p1363
    // Predicated region
    $region812: #{bme_embedding_forward.1} parent=1 // pred_check
      _
    $region813: #{bme_embedding_forward.1} parent=1 // pred_check_branch
      %1366 = sbr.rel (%p1363) target = $region815
    $region814: #{bme_embedding_forward.1} parent=1 // pred_region
      %s1382 = sand.u32 1, 7
      %p1383 = scmp.eq.s32.totalorder %s1382, 0
      %p1384 = pneg %p1383
      // Predicated region
      $region827: #{bme_embedding_forward.1} parent=814 // pred_check
        _
      $region828: #{bme_embedding_forward.1} parent=814 // pred_check_branch
        %1386 = sbr.rel (%p1383) target = $region830
      $region829: #{bme_embedding_forward.1} parent=814 // pred_region
        %s1387 = sand.u32 1, 7
        %s1388 = ssub.s32 1, %s1387
        %s1389 = scalar_lea.vmem %s1360, %s1388
        %s1390 = ssub.s32 1, %s1387
        %s1391 = scalar_lea.vmem %s1361, %s1390 [#allocation3]
        %s1392 = sshll.u32 1, %s1387
        %s1393 = ssub.s32 %s1392, 1
        loop: start=0, step=1, limit=1
        $region831: #{bme_embedding_forward.1} parent=829 // loop_pre_header
          _
        $region832: #{bme_embedding_forward.1} parent=829 // loop_header
          %s1395 = sphi 0, %s1399
          %p1396 = scmp.ge.s32.totalorder %s1395, 1
          %s1400 = sphi %s1389, %s1389
          %s1401 = sphi %s1391, %s1391
        $region833: #{bme_embedding_forward.1} parent=829 // loop_header_branch
          %1398 = sbr.rel (%p1396) target = $region837
        $region834: #{bme_embedding_forward.1} parent=829 // loop_body
          %v1402 = vld [vmem:[%s1400] sm:%s1393]
          %1403 = vst [vmem:[%s1401] sm:%s1393] %v1402
        $region835: #{bme_embedding_forward.1} parent=829 // loop_footer
          %s1399 = sadd.s32 1, %s1395
        $region836: #{bme_embedding_forward.1} parent=829 // loop_footer_branch
          %1394 = sbr.rel target = $region832
        $region837: #{bme_embedding_forward.1} parent=829 // loop_exit
          _
      $region830: #{bme_embedding_forward.1} parent=814 // pred_fallthru
        _
    $region815: #{bme_embedding_forward.1} parent=1 // pred_fallthru
      _
    // Predicated region
    $region816: #{bme_embedding_forward.1} parent=1 // pred_check
      %p1367 = pneg %p1363
    $region817: #{bme_embedding_forward.1} parent=1 // pred_check_branch
      %1369 = sbr.rel (%p1367) target = $region819
    $region818: #{bme_embedding_forward.1} parent=1 // pred_region
      %s1370 = sshll.u32 1, 1
      %s1371 = ssub.s32 %s1370, 1
      loop: start=0, step=1, limit=1
      $region820: #{bme_embedding_forward.1} parent=818 // loop_pre_header
        _
      $region821: #{bme_embedding_forward.1} parent=818 // loop_header
        %s1373 = sphi 0, %s1377
        %p1374 = scmp.ge.s32.totalorder %s1373, 1
        %s1378 = sphi %s1360, %s1360
        %s1379 = sphi %s1361, %s1361
      $region822: #{bme_embedding_forward.1} parent=818 // loop_header_branch
        %1376 = sbr.rel (%p1374) target = $region826
      $region823: #{bme_embedding_forward.1} parent=818 // loop_body
        %v1380 = vld [vmem:[%s1378] sm:%s1371]
        %1381 = vst [vmem:[%s1379] sm:%s1371] %v1380
      $region824: #{bme_embedding_forward.1} parent=818 // loop_footer
        %s1377 = sadd.s32 1, %s1373
      $region825: #{bme_embedding_forward.1} parent=818 // loop_footer_branch
        %1372 = sbr.rel target = $region821
      $region826: #{bme_embedding_forward.1} parent=818 // loop_exit
        _
    $region819: #{bme_embedding_forward.1} parent=1 // pred_fallthru
      _
    // Predicated region
    $region838: #{bme_embedding_forward.1} parent=1 // pred_check
      _
    $region839: #{bme_embedding_forward.1} parent=1 // pred_check_branch
      %1406 = sbr.rel (0) target = $region841
    $region840: #{bme_embedding_forward.1} parent=1 // pred_region
      %1407 = vsyncadd %s74, 16
    $region841: #{bme_embedding_forward.1} parent=1 // pred_fallthru
      _
    %s1408 = sadd.s32 %s23, 14
    %s1409 = sld [smem:[#allocation6 + %s1408]]
    %s1410 = scalar_lea.vmem %s2, %s1409
    %s1411 = scalar_lea.vmem [#allocation2], 14
    %p1413 = scmp.lt.u32.totalorder 1, 8
    %p1414 = pneg %p1413
    // Predicated region
    $region842: #{bme_embedding_forward.1} parent=1 // pred_check
      _
    $region843: #{bme_embedding_forward.1} parent=1 // pred_check_branch
      %1416 = sbr.rel (%p1413) target = $region845
    $region844: #{bme_embedding_forward.1} parent=1 // pred_region
      %s1432 = sand.u32 1, 7
      %p1433 = scmp.eq.s32.totalorder %s1432, 0
      %p1434 = pneg %p1433
      // Predicated region
      $region857: #{bme_embedding_forward.1} parent=844 // pred_check
        _
      $region858: #{bme_embedding_forward.1} parent=844 // pred_check_branch
        %1436 = sbr.rel (%p1433) target = $region860
      $region859: #{bme_embedding_forward.1} parent=844 // pred_region
        %s1437 = sand.u32 1, 7
        %s1438 = ssub.s32 1, %s1437
        %s1439 = scalar_lea.vmem %s1410, %s1438
        %s1440 = ssub.s32 1, %s1437
        %s1441 = scalar_lea.vmem %s1411, %s1440 [#allocation2]
        %s1442 = sshll.u32 1, %s1437
        %s1443 = ssub.s32 %s1442, 1
        loop: start=0, step=1, limit=1
        $region861: #{bme_embedding_forward.1} parent=859 // loop_pre_header
          _
        $region862: #{bme_embedding_forward.1} parent=859 // loop_header
          %s1445 = sphi 0, %s1449
          %p1446 = scmp.ge.s32.totalorder %s1445, 1
          %s1450 = sphi %s1439, %s1439
          %s1451 = sphi %s1441, %s1441
        $region863: #{bme_embedding_forward.1} parent=859 // loop_header_branch
          %1448 = sbr.rel (%p1446) target = $region867
        $region864: #{bme_embedding_forward.1} parent=859 // loop_body
          %v1452 = vld [vmem:[%s1450] sm:%s1443]
          %1453 = vst [vmem:[%s1451] sm:%s1443] %v1452
        $region865: #{bme_embedding_forward.1} parent=859 // loop_footer
          %s1449 = sadd.s32 1, %s1445
        $region866: #{bme_embedding_forward.1} parent=859 // loop_footer_branch
          %1444 = sbr.rel target = $region862
        $region867: #{bme_embedding_forward.1} parent=859 // loop_exit
          _
      $region860: #{bme_embedding_forward.1} parent=844 // pred_fallthru
        _
    $region845: #{bme_embedding_forward.1} parent=1 // pred_fallthru
      _
    // Predicated region
    $region846: #{bme_embedding_forward.1} parent=1 // pred_check
      %p1417 = pneg %p1413
    $region847: #{bme_embedding_forward.1} parent=1 // pred_check_branch
      %1419 = sbr.rel (%p1417) target = $region849
    $region848: #{bme_embedding_forward.1} parent=1 // pred_region
      %s1420 = sshll.u32 1, 1
      %s1421 = ssub.s32 %s1420, 1
      loop: start=0, step=1, limit=1
      $region850: #{bme_embedding_forward.1} parent=848 // loop_pre_header
        _
      $region851: #{bme_embedding_forward.1} parent=848 // loop_header
        %s1423 = sphi 0, %s1427
        %p1424 = scmp.ge.s32.totalorder %s1423, 1
        %s1428 = sphi %s1410, %s1410
        %s1429 = sphi %s1411, %s1411
      $region852: #{bme_embedding_forward.1} parent=848 // loop_header_branch
        %1426 = sbr.rel (%p1424) target = $region856
      $region853: #{bme_embedding_forward.1} parent=848 // loop_body
        %v1430 = vld [vmem:[%s1428] sm:%s1421]
        %1431 = vst [vmem:[%s1429] sm:%s1421] %v1430
      $region854: #{bme_embedding_forward.1} parent=848 // loop_footer
        %s1427 = sadd.s32 1, %s1423
      $region855: #{bme_embedding_forward.1} parent=848 // loop_footer_branch
        %1422 = sbr.rel target = $region851
      $region856: #{bme_embedding_forward.1} parent=848 // loop_exit
        _
    $region849: #{bme_embedding_forward.1} parent=1 // pred_fallthru
      _
    // Predicated region
    $region868: #{bme_embedding_forward.1} parent=1 // pred_check
      _
    $region869: #{bme_embedding_forward.1} parent=1 // pred_check_branch
      %1456 = sbr.rel (0) target = $region871
    $region870: #{bme_embedding_forward.1} parent=1 // pred_region
      %1457 = vsyncadd [#allocation4], 16
    $region871: #{bme_embedding_forward.1} parent=1 // pred_fallthru
      _
    %s1458 = sld [smem:[#allocation7 + %s1408]]
    %s1459 = scalar_lea.vmem %s3, %s1458
    %s1460 = scalar_lea.vmem [#allocation3], 14
    %p1462 = scmp.lt.u32.totalorder 1, 8
    %p1463 = pneg %p1462
    // Predicated region
    $region872: #{bme_embedding_forward.1} parent=1 // pred_check
      _
    $region873: #{bme_embedding_forward.1} parent=1 // pred_check_branch
      %1465 = sbr.rel (%p1462) target = $region875
    $region874: #{bme_embedding_forward.1} parent=1 // pred_region
      %s1481 = sand.u32 1, 7
      %p1482 = scmp.eq.s32.totalorder %s1481, 0
      %p1483 = pneg %p1482
      // Predicated region
      $region887: #{bme_embedding_forward.1} parent=874 // pred_check
        _
      $region888: #{bme_embedding_forward.1} parent=874 // pred_check_branch
        %1485 = sbr.rel (%p1482) target = $region890
      $region889: #{bme_embedding_forward.1} parent=874 // pred_region
        %s1486 = sand.u32 1, 7
        %s1487 = ssub.s32 1, %s1486
        %s1488 = scalar_lea.vmem %s1459, %s1487
        %s1489 = ssub.s32 1, %s1486
        %s1490 = scalar_lea.vmem %s1460, %s1489 [#allocation3]
        %s1491 = sshll.u32 1, %s1486
        %s1492 = ssub.s32 %s1491, 1
        loop: start=0, step=1, limit=1
        $region891: #{bme_embedding_forward.1} parent=889 // loop_pre_header
          _
        $region892: #{bme_embedding_forward.1} parent=889 // loop_header
          %s1494 = sphi 0, %s1498
          %p1495 = scmp.ge.s32.totalorder %s1494, 1
          %s1499 = sphi %s1488, %s1488
          %s1500 = sphi %s1490, %s1490
        $region893: #{bme_embedding_forward.1} parent=889 // loop_header_branch
          %1497 = sbr.rel (%p1495) target = $region897
        $region894: #{bme_embedding_forward.1} parent=889 // loop_body
          %v1501 = vld [vmem:[%s1499] sm:%s1492]
          %1502 = vst [vmem:[%s1500] sm:%s1492] %v1501
        $region895: #{bme_embedding_forward.1} parent=889 // loop_footer
          %s1498 = sadd.s32 1, %s1494
        $region896: #{bme_embedding_forward.1} parent=889 // loop_footer_branch
          %1493 = sbr.rel target = $region892
        $region897: #{bme_embedding_forward.1} parent=889 // loop_exit
          _
      $region890: #{bme_embedding_forward.1} parent=874 // pred_fallthru
        _
    $region875: #{bme_embedding_forward.1} parent=1 // pred_fallthru
      _
    // Predicated region
    $region876: #{bme_embedding_forward.1} parent=1 // pred_check
      %p1466 = pneg %p1462
    $region877: #{bme_embedding_forward.1} parent=1 // pred_check_branch
      %1468 = sbr.rel (%p1466) target = $region879
    $region878: #{bme_embedding_forward.1} parent=1 // pred_region
      %s1469 = sshll.u32 1, 1
      %s1470 = ssub.s32 %s1469, 1
      loop: start=0, step=1, limit=1
      $region880: #{bme_embedding_forward.1} parent=878 // loop_pre_header
        _
      $region881: #{bme_embedding_forward.1} parent=878 // loop_header
        %s1472 = sphi 0, %s1476
        %p1473 = scmp.ge.s32.totalorder %s1472, 1
        %s1477 = sphi %s1459, %s1459
        %s1478 = sphi %s1460, %s1460
      $region882: #{bme_embedding_forward.1} parent=878 // loop_header_branch
        %1475 = sbr.rel (%p1473) target = $region886
      $region883: #{bme_embedding_forward.1} parent=878 // loop_body
        %v1479 = vld [vmem:[%s1477] sm:%s1470]
        %1480 = vst [vmem:[%s1478] sm:%s1470] %v1479
      $region884: #{bme_embedding_forward.1} parent=878 // loop_footer
        %s1476 = sadd.s32 1, %s1472
      $region885: #{bme_embedding_forward.1} parent=878 // loop_footer_branch
        %1471 = sbr.rel target = $region881
      $region886: #{bme_embedding_forward.1} parent=878 // loop_exit
        _
    $region879: #{bme_embedding_forward.1} parent=1 // pred_fallthru
      _
    // Predicated region
    $region898: #{bme_embedding_forward.1} parent=1 // pred_check
      _
    $region899: #{bme_embedding_forward.1} parent=1 // pred_check_branch
      %1505 = sbr.rel (0) target = $region901
    $region900: #{bme_embedding_forward.1} parent=1 // pred_region
      %1506 = vsyncadd %s74, 16
    $region901: #{bme_embedding_forward.1} parent=1 // pred_fallthru
      _
    %s1507 = sadd.s32 %s23, 15
    %s1508 = sld [smem:[#allocation6 + %s1507]]
    %s1509 = scalar_lea.vmem %s2, %s1508
    %s1510 = scalar_lea.vmem [#allocation2], 15
    %p1512 = scmp.lt.u32.totalorder 1, 8
    %p1513 = pneg %p1512
    // Predicated region
    $region902: #{bme_embedding_forward.1} parent=1 // pred_check
      _
    $region903: #{bme_embedding_forward.1} parent=1 // pred_check_branch
      %1515 = sbr.rel (%p1512) target = $region905
    $region904: #{bme_embedding_forward.1} parent=1 // pred_region
      %s1531 = sand.u32 1, 7
      %p1532 = scmp.eq.s32.totalorder %s1531, 0
      %p1533 = pneg %p1532
      // Predicated region
      $region917: #{bme_embedding_forward.1} parent=904 // pred_check
        _
      $region918: #{bme_embedding_forward.1} parent=904 // pred_check_branch
        %1535 = sbr.rel (%p1532) target = $region920
      $region919: #{bme_embedding_forward.1} parent=904 // pred_region
        %s1536 = sand.u32 1, 7
        %s1537 = ssub.s32 1, %s1536
        %s1538 = scalar_lea.vmem %s1509, %s1537
        %s1539 = ssub.s32 1, %s1536
        %s1540 = scalar_lea.vmem %s1510, %s1539 [#allocation2]
        %s1541 = sshll.u32 1, %s1536
        %s1542 = ssub.s32 %s1541, 1
        loop: start=0, step=1, limit=1
        $region921: #{bme_embedding_forward.1} parent=919 // loop_pre_header
          _
        $region922: #{bme_embedding_forward.1} parent=919 // loop_header
          %s1544 = sphi 0, %s1548
          %p1545 = scmp.ge.s32.totalorder %s1544, 1
          %s1549 = sphi %s1538, %s1538
          %s1550 = sphi %s1540, %s1540
        $region923: #{bme_embedding_forward.1} parent=919 // loop_header_branch
          %1547 = sbr.rel (%p1545) target = $region927
        $region924: #{bme_embedding_forward.1} parent=919 // loop_body
          %v1551 = vld [vmem:[%s1549] sm:%s1542]
          %1552 = vst [vmem:[%s1550] sm:%s1542] %v1551
        $region925: #{bme_embedding_forward.1} parent=919 // loop_footer
          %s1548 = sadd.s32 1, %s1544
        $region926: #{bme_embedding_forward.1} parent=919 // loop_footer_branch
          %1543 = sbr.rel target = $region922
        $region927: #{bme_embedding_forward.1} parent=919 // loop_exit
          _
      $region920: #{bme_embedding_forward.1} parent=904 // pred_fallthru
        _
    $region905: #{bme_embedding_forward.1} parent=1 // pred_fallthru
      _
    // Predicated region
    $region906: #{bme_embedding_forward.1} parent=1 // pred_check
      %p1516 = pneg %p1512
    $region907: #{bme_embedding_forward.1} parent=1 // pred_check_branch
      %1518 = sbr.rel (%p1516) target = $region909
    $region908: #{bme_embedding_forward.1} parent=1 // pred_region
      %s1519 = sshll.u32 1, 1
      %s1520 = ssub.s32 %s1519, 1
      loop: start=0, step=1, limit=1
      $region910: #{bme_embedding_forward.1} parent=908 // loop_pre_header
        _
      $region911: #{bme_embedding_forward.1} parent=908 // loop_header
        %s1522 = sphi 0, %s1526
        %p1523 = scmp.ge.s32.totalorder %s1522, 1
        %s1527 = sphi %s1509, %s1509
        %s1528 = sphi %s1510, %s1510
      $region912: #{bme_embedding_forward.1} parent=908 // loop_header_branch
        %1525 = sbr.rel (%p1523) target = $region916
      $region913: #{bme_embedding_forward.1} parent=908 // loop_body
        %v1529 = vld [vmem:[%s1527] sm:%s1520]
        %1530 = vst [vmem:[%s1528] sm:%s1520] %v1529
      $region914: #{bme_embedding_forward.1} parent=908 // loop_footer
        %s1526 = sadd.s32 1, %s1522
      $region915: #{bme_embedding_forward.1} parent=908 // loop_footer_branch
        %1521 = sbr.rel target = $region911
      $region916: #{bme_embedding_forward.1} parent=908 // loop_exit
        _
    $region909: #{bme_embedding_forward.1} parent=1 // pred_fallthru
      _
    // Predicated region
    $region928: #{bme_embedding_forward.1} parent=1 // pred_check
      _
    $region929: #{bme_embedding_forward.1} parent=1 // pred_check_branch
      %1555 = sbr.rel (0) target = $region931
    $region930: #{bme_embedding_forward.1} parent=1 // pred_region
      %1556 = vsyncadd [#allocation4], 16
    $region931: #{bme_embedding_forward.1} parent=1 // pred_fallthru
      _
    %s1557 = sld [smem:[#allocation7 + %s1507]]
    %s1558 = scalar_lea.vmem %s3, %s1557
    %s1559 = scalar_lea.vmem [#allocation3], 15
    %p1561 = scmp.lt.u32.totalorder 1, 8
    %p1562 = pneg %p1561
    // Predicated region
    $region932: #{bme_embedding_forward.1} parent=1 // pred_check
      _
    $region933: #{bme_embedding_forward.1} parent=1 // pred_check_branch
      %1564 = sbr.rel (%p1561) target = $region935
    $region934: #{bme_embedding_forward.1} parent=1 // pred_region
      %s1580 = sand.u32 1, 7
      %p1581 = scmp.eq.s32.totalorder %s1580, 0
      %p1582 = pneg %p1581
      // Predicated region
      $region947: #{bme_embedding_forward.1} parent=934 // pred_check
        _
      $region948: #{bme_embedding_forward.1} parent=934 // pred_check_branch
        %1584 = sbr.rel (%p1581) target = $region950
      $region949: #{bme_embedding_forward.1} parent=934 // pred_region
        %s1585 = sand.u32 1, 7
        %s1586 = ssub.s32 1, %s1585
        %s1587 = scalar_lea.vmem %s1558, %s1586
        %s1588 = ssub.s32 1, %s1585
        %s1589 = scalar_lea.vmem %s1559, %s1588 [#allocation3]
        %s1590 = sshll.u32 1, %s1585
        %s1591 = ssub.s32 %s1590, 1
        loop: start=0, step=1, limit=1
        $region951: #{bme_embedding_forward.1} parent=949 // loop_pre_header
          _
        $region952: #{bme_embedding_forward.1} parent=949 // loop_header
          %s1593 = sphi 0, %s1597
          %p1594 = scmp.ge.s32.totalorder %s1593, 1
          %s1598 = sphi %s1587, %s1587
          %s1599 = sphi %s1589, %s1589
        $region953: #{bme_embedding_forward.1} parent=949 // loop_header_branch
          %1596 = sbr.rel (%p1594) target = $region957
        $region954: #{bme_embedding_forward.1} parent=949 // loop_body
          %v1600 = vld [vmem:[%s1598] sm:%s1591]
          %1601 = vst [vmem:[%s1599] sm:%s1591] %v1600
        $region955: #{bme_embedding_forward.1} parent=949 // loop_footer
          %s1597 = sadd.s32 1, %s1593
        $region956: #{bme_embedding_forward.1} parent=949 // loop_footer_branch
          %1592 = sbr.rel target = $region952
        $region957: #{bme_embedding_forward.1} parent=949 // loop_exit
          _
      $region950: #{bme_embedding_forward.1} parent=934 // pred_fallthru
        _
    $region935: #{bme_embedding_forward.1} parent=1 // pred_fallthru
      _
    // Predicated region
    $region936: #{bme_embedding_forward.1} parent=1 // pred_check
      %p1565 = pneg %p1561
    $region937: #{bme_embedding_forward.1} parent=1 // pred_check_branch
      %1567 = sbr.rel (%p1565) target = $region939
    $region938: #{bme_embedding_forward.1} parent=1 // pred_region
      %s1568 = sshll.u32 1, 1
      %s1569 = ssub.s32 %s1568, 1
      loop: start=0, step=1, limit=1
      $region940: #{bme_embedding_forward.1} parent=938 // loop_pre_header
        _
      $region941: #{bme_embedding_forward.1} parent=938 // loop_header
        %s1571 = sphi 0, %s1575
        %p1572 = scmp.ge.s32.totalorder %s1571, 1
        %s1576 = sphi %s1558, %s1558
        %s1577 = sphi %s1559, %s1559
      $region942: #{bme_embedding_forward.1} parent=938 // loop_header_branch
        %1574 = sbr.rel (%p1572) target = $region946
      $region943: #{bme_embedding_forward.1} parent=938 // loop_body
        %v1578 = vld [vmem:[%s1576] sm:%s1569]
        %1579 = vst [vmem:[%s1577] sm:%s1569] %v1578
      $region944: #{bme_embedding_forward.1} parent=938 // loop_footer
        %s1575 = sadd.s32 1, %s1571
      $region945: #{bme_embedding_forward.1} parent=938 // loop_footer_branch
        %1570 = sbr.rel target = $region941
      $region946: #{bme_embedding_forward.1} parent=938 // loop_exit
        _
    $region939: #{bme_embedding_forward.1} parent=1 // pred_fallthru
      _
    // Predicated region
    $region958: #{bme_embedding_forward.1} parent=1 // pred_check
      _
    $region959: #{bme_embedding_forward.1} parent=1 // pred_check_branch
      %1604 = sbr.rel (0) target = $region961
    $region960: #{bme_embedding_forward.1} parent=1 // pred_region
      %1605 = vsyncadd %s74, 16
    $region961: #{bme_embedding_forward.1} parent=1 // pred_fallthru
      _
    %1607 = dma.done [#allocation4], 16
    %1609 = dma.done %s74, 16
    %1611 = dma.done [#allocation4], 16
    %1613 = dma.done %s74, 16
    %1615 = dma.done [#allocation4], 16
    %1617 = dma.done %s74, 16
    %1619 = dma.done [#allocation4], 16
    %1621 = dma.done %s74, 16
    %1623 = dma.done [#allocation4], 16
    %1625 = dma.done %s74, 16
    %1627 = dma.done [#allocation4], 16
    %1629 = dma.done %s74, 16
    %1631 = dma.done [#allocation4], 16
    %1633 = dma.done %s74, 16
    %1635 = dma.done [#allocation4], 16
    %1637 = dma.done %s74, 16
    %1639 = dma.done [#allocation4], 16
    %1641 = dma.done %s74, 16
    %1643 = dma.done [#allocation4], 16
    %1645 = dma.done %s74, 16
    %1647 = dma.done [#allocation4], 16
    %1649 = dma.done %s74, 16
    %1651 = dma.done [#allocation4], 16
    %1653 = dma.done %s74, 16
    %1655 = dma.done [#allocation4], 16
    %1657 = dma.done %s74, 16
    %1659 = dma.done [#allocation4], 16
    %1661 = dma.done %s74, 16
    %1663 = dma.done [#allocation4], 16
    %1665 = dma.done %s74, 16
    %1667 = dma.done [#allocation4], 16
    %1669 = dma.done %s74, 16
    %v1670 = vld [vmem:[#allocation2] sm:$0xff]
    %v1671 = vld [vmem:[#allocation2 + $0x8] sm:$0xff]
    %vm1672 = vcmask 261120
    %1673 = vst.msk [vmem:[#allocation8] sm:$0xff] %vm1672, %v1670
    %1674 = vst.msk [vmem:[#allocation8 + $0x8] sm:$0xff] %vm1672, %v1671
    %v1675 = vld [vmem:[#allocation3] sm:$0xff]
    %v1676 = vld [vmem:[#allocation3 + $0x8] sm:$0xff]
    %1677 = vst.msk [vmem:[#allocation10] sm:$0xff] %vm1672, %v1675
    %1678 = vst.msk [vmem:[#allocation10 + $0x8] sm:$0xff] %vm1672, %v1676
    // Predicated region
    $region962: #{bme_embedding_forward.1} parent=1 // pred_check
      _
    $region963: #{bme_embedding_forward.1} parent=1 // pred_check_branch
      %1680 = sbr.rel (0) target = $region965
    $region964: #{bme_embedding_forward.1} parent=1 // pred_region
      %s1682 = ssub.s32 256, 256
      %1683 = vsyncadd [#allocation9], %s1682
      %s1684 = sshll.u32 [#allocation8], 4
      %s1685 = int_to_ptr.vmem [resolvable:$true] %s1684
      %1690 = dma.vmem_to_hbm [thread:$0]  %s1685, 256, %s4, [#allocation9], 128, 128, 8
    $region965: #{bme_embedding_forward.1} parent=1 // pred_fallthru
      _
    // Predicated region
    $region966: #{bme_embedding_forward.1} parent=1 // pred_check
      _
    $region967: #{bme_embedding_forward.1} parent=1 // pred_check_branch
      %1692 = sbr.rel (0) target = $region969
    $region968: #{bme_embedding_forward.1} parent=1 // pred_region
      %s1694 = ssub.s32 256, 256
      %1695 = vsyncadd [#allocation11], %s1694
      %s1696 = sshll.u32 [#allocation10], 4
      %s1697 = int_to_ptr.vmem [resolvable:$true] %s1696
      %1702 = dma.vmem_to_hbm [thread:$0]  %s1697, 256, %s5, [#allocation11], 128, 128, 8
    $region969: #{bme_embedding_forward.1} parent=1 // pred_fallthru
      _
    // Predicated region
    $region970: #{bme_embedding_forward.1} parent=1 // pred_check
      _
    $region971: #{bme_embedding_forward.1} parent=1 // pred_check_branch
      %1704 = sbr.rel (0) target = $region973
    $region972: #{bme_embedding_forward.1} parent=1 // pred_region
      %1705 = dma.done [#allocation9], 256
    $region973: #{bme_embedding_forward.1} parent=1 // pred_fallthru
      _
    // Predicated region
    $region974: #{bme_embedding_forward.1} parent=1 // pred_check
      _
    $region975: #{bme_embedding_forward.1} parent=1 // pred_check_branch
      %1707 = sbr.rel (0) target = $region977
    $region976: #{bme_embedding_forward.1} parent=1 // pred_region
      %1708 = dma.done [#allocation11], 256
    $region977: #{bme_embedding_forward.1} parent=1 // pred_fallthru
      _
    %1709 = vsyncpa [#allocation9], 1
    %1710 = vsyncpa [#allocation11], 1
  %1711 = vsyncmov [#allocation4]
  %s1712 = vpop.sfrf %1711
  %p1713 = scmp.eq.s32.totalorder %s1712, 0
  %p1714 = pneg %p1713
  %1716 = shalt.err (%p1714)
  %s1717 = scalar_lea.sflag [#allocation4], 1
  %1718 = vsyncmov %s1717
  %s1719 = vpop.sfrf %1718
  %p1720 = scmp.eq.s32.totalorder %s1719, 0
  %p1721 = pneg %p1720
  %1723 = shalt.err (%p1721)

</llo_original>
